<compile_context>
chip_gen: v7x
topology: tpu7x:2x2x1
jax: 0.10.0
libtpu: 0.0.40
codegen_flags: <defaults>
</compile_context>

<pallas_src>
import functools
import math

import jax
import jax.numpy as jnp
from jax.experimental import pallas as pl
from jax.experimental.pallas import tpu as pltpu


def _layer_norm(h, gamma, beta, eps=1e-5):
    mu = jnp.mean(h, axis=-1, keepdims=True)
    var = jnp.mean((h - mu) ** 2, axis=-1, keepdims=True)
    return (h - mu) * jax.lax.rsqrt(var + eps) * gamma + beta


def encoder_block_kernel(
    lens_ref,                      # scalar prefetch: (B,) int32 valid key lengths
    xkv_ref,                       # (1, S, D)  bf16 — full sequence, K/V projection
    xq_ref,                        # (1, TQ, D) f32  — query tile + residual
    wq_ref, bq_ref,                # (D, D)  bf16, (1, D)  f32
    wkv_ref, bkv_ref,              # (D, 2D) bf16, (1, 2D) f32
    wo_ref, bo_ref,                # (D, D)  bf16, (1, D)  f32
    g1_ref, be1_ref,               # (1, D)  f32
    w1_ref, c1_ref,                # (D, F)  bf16, (1, F)  f32
    w2_ref, c2_ref,                # (F, D)  bf16, (1, D)  f32
    g2_ref, be2_ref,               # (1, D)  f32
    o_ref,                         # (1, TQ, D)
    k_scr, v_scr,                  # VMEM scratch (H, S, dh) bf16, head-major
    attn_scr,                      # VMEM scratch (TQ, D) bf16 — per-head outputs
    *, num_heads, tq,
):
    b = pl.program_id(0)
    qt = pl.program_id(1)
    S = xkv_ref.shape[1]
    D = xq_ref.shape[2]
    dh = D // num_heads
    scale = 1.0 / math.sqrt(dh)

    # ---- K/V projection for the full sequence, once per batch element -------
    # One (S, D) x (D, 2D) bf16 matmul, then a single head-major relayout so
    # every per-tile head read below starts at lane 0 (no per-step realigns).
    @pl.when(qt == 0)
    def _():
        kv = jnp.dot(xkv_ref[0], wkv_ref[...],
                     preferred_element_type=jnp.float32) + bkv_ref[...]
        kv = kv.astype(jnp.bfloat16)                              # (S, 2D)
        for h in range(num_heads):
            lo = h * dh
            k_scr[h] = kv[:, lo:lo + dh]
            v_scr[h] = kv[:, D + lo:D + lo + dh]

    # ---- per-tile Q projection (full K = D MXU contraction fill) ------------
    x_q = xq_ref[0]                                               # (TQ, D) f32
    q = jnp.dot(x_q.astype(jnp.bfloat16), wq_ref[...],
                preferred_element_type=jnp.float32) + bq_ref[...]
    q = (q * scale).astype(jnp.bfloat16)                          # (TQ, D)

    # key-padding mask rebuilt from the per-batch valid length (SMEM scalar)
    valid_len = lens_ref[b]
    col_ids = jax.lax.broadcasted_iota(jnp.int32, (tq, S), 1)
    kmask = col_ids < valid_len

    # ---- multi-head attention ------------------------------------------------
    # TODO(synk): for large S, tile the key axis with an online (flash-style)
    # softmax so the (TQ, S) f32 score tile stays within the vreg file.
    for h in range(num_heads):                                    # static unroll
        q_h = q[:, h * dh:(h + 1) * dh]                           # (TQ, dh) bf16
        s = jax.lax.dot_general(                                  # (TQ, S)  f32
            q_h, k_scr[h], (((1,), (1,)), ((), ())),
            preferred_element_type=jnp.float32)
        s = jnp.where(kmask, s, jnp.float32(-1e9))
        s = s - jnp.max(s, axis=-1, keepdims=True)
        p = jnp.exp(s)
        p = p * pl.reciprocal(jnp.sum(p, axis=-1, keepdims=True), approx=True)
        hout = jnp.dot(p.astype(jnp.bfloat16), v_scr[h],
                       preferred_element_type=jnp.float32)        # (TQ, dh)
        attn_scr[:, pl.ds(h * dh, dh)] = hout.astype(jnp.bfloat16)

    # single full-contraction output projection (was H K=dh matmuls)
    attn = jnp.dot(attn_scr[...], wo_ref[...],
                   preferred_element_type=jnp.float32) + bo_ref[...]

    # dropout1 is identity (eval mode)
    h1 = _layer_norm(attn + x_q, g1_ref[...], be1_ref[...])

    # ---- position-wise FFN (dropout inside is identity in eval mode) --------
    f = jnp.dot(h1.astype(jnp.bfloat16), w1_ref[...],
                preferred_element_type=jnp.float32) + c1_ref[...]
    f = jnp.maximum(f, 0.0)
    f = jnp.dot(f.astype(jnp.bfloat16), w2_ref[...],
                preferred_element_type=jnp.float32) + c2_ref[...]

    # dropout2 is identity (eval mode)
    out = _layer_norm(f + h1, g2_ref[...], be2_ref[...])
    o_ref[0] = out.astype(o_ref.dtype)


def encoder_block(x, valid_lens, params, *, num_heads, tq=128):
    B, S, D = x.shape
    F = params["w1"].shape[1]
    tq = min(tq, S)
    assert S % tq == 0 and D % num_heads == 0
    nq = S // tq
    dh = D // num_heads
    bf16 = jnp.bfloat16

    # Ship MXU weights as bf16; fuse the K & V projection weights/biases.
    w_q = params["wq"].astype(bf16)
    b_q = params["bq"].astype(jnp.float32)
    w_kv = jnp.concatenate([params["wk"], params["wv"]], axis=1).astype(bf16)
    b_kv = jnp.concatenate([params["bk"], params["bv"]], axis=1).astype(jnp.float32)
    wo = params["wo"].astype(bf16)
    w1 = params["w1"].astype(bf16)
    w2 = params["w2"].astype(bf16)
    x_kv = x.astype(bf16)   # full-sequence block, only used for the K/V matmul

    operands = (valid_lens, x_kv, x,
                w_q, b_q, w_kv, b_kv, wo, params["bo"],
                params["g1"], params["be1"], w1, params["c1"],
                w2, params["c2"], params["g2"], params["be2"])

    kernel = functools.partial(encoder_block_kernel, num_heads=num_heads, tq=tq)

    # ---- VMEM budget & cost estimate derived from the actual shapes ---------
    def nbytes(a):
        return a.size * a.dtype.itemsize

    weight_bytes = sum(nbytes(a) for a in operands[3:])
    stream_bytes = 2 * (S * D * 2 + 2 * tq * D * 4)      # x_kv, x tile, out (dbl-buf)
    scratch_bytes = 2 * S * D * 2 + tq * D * 2           # K, V, head-output scratch
    vmem_limit = int(min(max(2 * weight_bytes + stream_bytes + scratch_bytes
                             + (16 << 20), 32 << 20), 100 << 20))
    # NOTE: on v7x (64 MiB physical VMEM) shrink tq / S tiles if this estimate
    # approaches 64 MiB.

    cost = pl.CostEstimate(
        flops=int(2 * B * S * (4 * D * D + 2 * S * D + 2 * D * F)),
        transcendentals=int(B * num_heads * S * S),
        bytes_accessed=int(B * S * D * (2 + 4 + 4) + weight_bytes),
    )

    def build(single_buffer_weights):
        def const_spec(arr):
            idx = lambda b, q, lens: (0,) * arr.ndim
            if single_buffer_weights:
                # grid-invariant block: one VMEM buffer is enough
                return pl.BlockSpec(arr.shape, idx, pipeline_mode=pl.Buffered(1))
            return pl.BlockSpec(arr.shape, idx)

        in_specs = [
            pl.BlockSpec((1, S, D), lambda b, q, lens: (b, 0, 0)),   # x_kv (bf16)
            pl.BlockSpec((1, tq, D), lambda b, q, lens: (b, q, 0)),  # x tile (f32)
            const_spec(w_q), const_spec(b_q),
            const_spec(w_kv), const_spec(b_kv),
            const_spec(wo), const_spec(params["bo"]),
            const_spec(params["g1"]), const_spec(params["be1"]),
            const_spec(w1), const_spec(params["c1"]),
            const_spec(w2), const_spec(params["c2"]),
            const_spec(params["g2"]), const_spec(params["be2"]),
        ]
        return pl.pallas_call(
            kernel,
            out_shape=jax.ShapeDtypeStruct((B, S, D), x.dtype),
            grid_spec=pltpu.PrefetchScalarGridSpec(
                num_scalar_prefetch=1,
                grid=(B, nq),
                in_specs=in_specs,
                out_specs=pl.BlockSpec((1, tq, D), lambda b, q, lens: (b, q, 0)),
                scratch_shapes=[
                    pltpu.VMEM((num_heads, S, dh), bf16),   # K, head-major
                    pltpu.VMEM((num_heads, S, dh), bf16),   # V, head-major
                    pltpu.VMEM((tq, D), bf16),              # per-head outputs
                ],
            ),
            # Batch axis "parallel" (megacore on v7x; no-op on v5e/v6e); the
            # query-tile axis is sequential so the K/V scratch is reused.
            # TODO(synk): if B < number of TensorCores, flatten (B, nq) into a
            # single parallel axis (requires dropping the qt==0 scratch fill).
            compiler_params=pltpu.CompilerParams(
                dimension_semantics=("parallel", "arbitrary"),
                vmem_limit_bytes=vmem_limit,
            ),
            cost_estimate=cost,
        )

    use_single_buffer = hasattr(pl, "Buffered")
    try:
        return build(use_single_buffer)(*operands)
    except Exception:
        if not use_single_buffer:
            raise
        # BlockSpec(pipeline_mode=pl.Buffered(1)) unsupported on this JAX;
        # fall back to default double-buffered weight blocks.
        return build(False)(*operands)


def encoder_block_reference(x, valid_lens, params, *, num_heads):
    """Pure-JAX f32 reference for verification (key-padding mask)."""
    B, S, D = x.shape
    dh = D // num_heads
    q = x @ params["wq"] + params["bq"]
    k = x @ params["wk"] + params["bk"]
    v = x @ params["wv"] + params["bv"]
    q = q.reshape(B, S, num_heads, dh).transpose(0, 2, 1, 3)
    k = k.reshape(B, S, num_heads, dh).transpose(0, 2, 1, 3)
    v = v.reshape(B, S, num_heads, dh).transpose(0, 2, 1, 3)
    scores = jnp.einsum("bhqd,bhkd->bhqk", q, k) / jnp.sqrt(jnp.float32(dh))
    mask = jnp.arange(S)[None, None, None, :] < valid_lens[:, None, None, None]
    scores = jnp.where(mask, scores, -1e9)
    p = jax.nn.softmax(scores, axis=-1)
    attn = jnp.einsum("bhqk,bhkd->bhqd", p, v).transpose(0, 2, 1, 3).reshape(B, S, D)
    attn = attn @ params["wo"] + params["bo"]

    def ln(h, g, b):
        mu = jnp.mean(h, axis=-1, keepdims=True)
        var = jnp.mean((h - mu) ** 2, axis=-1, keepdims=True)
        return (h - mu) * jax.lax.rsqrt(var + 1e-5) * g + b

    h1 = ln(attn + x, params["g1"], params["be1"])
    f = jnp.maximum(h1 @ params["w1"] + params["c1"], 0.0) @ params["w2"] + params["c2"]
    return ln(f + h1, params["g2"], params["be2"])


if __name__ == "__main__":
    B, S, D, H, FFN = 2, 16, 128, 4, 256

    key = jax.random.PRNGKey(0)
    keys = jax.random.split(key, 16)

    def w(k, shape, scale=0.05):
        return (scale * jax.random.normal(k, shape)).astype(jnp.float32)

    params = {
        "wq": w(keys[0], (D, D)), "bq": w(keys[1], (1, D)),
        "wk": w(keys[2], (D, D)), "bk": w(keys[3], (1, D)),
        "wv": w(keys[4], (D, D)), "bv": w(keys[5], (1, D)),
        "wo": w(keys[6], (D, D)), "bo": w(keys[7], (1, D)),
        "g1": jnp.ones((1, D), jnp.float32), "be1": jnp.zeros((1, D), jnp.float32),
        "w1": w(keys[8], (D, FFN)), "c1": w(keys[9], (1, FFN)),
        "w2": w(keys[10], (FFN, D)), "c2": w(keys[11], (1, D)),
        "g2": jnp.ones((1, D), jnp.float32), "be2": jnp.zeros((1, D), jnp.float32),
    }

    x = jax.random.normal(keys[12], (B, S, D), dtype=jnp.float32)
    # key-padding mask: batch 0 attends to first 10 keys, batch 1 to all 16
    valid_lens = jnp.array([10, 16], dtype=jnp.int32)

    # default tq=128 clamps to S=16 here -> whole sequence in one query tile
    out = encoder_block(x, valid_lens, params, num_heads=H)
    jax.block_until_ready(out)

    ref = encoder_block_reference(x, valid_lens, params, num_heads=H)
    # bf16 matmul operands + EUP approx reciprocal => looser tolerance than f32
    err = jnp.max(jnp.abs(out - ref))
    assert jnp.allclose(out, ref, atol=3e-2, rtol=3e-2), (
        f"mismatch vs JAX reference, max abs err = {err}")

    print("KERNEL_OK")
</pallas_src>

<mosaic_0001>
module attributes {stable_mosaic.version = 11 : i64} {
  func.func @encoder_block_kernel(%arg0: i32, %arg1: i32, %arg2: memref<2xi32, #tpu.memory_space<smem>>, %arg3: memref<1x16x128xbf16, #tpu.memory_space<vmem>>, %arg4: memref<1x16x128xf32, #tpu.memory_space<vmem>>, %arg5: memref<128x128xbf16, #tpu.memory_space<vmem>>, %arg6: memref<1x128xf32, #tpu.memory_space<vmem>>, %arg7: memref<128x256xbf16, #tpu.memory_space<vmem>>, %arg8: memref<1x256xf32, #tpu.memory_space<vmem>>, %arg9: memref<128x128xbf16, #tpu.memory_space<vmem>>, %arg10: memref<1x128xf32, #tpu.memory_space<vmem>>, %arg11: memref<1x128xf32, #tpu.memory_space<vmem>>, %arg12: memref<1x128xf32, #tpu.memory_space<vmem>>, %arg13: memref<128x256xbf16, #tpu.memory_space<vmem>>, %arg14: memref<1x256xf32, #tpu.memory_space<vmem>>, %arg15: memref<256x128xbf16, #tpu.memory_space<vmem>>, %arg16: memref<1x128xf32, #tpu.memory_space<vmem>>, %arg17: memref<1x128xf32, #tpu.memory_space<vmem>>, %arg18: memref<1x128xf32, #tpu.memory_space<vmem>>, %arg19: memref<1x16x128xf32, #tpu.memory_space<vmem>>, %arg20: memref<4x16x32xbf16, #tpu.memory_space<vmem>>, %arg21: memref<4x16x32xbf16, #tpu.memory_space<vmem>>, %arg22: memref<16x128xbf16, #tpu.memory_space<vmem>>) attributes {dimension_semantics = [#tpu.dimension_semantics<parallel>, #tpu.dimension_semantics<arbitrary>], iteration_bounds = array<i64: 2, 1>, scalar_prefetch = 1 : i64, scratch_operands = 3 : i64, tpu.core_type = #tpu.core_type<tc>, window_params = [{transform_indices = @transform_0, window_bounds = array<i64: 1, 16, 128>}, {transform_indices = @transform_1, window_bounds = array<i64: 1, 16, 128>}, {pipeline_mode = #tpu.pipeline_mode<synchronous>, transform_indices = @transform_2, window_bounds = array<i64: 128, 128>}, {pipeline_mode = #tpu.pipeline_mode<synchronous>, transform_indices = @transform_3, window_bounds = array<i64: 1, 128>}, {pipeline_mode = #tpu.pipeline_mode<synchronous>, transform_indices = @transform_4, window_bounds = array<i64: 128, 256>}, {pipeline_mode = #tpu.pipeline_mode<synchronous>, transform_indices = @transform_5, window_bounds = array<i64: 1, 256>}, {pipeline_mode = #tpu.pipeline_mode<synchronous>, transform_indices = @transform_6, window_bounds = array<i64: 128, 128>}, {pipeline_mode = #tpu.pipeline_mode<synchronous>, transform_indices = @transform_7, window_bounds = array<i64: 1, 128>}, {pipeline_mode = #tpu.pipeline_mode<synchronous>, transform_indices = @transform_8, window_bounds = array<i64: 1, 128>}, {pipeline_mode = #tpu.pipeline_mode<synchronous>, transform_indices = @transform_9, window_bounds = array<i64: 1, 128>}, {pipeline_mode = #tpu.pipeline_mode<synchronous>, transform_indices = @transform_10, window_bounds = array<i64: 128, 256>}, {pipeline_mode = #tpu.pipeline_mode<synchronous>, transform_indices = @transform_11, window_bounds = array<i64: 1, 256>}, {pipeline_mode = #tpu.pipeline_mode<synchronous>, transform_indices = @transform_12, window_bounds = array<i64: 256, 128>}, {pipeline_mode = #tpu.pipeline_mode<synchronous>, transform_indices = @transform_13, window_bounds = array<i64: 1, 128>}, {pipeline_mode = #tpu.pipeline_mode<synchronous>, transform_indices = @transform_14, window_bounds = array<i64: 1, 128>}, {pipeline_mode = #tpu.pipeline_mode<synchronous>, transform_indices = @transform_15, window_bounds = array<i64: 1, 128>}, {transform_indices = @transform_16, window_bounds = array<i64: 1, 16, 128>}]} {
    %c0_i32 = arith.constant 0 : i32
    %0 = arith.cmpi eq, %arg1, %c0_i32 : i32
    %1 = arith.extui %0 : i1 to i32
    %c0_i32_0 = arith.constant 0 : i32
    %2 = arith.cmpi ne, %1, %c0_i32_0 : i32
    scf.if %2 {
      %c0_93 = arith.constant 0 : index
      %c0_94 = arith.constant 0 : index
      %c0_95 = arith.constant 0 : index
      %180 = vector.load %arg3[%c0_93, %c0_94, %c0_95] : memref<1x16x128xbf16, #tpu.memory_space<vmem>>, vector<1x16x128xbf16>
      %181 = vector.shape_cast %180 : vector<1x16x128xbf16> to vector<16x128xbf16>
      %c0_96 = arith.constant 0 : index
      %c0_97 = arith.constant 0 : index
      %182 = vector.load %arg7[%c0_96, %c0_97] : memref<128x256xbf16, #tpu.memory_space<vmem>>, vector<128x256xbf16>
      %cst_98 = arith.constant dense<0.000000e+00> : vector<16x256xf32>
      %183 = tpu.matmul %181, %182, %cst_98 {dimension_numbers = #tpu.dot_dimension_numbers<[1], [0], [0], [1], [0, 0, 1, 1], [], []>} : vector<16x128xbf16>, vector<128x256xbf16>, vector<16x256xf32> -> vector<16x256xf32>
      %c0_99 = arith.constant 0 : index
      %c0_100 = arith.constant 0 : index
      %184 = vector.load %arg8[%c0_99, %c0_100] : memref<1x256xf32, #tpu.memory_space<vmem>>, vector<1x256xf32>
      %185 = vector.broadcast %184 : vector<1x256xf32> to vector<16x256xf32>
      %186 = arith.addf %183, %185 : vector<16x256xf32>
      %187 = arith.truncf %186 : vector<16x256xf32> to vector<16x256xbf16>
      %188 = vector.extract_strided_slice %187 {offsets = [0, 0], sizes = [16, 32], strides = [1, 1]} : vector<16x256xbf16> to vector<16x32xbf16>
      %c0_101 = arith.constant 0 : index
      %c0_102 = arith.constant 0 : index
      %c0_103 = arith.constant 0 : index
      %189 = vector.load %arg20[%c0_101, %c0_102, %c0_103] : memref<4x16x32xbf16, #tpu.memory_space<vmem>>, vector<1x16x32xbf16>
      %190 = vector.shape_cast %189 : vector<1x16x32xbf16> to vector<16x32xbf16>
      %191 = vector.shape_cast %188 : vector<16x32xbf16> to vector<1x16x32xbf16>
      tpu.vector_store %arg20[%c0_101, %c0_102, %c0_103], %191 {strides = array<i32>} : memref<4x16x32xbf16, #tpu.memory_space<vmem>>, vector<1x16x32xbf16>,
      %192 = vector.extract_strided_slice %187 {offsets = [0, 128], sizes = [16, 32], strides = [1, 1]} : vector<16x256xbf16> to vector<16x32xbf16>
      %c0_104 = arith.constant 0 : index
      %c0_105 = arith.constant 0 : index
      %c0_106 = arith.constant 0 : index
      %193 = vector.load %arg21[%c0_104, %c0_105, %c0_106] : memref<4x16x32xbf16, #tpu.memory_space<vmem>>, vector<1x16x32xbf16>
      %194 = vector.shape_cast %193 : vector<1x16x32xbf16> to vector<16x32xbf16>
      %195 = vector.shape_cast %192 : vector<16x32xbf16> to vector<1x16x32xbf16>
      tpu.vector_store %arg21[%c0_104, %c0_105, %c0_106], %195 {strides = array<i32>} : memref<4x16x32xbf16, #tpu.memory_space<vmem>>, vector<1x16x32xbf16>,
      %196 = vector.extract_strided_slice %187 {offsets = [0, 32], sizes = [16, 32], strides = [1, 1]} : vector<16x256xbf16> to vector<16x32xbf16>
      %c1_107 = arith.constant 1 : index
      %c0_108 = arith.constant 0 : index
      %c0_109 = arith.constant 0 : index
      %197 = vector.load %arg20[%c1_107, %c0_108, %c0_109] : memref<4x16x32xbf16, #tpu.memory_space<vmem>>, vector<1x16x32xbf16>
      %198 = vector.shape_cast %197 : vector<1x16x32xbf16> to vector<16x32xbf16>
      %199 = vector.shape_cast %196 : vector<16x32xbf16> to vector<1x16x32xbf16>
      tpu.vector_store %arg20[%c1_107, %c0_108, %c0_109], %199 {strides = array<i32>} : memref<4x16x32xbf16, #tpu.memory_space<vmem>>, vector<1x16x32xbf16>,
      %200 = vector.extract_strided_slice %187 {offsets = [0, 160], sizes = [16, 32], strides = [1, 1]} : vector<16x256xbf16> to vector<16x32xbf16>
      %c1_110 = arith.constant 1 : index
      %c0_111 = arith.constant 0 : index
      %c0_112 = arith.constant 0 : index
      %201 = vector.load %arg21[%c1_110, %c0_111, %c0_112] : memref<4x16x32xbf16, #tpu.memory_space<vmem>>, vector<1x16x32xbf16>
      %202 = vector.shape_cast %201 : vector<1x16x32xbf16> to vector<16x32xbf16>
      %203 = vector.shape_cast %200 : vector<16x32xbf16> to vector<1x16x32xbf16>
      tpu.vector_store %arg21[%c1_110, %c0_111, %c0_112], %203 {strides = array<i32>} : memref<4x16x32xbf16, #tpu.memory_space<vmem>>, vector<1x16x32xbf16>,
      %204 = vector.extract_strided_slice %187 {offsets = [0, 64], sizes = [16, 32], strides = [1, 1]} : vector<16x256xbf16> to vector<16x32xbf16>
      %c2_113 = arith.constant 2 : index
      %c0_114 = arith.constant 0 : index
      %c0_115 = arith.constant 0 : index
      %205 = vector.load %arg20[%c2_113, %c0_114, %c0_115] : memref<4x16x32xbf16, #tpu.memory_space<vmem>>, vector<1x16x32xbf16>
      %206 = vector.shape_cast %205 : vector<1x16x32xbf16> to vector<16x32xbf16>
      %207 = vector.shape_cast %204 : vector<16x32xbf16> to vector<1x16x32xbf16>
      tpu.vector_store %arg20[%c2_113, %c0_114, %c0_115], %207 {strides = array<i32>} : memref<4x16x32xbf16, #tpu.memory_space<vmem>>, vector<1x16x32xbf16>,
      %208 = vector.extract_strided_slice %187 {offsets = [0, 192], sizes = [16, 32], strides = [1, 1]} : vector<16x256xbf16> to vector<16x32xbf16>
      %c2_116 = arith.constant 2 : index
      %c0_117 = arith.constant 0 : index
      %c0_118 = arith.constant 0 : index
      %209 = vector.load %arg21[%c2_116, %c0_117, %c0_118] : memref<4x16x32xbf16, #tpu.memory_space<vmem>>, vector<1x16x32xbf16>
      %210 = vector.shape_cast %209 : vector<1x16x32xbf16> to vector<16x32xbf16>
      %211 = vector.shape_cast %208 : vector<16x32xbf16> to vector<1x16x32xbf16>
      tpu.vector_store %arg21[%c2_116, %c0_117, %c0_118], %211 {strides = array<i32>} : memref<4x16x32xbf16, #tpu.memory_space<vmem>>, vector<1x16x32xbf16>,
      %212 = vector.extract_strided_slice %187 {offsets = [0, 96], sizes = [16, 32], strides = [1, 1]} : vector<16x256xbf16> to vector<16x32xbf16>
      %c3_119 = arith.constant 3 : index
      %c0_120 = arith.constant 0 : index
      %c0_121 = arith.constant 0 : index
      %213 = vector.load %arg20[%c3_119, %c0_120, %c0_121] : memref<4x16x32xbf16, #tpu.memory_space<vmem>>, vector<1x16x32xbf16>
      %214 = vector.shape_cast %213 : vector<1x16x32xbf16> to vector<16x32xbf16>
      %215 = vector.shape_cast %212 : vector<16x32xbf16> to vector<1x16x32xbf16>
      tpu.vector_store %arg20[%c3_119, %c0_120, %c0_121], %215 {strides = array<i32>} : memref<4x16x32xbf16, #tpu.memory_space<vmem>>, vector<1x16x32xbf16>,
      %216 = vector.extract_strided_slice %187 {offsets = [0, 224], sizes = [16, 32], strides = [1, 1]} : vector<16x256xbf16> to vector<16x32xbf16>
      %c3_122 = arith.constant 3 : index
      %c0_123 = arith.constant 0 : index
      %c0_124 = arith.constant 0 : index
      %217 = vector.load %arg21[%c3_122, %c0_123, %c0_124] : memref<4x16x32xbf16, #tpu.memory_space<vmem>>, vector<1x16x32xbf16>
      %218 = vector.shape_cast %217 : vector<1x16x32xbf16> to vector<16x32xbf16>
      %219 = vector.shape_cast %216 : vector<16x32xbf16> to vector<1x16x32xbf16>
      tpu.vector_store %arg21[%c3_122, %c0_123, %c0_124], %219 {strides = array<i32>} : memref<4x16x32xbf16, #tpu.memory_space<vmem>>, vector<1x16x32xbf16>,
    } else {
    }
    %c0 = arith.constant 0 : index
    %c0_1 = arith.constant 0 : index
    %c0_2 = arith.constant 0 : index
    %3 = vector.load %arg4[%c0, %c0_1, %c0_2] : memref<1x16x128xf32, #tpu.memory_space<vmem>>, vector<1x16x128xf32>
    %4 = vector.shape_cast %3 : vector<1x16x128xf32> to vector<16x128xf32>
    %5 = arith.truncf %4 : vector<16x128xf32> to vector<16x128xbf16>
    %c0_3 = arith.constant 0 : index
    %c0_4 = arith.constant 0 : index
    %6 = vector.load %arg5[%c0_3, %c0_4] : memref<128x128xbf16, #tpu.memory_space<vmem>>, vector<128x128xbf16>
    %cst = arith.constant dense<0.000000e+00> : vector<16x128xf32>
    %7 = tpu.matmul %5, %6, %cst {dimension_numbers = #tpu.dot_dimension_numbers<[1], [0], [0], [1], [0, 0, 1, 1], [], []>} : vector<16x128xbf16>, vector<128x128xbf16>, vector<16x128xf32> -> vector<16x128xf32>
    %c0_5 = arith.constant 0 : index
    %c0_6 = arith.constant 0 : index
    %8 = vector.load %arg6[%c0_5, %c0_6] : memref<1x128xf32, #tpu.memory_space<vmem>>, vector<1x128xf32>
    %9 = vector.broadcast %8 : vector<1x128xf32> to vector<16x128xf32>
    %10 = arith.addf %7, %9 : vector<16x128xf32>
    %cst_7 = arith.constant 0.176776692 : f32
    %11 = vector.broadcast %cst_7 : f32 to vector<16x128xf32>
    %12 = arith.mulf %10, %11 : vector<16x128xf32>
    %13 = arith.truncf %12 : vector<16x128xf32> to vector<16x128xbf16>
    %14 = arith.index_cast %arg0 : i32 to index
    %15 = memref.load %arg2[%14] : memref<2xi32, #tpu.memory_space<smem>>
    %16 = tpu.iota {dimensions = array<i32: 1>} : vector<16x16xi32>
    %17 = vector.broadcast %15 : i32 to vector<16x16xi32>
    %18 = arith.cmpi slt, %16, %17 : vector<16x16xi32>
    %19 = vector.extract_strided_slice %13 {offsets = [0, 0], sizes = [16, 32], strides = [1, 1]} : vector<16x128xbf16> to vector<16x32xbf16>
    %c0_8 = arith.constant 0 : index
    %c0_9 = arith.constant 0 : index
    %c0_10 = arith.constant 0 : index
    %20 = vector.load %arg20[%c0_8, %c0_9, %c0_10] : memref<4x16x32xbf16, #tpu.memory_space<vmem>>, vector<1x16x32xbf16>
    %21 = vector.shape_cast %20 : vector<1x16x32xbf16> to vector<16x32xbf16>
    %cst_11 = arith.constant dense<0.000000e+00> : vector<16x16xf32>
    %22 = tpu.matmul %19, %21, %cst_11 {dimension_numbers = #tpu.dot_dimension_numbers<[1], [1], [0], [0], [0, 0, 1, 0], [], []>} : vector<16x32xbf16>, vector<16x32xbf16>, vector<16x16xf32> -> vector<16x16xf32>
    %cst_12 = arith.constant -1.000000e+09 : f32
    %23 = vector.broadcast %cst_12 : f32 to vector<16x16xf32>
    %24 = arith.select %18, %22, %23 : vector<16x16xi1>, vector<16x16xf32>
    %cst_13 = arith.constant dense<0xFF800000> : vector<16xf32>
    %25 = vector.multi_reduction <maximumf>, %24, %cst_13 [1] : vector<16x16xf32> to vector<16xf32>
    %26 = vector.shape_cast %25 : vector<16xf32> to vector<16x1xf32>
    %27 = vector.broadcast %26 : vector<16x1xf32> to vector<16x16xf32>
    %28 = arith.subf %24, %27 : vector<16x16xf32>
    %29 = math.exp %28 : vector<16x16xf32>
    %cst_14 = arith.constant dense<0.000000e+00> : vector<16xf32>
    %30 = vector.multi_reduction <add>, %29, %cst_14 [1] : vector<16x16xf32> to vector<16xf32>
    %31 = vector.shape_cast %30 : vector<16xf32> to vector<16x1xf32>
    %32 = tpu.reciprocal %31 {approx = true} : vector<16x1xf32> -> vector<16x1xf32>
    %33 = vector.broadcast %32 : vector<16x1xf32> to vector<16x16xf32>
    %34 = arith.mulf %29, %33 : vector<16x16xf32>
    %35 = arith.truncf %34 : vector<16x16xf32> to vector<16x16xbf16>
    %c0_15 = arith.constant 0 : index
    %c0_16 = arith.constant 0 : index
    %c0_17 = arith.constant 0 : index
    %36 = vector.load %arg21[%c0_15, %c0_16, %c0_17] : memref<4x16x32xbf16, #tpu.memory_space<vmem>>, vector<1x16x32xbf16>
    %37 = vector.shape_cast %36 : vector<1x16x32xbf16> to vector<16x32xbf16>
    %cst_18 = arith.constant dense<0.000000e+00> : vector<16x32xf32>
    %38 = tpu.matmul %35, %37, %cst_18 {dimension_numbers = #tpu.dot_dimension_numbers<[1], [0], [0], [1], [0, 0, 1, 1], [], []>} : vector<16x16xbf16>, vector<16x32xbf16>, vector<16x32xf32> -> vector<16x32xf32>
    %39 = arith.truncf %38 : vector<16x32xf32> to vector<16x32xbf16>
    %c0_19 = arith.constant 0 : index
    %c0_20 = arith.constant 0 : index
    %40 = vector.load %arg22[%c0_19, %c0_20] : memref<16x128xbf16, #tpu.memory_space<vmem>>, vector<16x32xbf16>
    tpu.vector_store %arg22[%c0_19, %c0_20], %39 {strides = array<i32>} : memref<16x128xbf16, #tpu.memory_space<vmem>>, vector<16x32xbf16>,
    %41 = vector.extract_strided_slice %13 {offsets = [0, 32], sizes = [16, 32], strides = [1, 1]} : vector<16x128xbf16> to vector<16x32xbf16>
    %c1 = arith.constant 1 : index
    %c0_21 = arith.constant 0 : index
    %c0_22 = arith.constant 0 : index
    %42 = vector.load %arg20[%c1, %c0_21, %c0_22] : memref<4x16x32xbf16, #tpu.memory_space<vmem>>, vector<1x16x32xbf16>
    %43 = vector.shape_cast %42 : vector<1x16x32xbf16> to vector<16x32xbf16>
    %cst_23 = arith.constant dense<0.000000e+00> : vector<16x16xf32>
    %44 = tpu.matmul %41, %43, %cst_23 {dimension_numbers = #tpu.dot_dimension_numbers<[1], [1], [0], [0], [0, 0, 1, 0], [], []>} : vector<16x32xbf16>, vector<16x32xbf16>, vector<16x16xf32> -> vector<16x16xf32>
    %cst_24 = arith.constant -1.000000e+09 : f32
    %45 = vector.broadcast %cst_24 : f32 to vector<16x16xf32>
    %46 = arith.select %18, %44, %45 : vector<16x16xi1>, vector<16x16xf32>
    %cst_25 = arith.constant dense<0xFF800000> : vector<16xf32>
    %47 = vector.multi_reduction <maximumf>, %46, %cst_25 [1] : vector<16x16xf32> to vector<16xf32>
    %48 = vector.shape_cast %47 : vector<16xf32> to vector<16x1xf32>
    %49 = vector.broadcast %48 : vector<16x1xf32> to vector<16x16xf32>
    %50 = arith.subf %46, %49 : vector<16x16xf32>
    %51 = math.exp %50 : vector<16x16xf32>
    %cst_26 = arith.constant dense<0.000000e+00> : vector<16xf32>
    %52 = vector.multi_reduction <add>, %51, %cst_26 [1] : vector<16x16xf32> to vector<16xf32>
    %53 = vector.shape_cast %52 : vector<16xf32> to vector<16x1xf32>
    %54 = tpu.reciprocal %53 {approx = true} : vector<16x1xf32> -> vector<16x1xf32>
    %55 = vector.broadcast %54 : vector<16x1xf32> to vector<16x16xf32>
    %56 = arith.mulf %51, %55 : vector<16x16xf32>
    %57 = arith.truncf %56 : vector<16x16xf32> to vector<16x16xbf16>
    %c1_27 = arith.constant 1 : index
    %c0_28 = arith.constant 0 : index
    %c0_29 = arith.constant 0 : index
    %58 = vector.load %arg21[%c1_27, %c0_28, %c0_29] : memref<4x16x32xbf16, #tpu.memory_space<vmem>>, vector<1x16x32xbf16>
    %59 = vector.shape_cast %58 : vector<1x16x32xbf16> to vector<16x32xbf16>
    %cst_30 = arith.constant dense<0.000000e+00> : vector<16x32xf32>
    %60 = tpu.matmul %57, %59, %cst_30 {dimension_numbers = #tpu.dot_dimension_numbers<[1], [0], [0], [1], [0, 0, 1, 1], [], []>} : vector<16x16xbf16>, vector<16x32xbf16>, vector<16x32xf32> -> vector<16x32xf32>
    %61 = arith.truncf %60 : vector<16x32xf32> to vector<16x32xbf16>
    %c0_31 = arith.constant 0 : index
    %c32 = arith.constant 32 : index
    %62 = vector.load %arg22[%c0_31, %c32] : memref<16x128xbf16, #tpu.memory_space<vmem>>, vector<16x32xbf16>
    tpu.vector_store %arg22[%c0_31, %c32], %61 {strides = array<i32>} : memref<16x128xbf16, #tpu.memory_space<vmem>>, vector<16x32xbf16>,
    %63 = vector.extract_strided_slice %13 {offsets = [0, 64], sizes = [16, 32], strides = [1, 1]} : vector<16x128xbf16> to vector<16x32xbf16>
    %c2 = arith.constant 2 : index
    %c0_32 = arith.constant 0 : index
    %c0_33 = arith.constant 0 : index
    %64 = vector.load %arg20[%c2, %c0_32, %c0_33] : memref<4x16x32xbf16, #tpu.memory_space<vmem>>, vector<1x16x32xbf16>
    %65 = vector.shape_cast %64 : vector<1x16x32xbf16> to vector<16x32xbf16>
    %cst_34 = arith.constant dense<0.000000e+00> : vector<16x16xf32>
    %66 = tpu.matmul %63, %65, %cst_34 {dimension_numbers = #tpu.dot_dimension_numbers<[1], [1], [0], [0], [0, 0, 1, 0], [], []>} : vector<16x32xbf16>, vector<16x32xbf16>, vector<16x16xf32> -> vector<16x16xf32>
    %cst_35 = arith.constant -1.000000e+09 : f32
    %67 = vector.broadcast %cst_35 : f32 to vector<16x16xf32>
    %68 = arith.select %18, %66, %67 : vector<16x16xi1>, vector<16x16xf32>
    %cst_36 = arith.constant dense<0xFF800000> : vector<16xf32>
    %69 = vector.multi_reduction <maximumf>, %68, %cst_36 [1] : vector<16x16xf32> to vector<16xf32>
    %70 = vector.shape_cast %69 : vector<16xf32> to vector<16x1xf32>
    %71 = vector.broadcast %70 : vector<16x1xf32> to vector<16x16xf32>
    %72 = arith.subf %68, %71 : vector<16x16xf32>
    %73 = math.exp %72 : vector<16x16xf32>
    %cst_37 = arith.constant dense<0.000000e+00> : vector<16xf32>
    %74 = vector.multi_reduction <add>, %73, %cst_37 [1] : vector<16x16xf32> to vector<16xf32>
    %75 = vector.shape_cast %74 : vector<16xf32> to vector<16x1xf32>
    %76 = tpu.reciprocal %75 {approx = true} : vector<16x1xf32> -> vector<16x1xf32>
    %77 = vector.broadcast %76 : vector<16x1xf32> to vector<16x16xf32>
    %78 = arith.mulf %73, %77 : vector<16x16xf32>
    %79 = arith.truncf %78 : vector<16x16xf32> to vector<16x16xbf16>
    %c2_38 = arith.constant 2 : index
    %c0_39 = arith.constant 0 : index
    %c0_40 = arith.constant 0 : index
    %80 = vector.load %arg21[%c2_38, %c0_39, %c0_40] : memref<4x16x32xbf16, #tpu.memory_space<vmem>>, vector<1x16x32xbf16>
    %81 = vector.shape_cast %80 : vector<1x16x32xbf16> to vector<16x32xbf16>
    %cst_41 = arith.constant dense<0.000000e+00> : vector<16x32xf32>
    %82 = tpu.matmul %79, %81, %cst_41 {dimension_numbers = #tpu.dot_dimension_numbers<[1], [0], [0], [1], [0, 0, 1, 1], [], []>} : vector<16x16xbf16>, vector<16x32xbf16>, vector<16x32xf32> -> vector<16x32xf32>
    %83 = arith.truncf %82 : vector<16x32xf32> to vector<16x32xbf16>
    %c0_42 = arith.constant 0 : index
    %c64 = arith.constant 64 : index
    %84 = vector.load %arg22[%c0_42, %c64] : memref<16x128xbf16, #tpu.memory_space<vmem>>, vector<16x32xbf16>
    tpu.vector_store %arg22[%c0_42, %c64], %83 {strides = array<i32>} : memref<16x128xbf16, #tpu.memory_space<vmem>>, vector<16x32xbf16>,
    %85 = vector.extract_strided_slice %13 {offsets = [0, 96], sizes = [16, 32], strides = [1, 1]} : vector<16x128xbf16> to vector<16x32xbf16>
    %c3 = arith.constant 3 : index
    %c0_43 = arith.constant 0 : index
    %c0_44 = arith.constant 0 : index
    %86 = vector.load %arg20[%c3, %c0_43, %c0_44] : memref<4x16x32xbf16, #tpu.memory_space<vmem>>, vector<1x16x32xbf16>
    %87 = vector.shape_cast %86 : vector<1x16x32xbf16> to vector<16x32xbf16>
    %cst_45 = arith.constant dense<0.000000e+00> : vector<16x16xf32>
    %88 = tpu.matmul %85, %87, %cst_45 {dimension_numbers = #tpu.dot_dimension_numbers<[1], [1], [0], [0], [0, 0, 1, 0], [], []>} : vector<16x32xbf16>, vector<16x32xbf16>, vector<16x16xf32> -> vector<16x16xf32>
    %cst_46 = arith.constant -1.000000e+09 : f32
    %89 = vector.broadcast %cst_46 : f32 to vector<16x16xf32>
    %90 = arith.select %18, %88, %89 : vector<16x16xi1>, vector<16x16xf32>
    %cst_47 = arith.constant dense<0xFF800000> : vector<16xf32>
    %91 = vector.multi_reduction <maximumf>, %90, %cst_47 [1] : vector<16x16xf32> to vector<16xf32>
    %92 = vector.shape_cast %91 : vector<16xf32> to vector<16x1xf32>
    %93 = vector.broadcast %92 : vector<16x1xf32> to vector<16x16xf32>
    %94 = arith.subf %90, %93 : vector<16x16xf32>
    %95 = math.exp %94 : vector<16x16xf32>
    %cst_48 = arith.constant dense<0.000000e+00> : vector<16xf32>
    %96 = vector.multi_reduction <add>, %95, %cst_48 [1] : vector<16x16xf32> to vector<16xf32>
    %97 = vector.shape_cast %96 : vector<16xf32> to vector<16x1xf32>
    %98 = tpu.reciprocal %97 {approx = true} : vector<16x1xf32> -> vector<16x1xf32>
    %99 = vector.broadcast %98 : vector<16x1xf32> to vector<16x16xf32>
    %100 = arith.mulf %95, %99 : vector<16x16xf32>
    %101 = arith.truncf %100 : vector<16x16xf32> to vector<16x16xbf16>
    %c3_49 = arith.constant 3 : index
    %c0_50 = arith.constant 0 : index
    %c0_51 = arith.constant 0 : index
    %102 = vector.load %arg21[%c3_49, %c0_50, %c0_51] : memref<4x16x32xbf16, #tpu.memory_space<vmem>>, vector<1x16x32xbf16>
    %103 = vector.shape_cast %102 : vector<1x16x32xbf16> to vector<16x32xbf16>
    %cst_52 = arith.constant dense<0.000000e+00> : vector<16x32xf32>
    %104 = tpu.matmul %101, %103, %cst_52 {dimension_numbers = #tpu.dot_dimension_numbers<[1], [0], [0], [1], [0, 0, 1, 1], [], []>} : vector<16x16xbf16>, vector<16x32xbf16>, vector<16x32xf32> -> vector<16x32xf32>
    %105 = arith.truncf %104 : vector<16x32xf32> to vector<16x32xbf16>
    %c0_53 = arith.constant 0 : index
    %c96 = arith.constant 96 : index
    %106 = vector.load %arg22[%c0_53, %c96] : memref<16x128xbf16, #tpu.memory_space<vmem>>, vector<16x32xbf16>
    tpu.vector_store %arg22[%c0_53, %c96], %105 {strides = array<i32>} : memref<16x128xbf16, #tpu.memory_space<vmem>>, vector<16x32xbf16>,
    %c0_54 = arith.constant 0 : index
    %c0_55 = arith.constant 0 : index
    %107 = vector.load %arg22[%c0_54, %c0_55] : memref<16x128xbf16, #tpu.memory_space<vmem>>, vector<16x128xbf16>
    %c0_56 = arith.constant 0 : index
    %c0_57 = arith.constant 0 : index
    %108 = vector.load %arg9[%c0_56, %c0_57] : memref<128x128xbf16, #tpu.memory_space<vmem>>, vector<128x128xbf16>
    %cst_58 = arith.constant dense<0.000000e+00> : vector<16x128xf32>
    %109 = tpu.matmul %107, %108, %cst_58 {dimension_numbers = #tpu.dot_dimension_numbers<[1], [0], [0], [1], [0, 0, 1, 1], [], []>} : vector<16x128xbf16>, vector<128x128xbf16>, vector<16x128xf32> -> vector<16x128xf32>
    %c0_59 = arith.constant 0 : index
    %c0_60 = arith.constant 0 : index
    %110 = vector.load %arg10[%c0_59, %c0_60] : memref<1x128xf32, #tpu.memory_space<vmem>>, vector<1x128xf32>
    %111 = vector.broadcast %110 : vector<1x128xf32> to vector<16x128xf32>
    %112 = arith.addf %109, %111 : vector<16x128xf32>
    %113 = arith.addf %112, %4 : vector<16x128xf32>
    %c0_61 = arith.constant 0 : index
    %c0_62 = arith.constant 0 : index
    %114 = vector.load %arg11[%c0_61, %c0_62] : memref<1x128xf32, #tpu.memory_space<vmem>>, vector<1x128xf32>
    %c0_63 = arith.constant 0 : index
    %c0_64 = arith.constant 0 : index
    %115 = vector.load %arg12[%c0_63, %c0_64] : memref<1x128xf32, #tpu.memory_space<vmem>>, vector<1x128xf32>
    %cst_65 = arith.constant dense<0.000000e+00> : vector<16xf32>
    %116 = vector.multi_reduction <add>, %113, %cst_65 [1] : vector<16x128xf32> to vector<16xf32>
    %117 = vector.shape_cast %116 : vector<16xf32> to vector<16x1xf32>
    %cst_66 = arith.constant 1.280000e+02 : f32
    %118 = vector.broadcast %cst_66 : f32 to vector<16x1xf32>
    %119 = arith.divf %117, %118 : vector<16x1xf32>
    %120 = vector.broadcast %119 : vector<16x1xf32> to vector<16x128xf32>
    %121 = arith.subf %113, %120 : vector<16x128xf32>
    %122 = arith.mulf %121, %121 : vector<16x128xf32>
    %cst_67 = arith.constant dense<0.000000e+00> : vector<16xf32>
    %123 = vector.multi_reduction <add>, %122, %cst_67 [1] : vector<16x128xf32> to vector<16xf32>
    %124 = vector.shape_cast %123 : vector<16xf32> to vector<16x1xf32>
    %cst_68 = arith.constant 1.280000e+02 : f32
    %125 = vector.broadcast %cst_68 : f32 to vector<16x1xf32>
    %126 = arith.divf %124, %125 : vector<16x1xf32>
    %127 = vector.broadcast %119 : vector<16x1xf32> to vector<16x128xf32>
    %128 = arith.subf %113, %127 : vector<16x128xf32>
    %cst_69 = arith.constant 9.99999974E-6 : f32
    %129 = vector.broadcast %cst_69 : f32 to vector<16x1xf32>
    %130 = arith.addf %126, %129 : vector<16x1xf32>
    %131 = math.rsqrt %130 : vector<16x1xf32>
    %132 = vector.broadcast %131 : vector<16x1xf32> to vector<16x128xf32>
    %133 = arith.mulf %128, %132 : vector<16x128xf32>
    %134 = vector.broadcast %114 : vector<1x128xf32> to vector<16x128xf32>
    %135 = arith.mulf %133, %134 : vector<16x128xf32>
    %136 = vector.broadcast %115 : vector<1x128xf32> to vector<16x128xf32>
    %137 = arith.addf %135, %136 : vector<16x128xf32>
    %138 = arith.truncf %137 : vector<16x128xf32> to vector<16x128xbf16>
    %c0_70 = arith.constant 0 : index
    %c0_71 = arith.constant 0 : index
    %139 = vector.load %arg13[%c0_70, %c0_71] : memref<128x256xbf16, #tpu.memory_space<vmem>>, vector<128x256xbf16>
    %cst_72 = arith.constant dense<0.000000e+00> : vector<16x256xf32>
    %140 = tpu.matmul %138, %139, %cst_72 {dimension_numbers = #tpu.dot_dimension_numbers<[1], [0], [0], [1], [0, 0, 1, 1], [], []>} : vector<16x128xbf16>, vector<128x256xbf16>, vector<16x256xf32> -> vector<16x256xf32>
    %c0_73 = arith.constant 0 : index
    %c0_74 = arith.constant 0 : index
    %141 = vector.load %arg14[%c0_73, %c0_74] : memref<1x256xf32, #tpu.memory_space<vmem>>, vector<1x256xf32>
    %142 = vector.broadcast %141 : vector<1x256xf32> to vector<16x256xf32>
    %143 = arith.addf %140, %142 : vector<16x256xf32>
    %cst_75 = arith.constant 0.000000e+00 : f32
    %144 = vector.broadcast %cst_75 : f32 to vector<16x256xf32>
    %145 = arith.maximumf %143, %144 : vector<16x256xf32>
    %146 = arith.truncf %145 : vector<16x256xf32> to vector<16x256xbf16>
    %c0_76 = arith.constant 0 : index
    %c0_77 = arith.constant 0 : index
    %147 = vector.load %arg15[%c0_76, %c0_77] : memref<256x128xbf16, #tpu.memory_space<vmem>>, vector<256x128xbf16>
    %cst_78 = arith.constant dense<0.000000e+00> : vector<16x128xf32>
    %148 = tpu.matmul %146, %147, %cst_78 {dimension_numbers = #tpu.dot_dimension_numbers<[1], [0], [0], [1], [0, 0, 1, 1], [], []>} : vector<16x256xbf16>, vector<256x128xbf16>, vector<16x128xf32> -> vector<16x128xf32>
    %c0_79 = arith.constant 0 : index
    %c0_80 = arith.constant 0 : index
    %149 = vector.load %arg16[%c0_79, %c0_80] : memref<1x128xf32, #tpu.memory_space<vmem>>, vector<1x128xf32>
    %150 = vector.broadcast %149 : vector<1x128xf32> to vector<16x128xf32>
    %151 = arith.addf %148, %150 : vector<16x128xf32>
    %152 = arith.addf %151, %137 : vector<16x128xf32>
    %c0_81 = arith.constant 0 : index
    %c0_82 = arith.constant 0 : index
    %153 = vector.load %arg17[%c0_81, %c0_82] : memref<1x128xf32, #tpu.memory_space<vmem>>, vector<1x128xf32>
    %c0_83 = arith.constant 0 : index
    %c0_84 = arith.constant 0 : index
    %154 = vector.load %arg18[%c0_83, %c0_84] : memref<1x128xf32, #tpu.memory_space<vmem>>, vector<1x128xf32>
    %cst_85 = arith.constant dense<0.000000e+00> : vector<16xf32>
    %155 = vector.multi_reduction <add>, %152, %cst_85 [1] : vector<16x128xf32> to vector<16xf32>
    %156 = vector.shape_cast %155 : vector<16xf32> to vector<16x1xf32>
    %cst_86 = arith.constant 1.280000e+02 : f32
    %157 = vector.broadcast %cst_86 : f32 to vector<16x1xf32>
    %158 = arith.divf %156, %157 : vector<16x1xf32>
    %159 = vector.broadcast %158 : vector<16x1xf32> to vector<16x128xf32>
    %160 = arith.subf %152, %159 : vector<16x128xf32>
    %161 = arith.mulf %160, %160 : vector<16x128xf32>
    %cst_87 = arith.constant dense<0.000000e+00> : vector<16xf32>
    %162 = vector.multi_reduction <add>, %161, %cst_87 [1] : vector<16x128xf32> to vector<16xf32>
    %163 = vector.shape_cast %162 : vector<16xf32> to vector<16x1xf32>
    %cst_88 = arith.constant 1.280000e+02 : f32
    %164 = vector.broadcast %cst_88 : f32 to vector<16x1xf32>
    %165 = arith.divf %163, %164 : vector<16x1xf32>
    %166 = vector.broadcast %158 : vector<16x1xf32> to vector<16x128xf32>
    %167 = arith.subf %152, %166 : vector<16x128xf32>
    %cst_89 = arith.constant 9.99999974E-6 : f32
    %168 = vector.broadcast %cst_89 : f32 to vector<16x1xf32>
    %169 = arith.addf %165, %168 : vector<16x1xf32>
    %170 = math.rsqrt %169 : vector<16x1xf32>
    %171 = vector.broadcast %170 : vector<16x1xf32> to vector<16x128xf32>
    %172 = arith.mulf %167, %171 : vector<16x128xf32>
    %173 = vector.broadcast %153 : vector<1x128xf32> to vector<16x128xf32>
    %174 = arith.mulf %172, %173 : vector<16x128xf32>
    %175 = vector.broadcast %154 : vector<1x128xf32> to vector<16x128xf32>
    %176 = arith.addf %174, %175 : vector<16x128xf32>
    %c0_90 = arith.constant 0 : index
    %c0_91 = arith.constant 0 : index
    %c0_92 = arith.constant 0 : index
    %177 = vector.load %arg19[%c0_90, %c0_91, %c0_92] : memref<1x16x128xf32, #tpu.memory_space<vmem>>, vector<1x16x128xf32>
    %178 = vector.shape_cast %177 : vector<1x16x128xf32> to vector<16x128xf32>
    %179 = vector.shape_cast %176 : vector<16x128xf32> to vector<1x16x128xf32>
    tpu.vector_store %arg19[%c0_90, %c0_91, %c0_92], %179 {strides = array<i32>} : memref<1x16x128xf32, #tpu.memory_space<vmem>>, vector<1x16x128xf32>,
    return
  }
  func.func @transform_0(%arg0: i32, %arg1: i32, %arg2: memref<2xi32, #tpu.memory_space<smem>>) -> (i32, i32, i32) {
    %c0_i32 = arith.constant 0 : i32
    %c0_i32_0 = arith.constant 0 : i32
    %c0_i32_1 = arith.constant 0 : i32
    return %arg0, %c0_i32, %c0_i32_0 : i32, i32, i32
  }
  func.func @transform_1(%arg0: i32, %arg1: i32, %arg2: memref<2xi32, #tpu.memory_space<smem>>) -> (i32, i32, i32) {
    %c0_i32 = arith.constant 0 : i32
    %c0_i32_0 = arith.constant 0 : i32
    return %arg0, %arg1, %c0_i32 : i32, i32, i32
  }
  func.func @transform_2(%arg0: i32, %arg1: i32, %arg2: memref<2xi32, #tpu.memory_space<smem>>) -> (i32, i32) {
    %c0_i32 = arith.constant 0 : i32
    %c0_i32_0 = arith.constant 0 : i32
    %c0_i32_1 = arith.constant 0 : i32
    return %c0_i32, %c0_i32_0 : i32, i32
  }
  func.func @transform_3(%arg0: i32, %arg1: i32, %arg2: memref<2xi32, #tpu.memory_space<smem>>) -> (i32, i32) {
    %c0_i32 = arith.constant 0 : i32
    %c0_i32_0 = arith.constant 0 : i32
    %c0_i32_1 = arith.constant 0 : i32
    return %c0_i32, %c0_i32_0 : i32, i32
  }
  func.func @transform_4(%arg0: i32, %arg1: i32, %arg2: memref<2xi32, #tpu.memory_space<smem>>) -> (i32, i32) {
    %c0_i32 = arith.constant 0 : i32
    %c0_i32_0 = arith.constant 0 : i32
    %c0_i32_1 = arith.constant 0 : i32
    return %c0_i32, %c0_i32_0 : i32, i32
  }
  func.func @transform_5(%arg0: i32, %arg1: i32, %arg2: memref<2xi32, #tpu.memory_space<smem>>) -> (i32, i32) {
    %c0_i32 = arith.constant 0 : i32
    %c0_i32_0 = arith.constant 0 : i32
    %c0_i32_1 = arith.constant 0 : i32
    return %c0_i32, %c0_i32_0 : i32, i32
  }
  func.func @transform_6(%arg0: i32, %arg1: i32, %arg2: memref<2xi32, #tpu.memory_space<smem>>) -> (i32, i32) {
    %c0_i32 = arith.constant 0 : i32
    %c0_i32_0 = arith.constant 0 : i32
    %c0_i32_1 = arith.constant 0 : i32
    return %c0_i32, %c0_i32_0 : i32, i32
  }
  func.func @transform_7(%arg0: i32, %arg1: i32, %arg2: memref<2xi32, #tpu.memory_space<smem>>) -> (i32, i32) {
    %c0_i32 = arith.constant 0 : i32
    %c0_i32_0 = arith.constant 0 : i32
    %c0_i32_1 = arith.constant 0 : i32
    return %c0_i32, %c0_i32_0 : i32, i32
  }
  func.func @transform_8(%arg0: i32, %arg1: i32, %arg2: memref<2xi32, #tpu.memory_space<smem>>) -> (i32, i32) {
    %c0_i32 = arith.constant 0 : i32
    %c0_i32_0 = arith.constant 0 : i32
    %c0_i32_1 = arith.constant 0 : i32
    return %c0_i32, %c0_i32_0 : i32, i32
  }
  func.func @transform_9(%arg0: i32, %arg1: i32, %arg2: memref<2xi32, #tpu.memory_space<smem>>) -> (i32, i32) {
    %c0_i32 = arith.constant 0 : i32
    %c0_i32_0 = arith.constant 0 : i32
    %c0_i32_1 = arith.constant 0 : i32
    return %c0_i32, %c0_i32_0 : i32, i32
  }
  func.func @transform_10(%arg0: i32, %arg1: i32, %arg2: memref<2xi32, #tpu.memory_space<smem>>) -> (i32, i32) {
    %c0_i32 = arith.constant 0 : i32
    %c0_i32_0 = arith.constant 0 : i32
    %c0_i32_1 = arith.constant 0 : i32
    return %c0_i32, %c0_i32_0 : i32, i32
  }
  func.func @transform_11(%arg0: i32, %arg1: i32, %arg2: memref<2xi32, #tpu.memory_space<smem>>) -> (i32, i32) {
    %c0_i32 = arith.constant 0 : i32
    %c0_i32_0 = arith.constant 0 : i32
    %c0_i32_1 = arith.constant 0 : i32
    return %c0_i32, %c0_i32_0 : i32, i32
  }
  func.func @transform_12(%arg0: i32, %arg1: i32, %arg2: memref<2xi32, #tpu.memory_space<smem>>) -> (i32, i32) {
    %c0_i32 = arith.constant 0 : i32
    %c0_i32_0 = arith.constant 0 : i32
    %c0_i32_1 = arith.constant 0 : i32
    return %c0_i32, %c0_i32_0 : i32, i32
  }
  func.func @transform_13(%arg0: i32, %arg1: i32, %arg2: memref<2xi32, #tpu.memory_space<smem>>) -> (i32, i32) {
    %c0_i32 = arith.constant 0 : i32
    %c0_i32_0 = arith.constant 0 : i32
    %c0_i32_1 = arith.constant 0 : i32
    return %c0_i32, %c0_i32_0 : i32, i32
  }
  func.func @transform_14(%arg0: i32, %arg1: i32, %arg2: memref<2xi32, #tpu.memory_space<smem>>) -> (i32, i32) {
    %c0_i32 = arith.constant 0 : i32
    %c0_i32_0 = arith.constant 0 : i32
    %c0_i32_1 = arith.constant 0 : i32
    return %c0_i32, %c0_i32_0 : i32, i32
  }
  func.func @transform_15(%arg0: i32, %arg1: i32, %arg2: memref<2xi32, #tpu.memory_space<smem>>) -> (i32, i32) {
    %c0_i32 = arith.constant 0 : i32
    %c0_i32_0 = arith.constant 0 : i32
    %c0_i32_1 = arith.constant 0 : i32
    return %c0_i32, %c0_i32_0 : i32, i32
  }
  func.func @transform_16(%arg0: i32, %arg1: i32, %arg2: memref<2xi32, #tpu.memory_space<smem>>) -> (i32, i32, i32) {
    %c0_i32 = arith.constant 0 : i32
    %c0_i32_0 = arith.constant 0 : i32
    return %arg0, %arg1, %c0_i32 : i32, i32, i32
  }
}

module attributes {stable_mosaic.version = 11 : i64} {
  func.func @encoder_block_kernel(%arg0: i32, %arg1: i32, %arg2: memref<2xi32, #tpu.memory_space<smem>>, %arg3: memref<1x16x128xbf16, #tpu.memory_space<vmem>>, %arg4: memref<1x16x128xf32, #tpu.memory_space<vmem>>, %arg5: memref<128x128xbf16, #tpu.memory_space<vmem>>, %arg6: memref<1x128xf32, #tpu.memory_space<vmem>>, %arg7: memref<128x256xbf16, #tpu.memory_space<vmem>>, %arg8: memref<1x256xf32, #tpu.memory_space<vmem>>, %arg9: memref<128x128xbf16, #tpu.memory_space<vmem>>, %arg10: memref<1x128xf32, #tpu.memory_space<vmem>>, %arg11: memref<1x128xf32, #tpu.memory_space<vmem>>, %arg12: memref<1x128xf32, #tpu.memory_space<vmem>>, %arg13: memref<128x256xbf16, #tpu.memory_space<vmem>>, %arg14: memref<1x256xf32, #tpu.memory_space<vmem>>, %arg15: memref<256x128xbf16, #tpu.memory_space<vmem>>, %arg16: memref<1x128xf32, #tpu.memory_space<vmem>>, %arg17: memref<1x128xf32, #tpu.memory_space<vmem>>, %arg18: memref<1x128xf32, #tpu.memory_space<vmem>>, %arg19: memref<1x16x128xf32, #tpu.memory_space<vmem>>, %arg20: memref<4x16x32xbf16, #tpu.memory_space<vmem>>, %arg21: memref<4x16x32xbf16, #tpu.memory_space<vmem>>, %arg22: memref<16x128xbf16, #tpu.memory_space<vmem>>) attributes {dimension_semantics = [#tpu.dimension_semantics<parallel>, #tpu.dimension_semantics<arbitrary>], iteration_bounds = array<i64: 2, 1>, scalar_prefetch = 1 : i64, scratch_operands = 3 : i64, tpu.core_type = #tpu.core_type<tc>, window_params = [{transform_indices = @transform_0, window_bounds = array<i64: 1, 16, 128>}, {transform_indices = @transform_1, window_bounds = array<i64: 1, 16, 128>}, {pipeline_mode = #tpu.pipeline_mode<synchronous>, transform_indices = @transform_2, window_bounds = array<i64: 128, 128>}, {pipeline_mode = #tpu.pipeline_mode<synchronous>, transform_indices = @transform_3, window_bounds = array<i64: 1, 128>}, {pipeline_mode = #tpu.pipeline_mode<synchronous>, transform_indices = @transform_4, window_bounds = array<i64: 128, 256>}, {pipeline_mode = #tpu.pipeline_mode<synchronous>, transform_indices = @transform_5, window_bounds = array<i64: 1, 256>}, {pipeline_mode = #tpu.pipeline_mode<synchronous>, transform_indices = @transform_6, window_bounds = array<i64: 128, 128>}, {pipeline_mode = #tpu.pipeline_mode<synchronous>, transform_indices = @transform_7, window_bounds = array<i64: 1, 128>}, {pipeline_mode = #tpu.pipeline_mode<synchronous>, transform_indices = @transform_8, window_bounds = array<i64: 1, 128>}, {pipeline_mode = #tpu.pipeline_mode<synchronous>, transform_indices = @transform_9, window_bounds = array<i64: 1, 128>}, {pipeline_mode = #tpu.pipeline_mode<synchronous>, transform_indices = @transform_10, window_bounds = array<i64: 128, 256>}, {pipeline_mode = #tpu.pipeline_mode<synchronous>, transform_indices = @transform_11, window_bounds = array<i64: 1, 256>}, {pipeline_mode = #tpu.pipeline_mode<synchronous>, transform_indices = @transform_12, window_bounds = array<i64: 256, 128>}, {pipeline_mode = #tpu.pipeline_mode<synchronous>, transform_indices = @transform_13, window_bounds = array<i64: 1, 128>}, {pipeline_mode = #tpu.pipeline_mode<synchronous>, transform_indices = @transform_14, window_bounds = array<i64: 1, 128>}, {pipeline_mode = #tpu.pipeline_mode<synchronous>, transform_indices = @transform_15, window_bounds = array<i64: 1, 128>}, {transform_indices = @transform_16, window_bounds = array<i64: 1, 16, 128>}]} {
    %c0_i32 = arith.constant 0 : i32
    %0 = arith.cmpi eq, %arg1, %c0_i32 : i32
    %1 = arith.extui %0 : i1 to i32
    %c0_i32_0 = arith.constant 0 : i32
    %2 = arith.cmpi ne, %1, %c0_i32_0 : i32
    scf.if %2 {
      %c0_93 = arith.constant 0 : index
      %c0_94 = arith.constant 0 : index
      %c0_95 = arith.constant 0 : index
      %180 = vector.load %arg3[%c0_93, %c0_94, %c0_95] : memref<1x16x128xbf16, #tpu.memory_space<vmem>>, vector<1x16x128xbf16>
      %181 = vector.shape_cast %180 : vector<1x16x128xbf16> to vector<16x128xbf16>
      %c0_96 = arith.constant 0 : index
      %c0_97 = arith.constant 0 : index
      %182 = vector.load %arg7[%c0_96, %c0_97] : memref<128x256xbf16, #tpu.memory_space<vmem>>, vector<128x256xbf16>
      %cst_98 = arith.constant dense<0.000000e+00> : vector<16x256xf32>
      %183 = tpu.matmul %181, %182, %cst_98 {dimension_numbers = #tpu.dot_dimension_numbers<[1], [0], [0], [1], [0, 0, 1, 1], [], []>} : vector<16x128xbf16>, vector<128x256xbf16>, vector<16x256xf32> -> vector<16x256xf32>
      %c0_99 = arith.constant 0 : index
      %c0_100 = arith.constant 0 : index
      %184 = vector.load %arg8[%c0_99, %c0_100] : memref<1x256xf32, #tpu.memory_space<vmem>>, vector<1x256xf32>
      %185 = vector.broadcast %184 : vector<1x256xf32> to vector<16x256xf32>
      %186 = arith.addf %183, %185 : vector<16x256xf32>
      %187 = arith.truncf %186 : vector<16x256xf32> to vector<16x256xbf16>
      %188 = vector.extract_strided_slice %187 {offsets = [0, 0], sizes = [16, 32], strides = [1, 1]} : vector<16x256xbf16> to vector<16x32xbf16>
      %c0_101 = arith.constant 0 : index
      %c0_102 = arith.constant 0 : index
      %c0_103 = arith.constant 0 : index
      %189 = vector.load %arg20[%c0_101, %c0_102, %c0_103] : memref<4x16x32xbf16, #tpu.memory_space<vmem>>, vector<1x16x32xbf16>
      %190 = vector.shape_cast %189 : vector<1x16x32xbf16> to vector<16x32xbf16>
      %191 = vector.shape_cast %188 : vector<16x32xbf16> to vector<1x16x32xbf16>
      tpu.vector_store %arg20[%c0_101, %c0_102, %c0_103], %191 {strides = array<i32>} : memref<4x16x32xbf16, #tpu.memory_space<vmem>>, vector<1x16x32xbf16>,
      %192 = vector.extract_strided_slice %187 {offsets = [0, 128], sizes = [16, 32], strides = [1, 1]} : vector<16x256xbf16> to vector<16x32xbf16>
      %c0_104 = arith.constant 0 : index
      %c0_105 = arith.constant 0 : index
      %c0_106 = arith.constant 0 : index
      %193 = vector.load %arg21[%c0_104, %c0_105, %c0_106] : memref<4x16x32xbf16, #tpu.memory_space<vmem>>, vector<1x16x32xbf16>
      %194 = vector.shape_cast %193 : vector<1x16x32xbf16> to vector<16x32xbf16>
      %195 = vector.shape_cast %192 : vector<16x32xbf16> to vector<1x16x32xbf16>
      tpu.vector_store %arg21[%c0_104, %c0_105, %c0_106], %195 {strides = array<i32>} : memref<4x16x32xbf16, #tpu.memory_space<vmem>>, vector<1x16x32xbf16>,
      %196 = vector.extract_strided_slice %187 {offsets = [0, 32], sizes = [16, 32], strides = [1, 1]} : vector<16x256xbf16> to vector<16x32xbf16>
      %c1_107 = arith.constant 1 : index
      %c0_108 = arith.constant 0 : index
      %c0_109 = arith.constant 0 : index
      %197 = vector.load %arg20[%c1_107, %c0_108, %c0_109] : memref<4x16x32xbf16, #tpu.memory_space<vmem>>, vector<1x16x32xbf16>
      %198 = vector.shape_cast %197 : vector<1x16x32xbf16> to vector<16x32xbf16>
      %199 = vector.shape_cast %196 : vector<16x32xbf16> to vector<1x16x32xbf16>
      tpu.vector_store %arg20[%c1_107, %c0_108, %c0_109], %199 {strides = array<i32>} : memref<4x16x32xbf16, #tpu.memory_space<vmem>>, vector<1x16x32xbf16>,
      %200 = vector.extract_strided_slice %187 {offsets = [0, 160], sizes = [16, 32], strides = [1, 1]} : vector<16x256xbf16> to vector<16x32xbf16>
      %c1_110 = arith.constant 1 : index
      %c0_111 = arith.constant 0 : index
      %c0_112 = arith.constant 0 : index
      %201 = vector.load %arg21[%c1_110, %c0_111, %c0_112] : memref<4x16x32xbf16, #tpu.memory_space<vmem>>, vector<1x16x32xbf16>
      %202 = vector.shape_cast %201 : vector<1x16x32xbf16> to vector<16x32xbf16>
      %203 = vector.shape_cast %200 : vector<16x32xbf16> to vector<1x16x32xbf16>
      tpu.vector_store %arg21[%c1_110, %c0_111, %c0_112], %203 {strides = array<i32>} : memref<4x16x32xbf16, #tpu.memory_space<vmem>>, vector<1x16x32xbf16>,
      %204 = vector.extract_strided_slice %187 {offsets = [0, 64], sizes = [16, 32], strides = [1, 1]} : vector<16x256xbf16> to vector<16x32xbf16>
      %c2_113 = arith.constant 2 : index
      %c0_114 = arith.constant 0 : index
      %c0_115 = arith.constant 0 : index
      %205 = vector.load %arg20[%c2_113, %c0_114, %c0_115] : memref<4x16x32xbf16, #tpu.memory_space<vmem>>, vector<1x16x32xbf16>
      %206 = vector.shape_cast %205 : vector<1x16x32xbf16> to vector<16x32xbf16>
      %207 = vector.shape_cast %204 : vector<16x32xbf16> to vector<1x16x32xbf16>
      tpu.vector_store %arg20[%c2_113, %c0_114, %c0_115], %207 {strides = array<i32>} : memref<4x16x32xbf16, #tpu.memory_space<vmem>>, vector<1x16x32xbf16>,
      %208 = vector.extract_strided_slice %187 {offsets = [0, 192], sizes = [16, 32], strides = [1, 1]} : vector<16x256xbf16> to vector<16x32xbf16>
      %c2_116 = arith.constant 2 : index
      %c0_117 = arith.constant 0 : index
      %c0_118 = arith.constant 0 : index
      %209 = vector.load %arg21[%c2_116, %c0_117, %c0_118] : memref<4x16x32xbf16, #tpu.memory_space<vmem>>, vector<1x16x32xbf16>
      %210 = vector.shape_cast %209 : vector<1x16x32xbf16> to vector<16x32xbf16>
      %211 = vector.shape_cast %208 : vector<16x32xbf16> to vector<1x16x32xbf16>
      tpu.vector_store %arg21[%c2_116, %c0_117, %c0_118], %211 {strides = array<i32>} : memref<4x16x32xbf16, #tpu.memory_space<vmem>>, vector<1x16x32xbf16>,
      %212 = vector.extract_strided_slice %187 {offsets = [0, 96], sizes = [16, 32], strides = [1, 1]} : vector<16x256xbf16> to vector<16x32xbf16>
      %c3_119 = arith.constant 3 : index
      %c0_120 = arith.constant 0 : index
      %c0_121 = arith.constant 0 : index
      %213 = vector.load %arg20[%c3_119, %c0_120, %c0_121] : memref<4x16x32xbf16, #tpu.memory_space<vmem>>, vector<1x16x32xbf16>
      %214 = vector.shape_cast %213 : vector<1x16x32xbf16> to vector<16x32xbf16>
      %215 = vector.shape_cast %212 : vector<16x32xbf16> to vector<1x16x32xbf16>
      tpu.vector_store %arg20[%c3_119, %c0_120, %c0_121], %215 {strides = array<i32>} : memref<4x16x32xbf16, #tpu.memory_space<vmem>>, vector<1x16x32xbf16>,
      %216 = vector.extract_strided_slice %187 {offsets = [0, 224], sizes = [16, 32], strides = [1, 1]} : vector<16x256xbf16> to vector<16x32xbf16>
      %c3_122 = arith.constant 3 : index
      %c0_123 = arith.constant 0 : index
      %c0_124 = arith.constant 0 : index
      %217 = vector.load %arg21[%c3_122, %c0_123, %c0_124] : memref<4x16x32xbf16, #tpu.memory_space<vmem>>, vector<1x16x32xbf16>
      %218 = vector.shape_cast %217 : vector<1x16x32xbf16> to vector<16x32xbf16>
      %219 = vector.shape_cast %216 : vector<16x32xbf16> to vector<1x16x32xbf16>
      tpu.vector_store %arg21[%c3_122, %c0_123, %c0_124], %219 {strides = array<i32>} : memref<4x16x32xbf16, #tpu.memory_space<vmem>>, vector<1x16x32xbf16>,
    } else {
    }
    %c0 = arith.constant 0 : index
    %c0_1 = arith.constant 0 : index
    %c0_2 = arith.constant 0 : index
    %3 = vector.load %arg4[%c0, %c0_1, %c0_2] : memref<1x16x128xf32, #tpu.memory_space<vmem>>, vector<1x16x128xf32>
    %4 = vector.shape_cast %3 : vector<1x16x128xf32> to vector<16x128xf32>
    %5 = arith.truncf %4 : vector<16x128xf32> to vector<16x128xbf16>
    %c0_3 = arith.constant 0 : index
    %c0_4 = arith.constant 0 : index
    %6 = vector.load %arg5[%c0_3, %c0_4] : memref<128x128xbf16, #tpu.memory_space<vmem>>, vector<128x128xbf16>
    %cst = arith.constant dense<0.000000e+00> : vector<16x128xf32>
    %7 = tpu.matmul %5, %6, %cst {dimension_numbers = #tpu.dot_dimension_numbers<[1], [0], [0], [1], [0, 0, 1, 1], [], []>} : vector<16x128xbf16>, vector<128x128xbf16>, vector<16x128xf32> -> vector<16x128xf32>
    %c0_5 = arith.constant 0 : index
    %c0_6 = arith.constant 0 : index
    %8 = vector.load %arg6[%c0_5, %c0_6] : memref<1x128xf32, #tpu.memory_space<vmem>>, vector<1x128xf32>
    %9 = vector.broadcast %8 : vector<1x128xf32> to vector<16x128xf32>
    %10 = arith.addf %7, %9 : vector<16x128xf32>
    %cst_7 = arith.constant 0.176776692 : f32
    %11 = vector.broadcast %cst_7 : f32 to vector<16x128xf32>
    %12 = arith.mulf %10, %11 : vector<16x128xf32>
    %13 = arith.truncf %12 : vector<16x128xf32> to vector<16x128xbf16>
    %14 = arith.index_cast %arg0 : i32 to index
    %15 = memref.load %arg2[%14] : memref<2xi32, #tpu.memory_space<smem>>
    %16 = tpu.iota {dimensions = array<i32: 1>} : vector<16x16xi32>
    %17 = vector.broadcast %15 : i32 to vector<16x16xi32>
    %18 = arith.cmpi slt, %16, %17 : vector<16x16xi32>
    %19 = vector.extract_strided_slice %13 {offsets = [0, 0], sizes = [16, 32], strides = [1, 1]} : vector<16x128xbf16> to vector<16x32xbf16>
    %c0_8 = arith.constant 0 : index
    %c0_9 = arith.constant 0 : index
    %c0_10 = arith.constant 0 : index
    %20 = vector.load %arg20[%c0_8, %c0_9, %c0_10] : memref<4x16x32xbf16, #tpu.memory_space<vmem>>, vector<1x16x32xbf16>
    %21 = vector.shape_cast %20 : vector<1x16x32xbf16> to vector<16x32xbf16>
    %cst_11 = arith.constant dense<0.000000e+00> : vector<16x16xf32>
    %22 = tpu.matmul %19, %21, %cst_11 {dimension_numbers = #tpu.dot_dimension_numbers<[1], [1], [0], [0], [0, 0, 1, 0], [], []>} : vector<16x32xbf16>, vector<16x32xbf16>, vector<16x16xf32> -> vector<16x16xf32>
    %cst_12 = arith.constant -1.000000e+09 : f32
    %23 = vector.broadcast %cst_12 : f32 to vector<16x16xf32>
    %24 = arith.select %18, %22, %23 : vector<16x16xi1>, vector<16x16xf32>
    %cst_13 = arith.constant dense<0xFF800000> : vector<16xf32>
    %25 = vector.multi_reduction <maximumf>, %24, %cst_13 [1] : vector<16x16xf32> to vector<16xf32>
    %26 = vector.shape_cast %25 : vector<16xf32> to vector<16x1xf32>
    %27 = vector.broadcast %26 : vector<16x1xf32> to vector<16x16xf32>
    %28 = arith.subf %24, %27 : vector<16x16xf32>
    %29 = math.exp %28 : vector<16x16xf32>
    %cst_14 = arith.constant dense<0.000000e+00> : vector<16xf32>
    %30 = vector.multi_reduction <add>, %29, %cst_14 [1] : vector<16x16xf32> to vector<16xf32>
    %31 = vector.shape_cast %30 : vector<16xf32> to vector<16x1xf32>
    %32 = tpu.reciprocal %31 {approx = true} : vector<16x1xf32> -> vector<16x1xf32>
    %33 = vector.broadcast %32 : vector<16x1xf32> to vector<16x16xf32>
    %34 = arith.mulf %29, %33 : vector<16x16xf32>
    %35 = arith.truncf %34 : vector<16x16xf32> to vector<16x16xbf16>
    %c0_15 = arith.constant 0 : index
    %c0_16 = arith.constant 0 : index
    %c0_17 = arith.constant 0 : index
    %36 = vector.load %arg21[%c0_15, %c0_16, %c0_17] : memref<4x16x32xbf16, #tpu.memory_space<vmem>>, vector<1x16x32xbf16>
    %37 = vector.shape_cast %36 : vector<1x16x32xbf16> to vector<16x32xbf16>
    %cst_18 = arith.constant dense<0.000000e+00> : vector<16x32xf32>
    %38 = tpu.matmul %35, %37, %cst_18 {dimension_numbers = #tpu.dot_dimension_numbers<[1], [0], [0], [1], [0, 0, 1, 1], [], []>} : vector<16x16xbf16>, vector<16x32xbf16>, vector<16x32xf32> -> vector<16x32xf32>
    %39 = arith.truncf %38 : vector<16x32xf32> to vector<16x32xbf16>
    %c0_19 = arith.constant 0 : index
    %c0_20 = arith.constant 0 : index
    %40 = vector.load %arg22[%c0_19, %c0_20] : memref<16x128xbf16, #tpu.memory_space<vmem>>, vector<16x32xbf16>
    tpu.vector_store %arg22[%c0_19, %c0_20], %39 {strides = array<i32>} : memref<16x128xbf16, #tpu.memory_space<vmem>>, vector<16x32xbf16>,
    %41 = vector.extract_strided_slice %13 {offsets = [0, 32], sizes = [16, 32], strides = [1, 1]} : vector<16x128xbf16> to vector<16x32xbf16>
    %c1 = arith.constant 1 : index
    %c0_21 = arith.constant 0 : index
    %c0_22 = arith.constant 0 : index
    %42 = vector.load %arg20[%c1, %c0_21, %c0_22] : memref<4x16x32xbf16, #tpu.memory_space<vmem>>, vector<1x16x32xbf16>
    %43 = vector.shape_cast %42 : vector<1x16x32xbf16> to vector<16x32xbf16>
    %cst_23 = arith.constant dense<0.000000e+00> : vector<16x16xf32>
    %44 = tpu.matmul %41, %43, %cst_23 {dimension_numbers = #tpu.dot_dimension_numbers<[1], [1], [0], [0], [0, 0, 1, 0], [], []>} : vector<16x32xbf16>, vector<16x32xbf16>, vector<16x16xf32> -> vector<16x16xf32>
    %cst_24 = arith.constant -1.000000e+09 : f32
    %45 = vector.broadcast %cst_24 : f32 to vector<16x16xf32>
    %46 = arith.select %18, %44, %45 : vector<16x16xi1>, vector<16x16xf32>
    %cst_25 = arith.constant dense<0xFF800000> : vector<16xf32>
    %47 = vector.multi_reduction <maximumf>, %46, %cst_25 [1] : vector<16x16xf32> to vector<16xf32>
    %48 = vector.shape_cast %47 : vector<16xf32> to vector<16x1xf32>
    %49 = vector.broadcast %48 : vector<16x1xf32> to vector<16x16xf32>
    %50 = arith.subf %46, %49 : vector<16x16xf32>
    %51 = math.exp %50 : vector<16x16xf32>
    %cst_26 = arith.constant dense<0.000000e+00> : vector<16xf32>
    %52 = vector.multi_reduction <add>, %51, %cst_26 [1] : vector<16x16xf32> to vector<16xf32>
    %53 = vector.shape_cast %52 : vector<16xf32> to vector<16x1xf32>
    %54 = tpu.reciprocal %53 {approx = true} : vector<16x1xf32> -> vector<16x1xf32>
    %55 = vector.broadcast %54 : vector<16x1xf32> to vector<16x16xf32>
    %56 = arith.mulf %51, %55 : vector<16x16xf32>
    %57 = arith.truncf %56 : vector<16x16xf32> to vector<16x16xbf16>
    %c1_27 = arith.constant 1 : index
    %c0_28 = arith.constant 0 : index
    %c0_29 = arith.constant 0 : index
    %58 = vector.load %arg21[%c1_27, %c0_28, %c0_29] : memref<4x16x32xbf16, #tpu.memory_space<vmem>>, vector<1x16x32xbf16>
    %59 = vector.shape_cast %58 : vector<1x16x32xbf16> to vector<16x32xbf16>
    %cst_30 = arith.constant dense<0.000000e+00> : vector<16x32xf32>
    %60 = tpu.matmul %57, %59, %cst_30 {dimension_numbers = #tpu.dot_dimension_numbers<[1], [0], [0], [1], [0, 0, 1, 1], [], []>} : vector<16x16xbf16>, vector<16x32xbf16>, vector<16x32xf32> -> vector<16x32xf32>
    %61 = arith.truncf %60 : vector<16x32xf32> to vector<16x32xbf16>
    %c0_31 = arith.constant 0 : index
    %c32 = arith.constant 32 : index
    %62 = vector.load %arg22[%c0_31, %c32] : memref<16x128xbf16, #tpu.memory_space<vmem>>, vector<16x32xbf16>
    tpu.vector_store %arg22[%c0_31, %c32], %61 {strides = array<i32>} : memref<16x128xbf16, #tpu.memory_space<vmem>>, vector<16x32xbf16>,
    %63 = vector.extract_strided_slice %13 {offsets = [0, 64], sizes = [16, 32], strides = [1, 1]} : vector<16x128xbf16> to vector<16x32xbf16>
    %c2 = arith.constant 2 : index
    %c0_32 = arith.constant 0 : index
    %c0_33 = arith.constant 0 : index
    %64 = vector.load %arg20[%c2, %c0_32, %c0_33] : memref<4x16x32xbf16, #tpu.memory_space<vmem>>, vector<1x16x32xbf16>
    %65 = vector.shape_cast %64 : vector<1x16x32xbf16> to vector<16x32xbf16>
    %cst_34 = arith.constant dense<0.000000e+00> : vector<16x16xf32>
    %66 = tpu.matmul %63, %65, %cst_34 {dimension_numbers = #tpu.dot_dimension_numbers<[1], [1], [0], [0], [0, 0, 1, 0], [], []>} : vector<16x32xbf16>, vector<16x32xbf16>, vector<16x16xf32> -> vector<16x16xf32>
    %cst_35 = arith.constant -1.000000e+09 : f32
    %67 = vector.broadcast %cst_35 : f32 to vector<16x16xf32>
    %68 = arith.select %18, %66, %67 : vector<16x16xi1>, vector<16x16xf32>
    %cst_36 = arith.constant dense<0xFF800000> : vector<16xf32>
    %69 = vector.multi_reduction <maximumf>, %68, %cst_36 [1] : vector<16x16xf32> to vector<16xf32>
    %70 = vector.shape_cast %69 : vector<16xf32> to vector<16x1xf32>
    %71 = vector.broadcast %70 : vector<16x1xf32> to vector<16x16xf32>
    %72 = arith.subf %68, %71 : vector<16x16xf32>
    %73 = math.exp %72 : vector<16x16xf32>
    %cst_37 = arith.constant dense<0.000000e+00> : vector<16xf32>
    %74 = vector.multi_reduction <add>, %73, %cst_37 [1] : vector<16x16xf32> to vector<16xf32>
    %75 = vector.shape_cast %74 : vector<16xf32> to vector<16x1xf32>
    %76 = tpu.reciprocal %75 {approx = true} : vector<16x1xf32> -> vector<16x1xf32>
    %77 = vector.broadcast %76 : vector<16x1xf32> to vector<16x16xf32>
    %78 = arith.mulf %73, %77 : vector<16x16xf32>
    %79 = arith.truncf %78 : vector<16x16xf32> to vector<16x16xbf16>
    %c2_38 = arith.constant 2 : index
    %c0_39 = arith.constant 0 : index
    %c0_40 = arith.constant 0 : index
    %80 = vector.load %arg21[%c2_38, %c0_39, %c0_40] : memref<4x16x32xbf16, #tpu.memory_space<vmem>>, vector<1x16x32xbf16>
    %81 = vector.shape_cast %80 : vector<1x16x32xbf16> to vector<16x32xbf16>
    %cst_41 = arith.constant dense<0.000000e+00> : vector<16x32xf32>
    %82 = tpu.matmul %79, %81, %cst_41 {dimension_numbers = #tpu.dot_dimension_numbers<[1], [0], [0], [1], [0, 0, 1, 1], [], []>} : vector<16x16xbf16>, vector<16x32xbf16>, vector<16x32xf32> -> vector<16x32xf32>
    %83 = arith.truncf %82 : vector<16x32xf32> to vector<16x32xbf16>
    %c0_42 = arith.constant 0 : index
    %c64 = arith.constant 64 : index
    %84 = vector.load %arg22[%c0_42, %c64] : memref<16x128xbf16, #tpu.memory_space<vmem>>, vector<16x32xbf16>
    tpu.vector_store %arg22[%c0_42, %c64], %83 {strides = array<i32>} : memref<16x128xbf16, #tpu.memory_space<vmem>>, vector<16x32xbf16>,
    %85 = vector.extract_strided_slice %13 {offsets = [0, 96], sizes = [16, 32], strides = [1, 1]} : vector<16x128xbf16> to vector<16x32xbf16>
    %c3 = arith.constant 3 : index
    %c0_43 = arith.constant 0 : index
    %c0_44 = arith.constant 0 : index
    %86 = vector.load %arg20[%c3, %c0_43, %c0_44] : memref<4x16x32xbf16, #tpu.memory_space<vmem>>, vector<1x16x32xbf16>
    %87 = vector.shape_cast %86 : vector<1x16x32xbf16> to vector<16x32xbf16>
    %cst_45 = arith.constant dense<0.000000e+00> : vector<16x16xf32>
    %88 = tpu.matmul %85, %87, %cst_45 {dimension_numbers = #tpu.dot_dimension_numbers<[1], [1], [0], [0], [0, 0, 1, 0], [], []>} : vector<16x32xbf16>, vector<16x32xbf16>, vector<16x16xf32> -> vector<16x16xf32>
    %cst_46 = arith.constant -1.000000e+09 : f32
    %89 = vector.broadcast %cst_46 : f32 to vector<16x16xf32>
    %90 = arith.select %18, %88, %89 : vector<16x16xi1>, vector<16x16xf32>
    %cst_47 = arith.constant dense<0xFF800000> : vector<16xf32>
    %91 = vector.multi_reduction <maximumf>, %90, %cst_47 [1] : vector<16x16xf32> to vector<16xf32>
    %92 = vector.shape_cast %91 : vector<16xf32> to vector<16x1xf32>
    %93 = vector.broadcast %92 : vector<16x1xf32> to vector<16x16xf32>
    %94 = arith.subf %90, %93 : vector<16x16xf32>
    %95 = math.exp %94 : vector<16x16xf32>
    %cst_48 = arith.constant dense<0.000000e+00> : vector<16xf32>
    %96 = vector.multi_reduction <add>, %95, %cst_48 [1] : vector<16x16xf32> to vector<16xf32>
    %97 = vector.shape_cast %96 : vector<16xf32> to vector<16x1xf32>
    %98 = tpu.reciprocal %97 {approx = true} : vector<16x1xf32> -> vector<16x1xf32>
    %99 = vector.broadcast %98 : vector<16x1xf32> to vector<16x16xf32>
    %100 = arith.mulf %95, %99 : vector<16x16xf32>
    %101 = arith.truncf %100 : vector<16x16xf32> to vector<16x16xbf16>
    %c3_49 = arith.constant 3 : index
    %c0_50 = arith.constant 0 : index
    %c0_51 = arith.constant 0 : index
    %102 = vector.load %arg21[%c3_49, %c0_50, %c0_51] : memref<4x16x32xbf16, #tpu.memory_space<vmem>>, vector<1x16x32xbf16>
    %103 = vector.shape_cast %102 : vector<1x16x32xbf16> to vector<16x32xbf16>
    %cst_52 = arith.constant dense<0.000000e+00> : vector<16x32xf32>
    %104 = tpu.matmul %101, %103, %cst_52 {dimension_numbers = #tpu.dot_dimension_numbers<[1], [0], [0], [1], [0, 0, 1, 1], [], []>} : vector<16x16xbf16>, vector<16x32xbf16>, vector<16x32xf32> -> vector<16x32xf32>
    %105 = arith.truncf %104 : vector<16x32xf32> to vector<16x32xbf16>
    %c0_53 = arith.constant 0 : index
    %c96 = arith.constant 96 : index
    %106 = vector.load %arg22[%c0_53, %c96] : memref<16x128xbf16, #tpu.memory_space<vmem>>, vector<16x32xbf16>
    tpu.vector_store %arg22[%c0_53, %c96], %105 {strides = array<i32>} : memref<16x128xbf16, #tpu.memory_space<vmem>>, vector<16x32xbf16>,
    %c0_54 = arith.constant 0 : index
    %c0_55 = arith.constant 0 : index
    %107 = vector.load %arg22[%c0_54, %c0_55] : memref<16x128xbf16, #tpu.memory_space<vmem>>, vector<16x128xbf16>
    %c0_56 = arith.constant 0 : index
    %c0_57 = arith.constant 0 : index
    %108 = vector.load %arg9[%c0_56, %c0_57] : memref<128x128xbf16, #tpu.memory_space<vmem>>, vector<128x128xbf16>
    %cst_58 = arith.constant dense<0.000000e+00> : vector<16x128xf32>
    %109 = tpu.matmul %107, %108, %cst_58 {dimension_numbers = #tpu.dot_dimension_numbers<[1], [0], [0], [1], [0, 0, 1, 1], [], []>} : vector<16x128xbf16>, vector<128x128xbf16>, vector<16x128xf32> -> vector<16x128xf32>
    %c0_59 = arith.constant 0 : index
    %c0_60 = arith.constant 0 : index
    %110 = vector.load %arg10[%c0_59, %c0_60] : memref<1x128xf32, #tpu.memory_space<vmem>>, vector<1x128xf32>
    %111 = vector.broadcast %110 : vector<1x128xf32> to vector<16x128xf32>
    %112 = arith.addf %109, %111 : vector<16x128xf32>
    %113 = arith.addf %112, %4 : vector<16x128xf32>
    %c0_61 = arith.constant 0 : index
    %c0_62 = arith.constant 0 : index
    %114 = vector.load %arg11[%c0_61, %c0_62] : memref<1x128xf32, #tpu.memory_space<vmem>>, vector<1x128xf32>
    %c0_63 = arith.constant 0 : index
    %c0_64 = arith.constant 0 : index
    %115 = vector.load %arg12[%c0_63, %c0_64] : memref<1x128xf32, #tpu.memory_space<vmem>>, vector<1x128xf32>
    %cst_65 = arith.constant dense<0.000000e+00> : vector<16xf32>
    %116 = vector.multi_reduction <add>, %113, %cst_65 [1] : vector<16x128xf32> to vector<16xf32>
    %117 = vector.shape_cast %116 : vector<16xf32> to vector<16x1xf32>
    %cst_66 = arith.constant 1.280000e+02 : f32
    %118 = vector.broadcast %cst_66 : f32 to vector<16x1xf32>
    %119 = arith.divf %117, %118 : vector<16x1xf32>
    %120 = vector.broadcast %119 : vector<16x1xf32> to vector<16x128xf32>
    %121 = arith.subf %113, %120 : vector<16x128xf32>
    %122 = arith.mulf %121, %121 : vector<16x128xf32>
    %cst_67 = arith.constant dense<0.000000e+00> : vector<16xf32>
    %123 = vector.multi_reduction <add>, %122, %cst_67 [1] : vector<16x128xf32> to vector<16xf32>
    %124 = vector.shape_cast %123 : vector<16xf32> to vector<16x1xf32>
    %cst_68 = arith.constant 1.280000e+02 : f32
    %125 = vector.broadcast %cst_68 : f32 to vector<16x1xf32>
    %126 = arith.divf %124, %125 : vector<16x1xf32>
    %127 = vector.broadcast %119 : vector<16x1xf32> to vector<16x128xf32>
    %128 = arith.subf %113, %127 : vector<16x128xf32>
    %cst_69 = arith.constant 9.99999974E-6 : f32
    %129 = vector.broadcast %cst_69 : f32 to vector<16x1xf32>
    %130 = arith.addf %126, %129 : vector<16x1xf32>
    %131 = math.rsqrt %130 : vector<16x1xf32>
    %132 = vector.broadcast %131 : vector<16x1xf32> to vector<16x128xf32>
    %133 = arith.mulf %128, %132 : vector<16x128xf32>
    %134 = vector.broadcast %114 : vector<1x128xf32> to vector<16x128xf32>
    %135 = arith.mulf %133, %134 : vector<16x128xf32>
    %136 = vector.broadcast %115 : vector<1x128xf32> to vector<16x128xf32>
    %137 = arith.addf %135, %136 : vector<16x128xf32>
    %138 = arith.truncf %137 : vector<16x128xf32> to vector<16x128xbf16>
    %c0_70 = arith.constant 0 : index
    %c0_71 = arith.constant 0 : index
    %139 = vector.load %arg13[%c0_70, %c0_71] : memref<128x256xbf16, #tpu.memory_space<vmem>>, vector<128x256xbf16>
    %cst_72 = arith.constant dense<0.000000e+00> : vector<16x256xf32>
    %140 = tpu.matmul %138, %139, %cst_72 {dimension_numbers = #tpu.dot_dimension_numbers<[1], [0], [0], [1], [0, 0, 1, 1], [], []>} : vector<16x128xbf16>, vector<128x256xbf16>, vector<16x256xf32> -> vector<16x256xf32>
    %c0_73 = arith.constant 0 : index
    %c0_74 = arith.constant 0 : index
    %141 = vector.load %arg14[%c0_73, %c0_74] : memref<1x256xf32, #tpu.memory_space<vmem>>, vector<1x256xf32>
    %142 = vector.broadcast %141 : vector<1x256xf32> to vector<16x256xf32>
    %143 = arith.addf %140, %142 : vector<16x256xf32>
    %cst_75 = arith.constant 0.000000e+00 : f32
    %144 = vector.broadcast %cst_75 : f32 to vector<16x256xf32>
    %145 = arith.maximumf %143, %144 : vector<16x256xf32>
    %146 = arith.truncf %145 : vector<16x256xf32> to vector<16x256xbf16>
    %c0_76 = arith.constant 0 : index
    %c0_77 = arith.constant 0 : index
    %147 = vector.load %arg15[%c0_76, %c0_77] : memref<256x128xbf16, #tpu.memory_space<vmem>>, vector<256x128xbf16>
    %cst_78 = arith.constant dense<0.000000e+00> : vector<16x128xf32>
    %148 = tpu.matmul %146, %147, %cst_78 {dimension_numbers = #tpu.dot_dimension_numbers<[1], [0], [0], [1], [0, 0, 1, 1], [], []>} : vector<16x256xbf16>, vector<256x128xbf16>, vector<16x128xf32> -> vector<16x128xf32>
    %c0_79 = arith.constant 0 : index
    %c0_80 = arith.constant 0 : index
    %149 = vector.load %arg16[%c0_79, %c0_80] : memref<1x128xf32, #tpu.memory_space<vmem>>, vector<1x128xf32>
    %150 = vector.broadcast %149 : vector<1x128xf32> to vector<16x128xf32>
    %151 = arith.addf %148, %150 : vector<16x128xf32>
    %152 = arith.addf %151, %137 : vector<16x128xf32>
    %c0_81 = arith.constant 0 : index
    %c0_82 = arith.constant 0 : index
    %153 = vector.load %arg17[%c0_81, %c0_82] : memref<1x128xf32, #tpu.memory_space<vmem>>, vector<1x128xf32>
    %c0_83 = arith.constant 0 : index
    %c0_84 = arith.constant 0 : index
    %154 = vector.load %arg18[%c0_83, %c0_84] : memref<1x128xf32, #tpu.memory_space<vmem>>, vector<1x128xf32>
    %cst_85 = arith.constant dense<0.000000e+00> : vector<16xf32>
    %155 = vector.multi_reduction <add>, %152, %cst_85 [1] : vector<16x128xf32> to vector<16xf32>
    %156 = vector.shape_cast %155 : vector<16xf32> to vector<16x1xf32>
    %cst_86 = arith.constant 1.280000e+02 : f32
    %157 = vector.broadcast %cst_86 : f32 to vector<16x1xf32>
    %158 = arith.divf %156, %157 : vector<16x1xf32>
    %159 = vector.broadcast %158 : vector<16x1xf32> to vector<16x128xf32>
    %160 = arith.subf %152, %159 : vector<16x128xf32>
    %161 = arith.mulf %160, %160 : vector<16x128xf32>
    %cst_87 = arith.constant dense<0.000000e+00> : vector<16xf32>
    %162 = vector.multi_reduction <add>, %161, %cst_87 [1] : vector<16x128xf32> to vector<16xf32>
    %163 = vector.shape_cast %162 : vector<16xf32> to vector<16x1xf32>
    %cst_88 = arith.constant 1.280000e+02 : f32
    %164 = vector.broadcast %cst_88 : f32 to vector<16x1xf32>
    %165 = arith.divf %163, %164 : vector<16x1xf32>
    %166 = vector.broadcast %158 : vector<16x1xf32> to vector<16x128xf32>
    %167 = arith.subf %152, %166 : vector<16x128xf32>
    %cst_89 = arith.constant 9.99999974E-6 : f32
    %168 = vector.broadcast %cst_89 : f32 to vector<16x1xf32>
    %169 = arith.addf %165, %168 : vector<16x1xf32>
    %170 = math.rsqrt %169 : vector<16x1xf32>
    %171 = vector.broadcast %170 : vector<16x1xf32> to vector<16x128xf32>
    %172 = arith.mulf %167, %171 : vector<16x128xf32>
    %173 = vector.broadcast %153 : vector<1x128xf32> to vector<16x128xf32>
    %174 = arith.mulf %172, %173 : vector<16x128xf32>
    %175 = vector.broadcast %154 : vector<1x128xf32> to vector<16x128xf32>
    %176 = arith.addf %174, %175 : vector<16x128xf32>
    %c0_90 = arith.constant 0 : index
    %c0_91 = arith.constant 0 : index
    %c0_92 = arith.constant 0 : index
    %177 = vector.load %arg19[%c0_90, %c0_91, %c0_92] : memref<1x16x128xf32, #tpu.memory_space<vmem>>, vector<1x16x128xf32>
    %178 = vector.shape_cast %177 : vector<1x16x128xf32> to vector<16x128xf32>
    %179 = vector.shape_cast %176 : vector<16x128xf32> to vector<1x16x128xf32>
    tpu.vector_store %arg19[%c0_90, %c0_91, %c0_92], %179 {strides = array<i32>} : memref<1x16x128xf32, #tpu.memory_space<vmem>>, vector<1x16x128xf32>,
    return
  }
  func.func @transform_0(%arg0: i32, %arg1: i32, %arg2: memref<2xi32, #tpu.memory_space<smem>>) -> (i32, i32, i32) {
    %c0_i32 = arith.constant 0 : i32
    %c0_i32_0 = arith.constant 0 : i32
    %c0_i32_1 = arith.constant 0 : i32
    return %arg0, %c0_i32, %c0_i32_0 : i32, i32, i32
  }
  func.func @transform_1(%arg0: i32, %arg1: i32, %arg2: memref<2xi32, #tpu.memory_space<smem>>) -> (i32, i32, i32) {
    %c0_i32 = arith.constant 0 : i32
    %c0_i32_0 = arith.constant 0 : i32
    return %arg0, %arg1, %c0_i32 : i32, i32, i32
  }
  func.func @transform_2(%arg0: i32, %arg1: i32, %arg2: memref<2xi32, #tpu.memory_space<smem>>) -> (i32, i32) {
    %c0_i32 = arith.constant 0 : i32
    %c0_i32_0 = arith.constant 0 : i32
    %c0_i32_1 = arith.constant 0 : i32
    return %c0_i32, %c0_i32_0 : i32, i32
  }
  func.func @transform_3(%arg0: i32, %arg1: i32, %arg2: memref<2xi32, #tpu.memory_space<smem>>) -> (i32, i32) {
    %c0_i32 = arith.constant 0 : i32
    %c0_i32_0 = arith.constant 0 : i32
    %c0_i32_1 = arith.constant 0 : i32
    return %c0_i32, %c0_i32_0 : i32, i32
  }
  func.func @transform_4(%arg0: i32, %arg1: i32, %arg2: memref<2xi32, #tpu.memory_space<smem>>) -> (i32, i32) {
    %c0_i32 = arith.constant 0 : i32
    %c0_i32_0 = arith.constant 0 : i32
    %c0_i32_1 = arith.constant 0 : i32
    return %c0_i32, %c0_i32_0 : i32, i32
  }
  func.func @transform_5(%arg0: i32, %arg1: i32, %arg2: memref<2xi32, #tpu.memory_space<smem>>) -> (i32, i32) {
    %c0_i32 = arith.constant 0 : i32
    %c0_i32_0 = arith.constant 0 : i32
    %c0_i32_1 = arith.constant 0 : i32
    return %c0_i32, %c0_i32_0 : i32, i32
  }
  func.func @transform_6(%arg0: i32, %arg1: i32, %arg2: memref<2xi32, #tpu.memory_space<smem>>) -> (i32, i32) {
    %c0_i32 = arith.constant 0 : i32
    %c0_i32_0 = arith.constant 0 : i32
    %c0_i32_1 = arith.constant 0 : i32
    return %c0_i32, %c0_i32_0 : i32, i32
  }
  func.func @transform_7(%arg0: i32, %arg1: i32, %arg2: memref<2xi32, #tpu.memory_space<smem>>) -> (i32, i32) {
    %c0_i32 = arith.constant 0 : i32
    %c0_i32_0 = arith.constant 0 : i32
    %c0_i32_1 = arith.constant 0 : i32
    return %c0_i32, %c0_i32_0 : i32, i32
  }
  func.func @transform_8(%arg0: i32, %arg1: i32, %arg2: memref<2xi32, #tpu.memory_space<smem>>) -> (i32, i32) {
    %c0_i32 = arith.constant 0 : i32
    %c0_i32_0 = arith.constant 0 : i32
    %c0_i32_1 = arith.constant 0 : i32
    return %c0_i32, %c0_i32_0 : i32, i32
  }
  func.func @transform_9(%arg0: i32, %arg1: i32, %arg2: memref<2xi32, #tpu.memory_space<smem>>) -> (i32, i32) {
    %c0_i32 = arith.constant 0 : i32
    %c0_i32_0 = arith.constant 0 : i32
    %c0_i32_1 = arith.constant 0 : i32
    return %c0_i32, %c0_i32_0 : i32, i32
  }
  func.func @transform_10(%arg0: i32, %arg1: i32, %arg2: memref<2xi32, #tpu.memory_space<smem>>) -> (i32, i32) {
    %c0_i32 = arith.constant 0 : i32
    %c0_i32_0 = arith.constant 0 : i32
    %c0_i32_1 = arith.constant 0 : i32
    return %c0_i32, %c0_i32_0 : i32, i32
  }
  func.func @transform_11(%arg0: i32, %arg1: i32, %arg2: memref<2xi32, #tpu.memory_space<smem>>) -> (i32, i32) {
    %c0_i32 = arith.constant 0 : i32
    %c0_i32_0 = arith.constant 0 : i32
    %c0_i32_1 = arith.constant 0 : i32
    return %c0_i32, %c0_i32_0 : i32, i32
  }
  func.func @transform_12(%arg0: i32, %arg1: i32, %arg2: memref<2xi32, #tpu.memory_space<smem>>) -> (i32, i32) {
    %c0_i32 = arith.constant 0 : i32
    %c0_i32_0 = arith.constant 0 : i32
    %c0_i32_1 = arith.constant 0 : i32
    return %c0_i32, %c0_i32_0 : i32, i32
  }
  func.func @transform_13(%arg0: i32, %arg1: i32, %arg2: memref<2xi32, #tpu.memory_space<smem>>) -> (i32, i32) {
    %c0_i32 = arith.constant 0 : i32
    %c0_i32_0 = arith.constant 0 : i32
    %c0_i32_1 = arith.constant 0 : i32
    return %c0_i32, %c0_i32_0 : i32, i32
  }
  func.func @transform_14(%arg0: i32, %arg1: i32, %arg2: memref<2xi32, #tpu.memory_space<smem>>) -> (i32, i32) {
    %c0_i32 = arith.constant 0 : i32
    %c0_i32_0 = arith.constant 0 : i32
    %c0_i32_1 = arith.constant 0 : i32
    return %c0_i32, %c0_i32_0 : i32, i32
  }
  func.func @transform_15(%arg0: i32, %arg1: i32, %arg2: memref<2xi32, #tpu.memory_space<smem>>) -> (i32, i32) {
    %c0_i32 = arith.constant 0 : i32
    %c0_i32_0 = arith.constant 0 : i32
    %c0_i32_1 = arith.constant 0 : i32
    return %c0_i32, %c0_i32_0 : i32, i32
  }
  func.func @transform_16(%arg0: i32, %arg1: i32, %arg2: memref<2xi32, #tpu.memory_space<smem>>) -> (i32, i32, i32) {
    %c0_i32 = arith.constant 0 : i32
    %c0_i32_0 = arith.constant 0 : i32
    return %arg0, %arg1, %c0_i32 : i32, i32, i32
  }
}

</mosaic_0001>

<llo_original>
// kernel: tpu_custom_call.1
$region0: #{tpu_custom_call.1}
  #allocation0 [shape = 'u32[]', space=smem, size = 0x4, offset = 0x4, fixed_abs, tag = 'smem constant byte address 0x4 - core index']
  #allocation1 [shape = 'u32[144,128]{1,0:T(1,128)}', space=vmem, size = 0x12000, scoped, tag = 'internal scratch']
  #allocation2 [shape = 'bf16[4,16,32]{2,1,0:T(16,128)(2,1)}', space=vmem, size = 0x4000, scoped, tag = 'scratch operand']
  #allocation3 [shape = 'bf16[4,16,32]{2,1,0:T(16,128)(2,1)}', space=vmem, size = 0x4000, scoped, tag = 'scratch operand']
  #allocation4 [shape = 'bf16[16,128]{1,0:T(16,128)(2,1)}', space=vmem, size = 0x1000, scoped, tag = 'scratch operand']
  #allocation5 [shape = 's32[1]{0}', space=sflag, size = 0x4, scoped, tag = 'scoped memory for tpu_custom_call.1']
  #allocation6 [shape = 'u8[512]{0}', space=smem, size = 0x200, scoped, tag = 'prefetched SMEM operand 0']
  %s0 = inlined_call_operand.hbm [shape: s32[2], index: 0, kind: input, shape index: {}]
  %s1 = inlined_call_operand.hbm [shape: bf16[2,16,128], index: 1, kind: input, shape index: {}]
  %s2 = inlined_call_operand.hbm [shape: f32[2,16,128], index: 2, kind: input, shape index: {}]
  %s3 = inlined_call_operand.hbm [shape: bf16[128,128], index: 3, kind: input, shape index: {}]
  %s4 = inlined_call_operand.vmem [shape: f32[1,128], index: 4, kind: input, shape index: {}]
  %s5 = inlined_call_operand.hbm [shape: bf16[128,256], index: 5, kind: input, shape index: {}]
  %s6 = inlined_call_operand.vmem [shape: f32[1,256], index: 6, kind: input, shape index: {}]
  %s7 = inlined_call_operand.hbm [shape: bf16[128,128], index: 7, kind: input, shape index: {}]
  %s8 = inlined_call_operand.vmem [shape: f32[1,128], index: 8, kind: input, shape index: {}]
  %s9 = inlined_call_operand.vmem [shape: f32[1,128], index: 9, kind: input, shape index: {}]
  %s10 = inlined_call_operand.vmem [shape: f32[1,128], index: 10, kind: input, shape index: {}]
  %s11 = inlined_call_operand.hbm [shape: bf16[128,256], index: 11, kind: input, shape index: {}]
  %s12 = inlined_call_operand.vmem [shape: f32[1,256], index: 12, kind: input, shape index: {}]
  %s13 = inlined_call_operand.hbm [shape: bf16[256,128], index: 13, kind: input, shape index: {}]
  %s14 = inlined_call_operand.vmem [shape: f32[1,128], index: 14, kind: input, shape index: {}]
  %s15 = inlined_call_operand.vmem [shape: f32[1,128], index: 15, kind: input, shape index: {}]
  %s16 = inlined_call_operand.vmem [shape: f32[1,128], index: 16, kind: input, shape index: {}]
  %s17 = inlined_call_operand.hbm [shape: f32[2,16,128], index: 17, kind: output, shape index: {}]
  %s18 = sld [smem:[#allocation0]]
  $region129: #{tpu_custom_call.1} parent=0
    _
  %s20 = ssub.s32 1, %s18
  %s21 = scalar_select 0, %s20, %s18
  %23 = dma.hbm_to_smem %s0, 16, [#allocation6], [#allocation5]
  %24 = dma.done [#allocation5], 16
  %25 = sfence
  $region1: #{tpu_custom_call.1} parent=0
    #allocation7 [shape = 'u8[8192]{0}', space=vmem, size = 0x2000, scoped, tag = 'input window, operand 1']
    #allocation8 [shape = 's32[2]{0}', space=sflag, size = 0x8, scoped, tag = 'scoped memory for tpu_custom_call.1']
    #allocation9 [shape = 's32[2]{0}', space=sflag, size = 0x8, scoped, tag = 'scoped memory for tpu_custom_call.1']
    #allocation10 [shape = 'u8[16384]{0}', space=vmem, size = 0x4000, scoped, tag = 'input window, operand 2']
    #allocation11 [shape = 's32[2]{0}', space=sflag, size = 0x8, scoped, tag = 'scoped memory for tpu_custom_call.1']
    #allocation12 [shape = 'u8[32768]{0}', space=vmem, size = 0x8000, scoped, tag = 'input window, operand 3, single buffered']
    #allocation13 [shape = 'u8[65536]{0}', space=vmem, size = 0x10000, scoped, tag = 'input window, operand 5, single buffered']
    #allocation14 [shape = 's32[1]{0}', space=sflag, size = 0x4, scoped, tag = 'scoped memory for tpu_custom_call.1']
    #allocation15 [shape = 'u8[32768]{0}', space=vmem, size = 0x8000, scoped, tag = 'input window, operand 7, single buffered']
    #allocation16 [shape = 'u8[65536]{0}', space=vmem, size = 0x10000, scoped, tag = 'input window, operand 11, single buffered']
    #allocation17 [shape = 's32[1]{0}', space=sflag, size = 0x4, scoped, tag = 'scoped memory for tpu_custom_call.1']
    #allocation18 [shape = 'u8[65536]{0}', space=vmem, size = 0x10000, scoped, tag = 'input window, operand 13, single buffered']
    #allocation19 [shape = 'u8[16384]{0}', space=vmem, size = 0x4000, scoped, tag = 'output window, operand 0']
    %26 = vsyncpa [#allocation8], 0
    %s27 = scalar_lea.sflag [#allocation8], 1
    %28 = vsyncpa %s27, 0
    %29 = vsyncpa [#allocation11], 0
    %s30 = scalar_lea.sflag [#allocation11], 1
    %31 = vsyncpa %s30, 0
    %32 = vsyncpa [#allocation14], 0
    %33 = vsyncpa [#allocation17], 0
    %34 = vsyncpa [#allocation9], 0
    %s35 = scalar_lea.sflag [#allocation9], 1
    %36 = vsyncpa %s35, 0
    loop: start=0, step=1, limit=4
    $region2: #{tpu_custom_call.1} parent=1 // loop_pre_header
      _
    $region3: #{tpu_custom_call.1} parent=1 // loop_header
      %s38 = sphi 0, %s42
      %p39 = scmp.ge.s32.totalorder %s38, 4
      %s45 = sphi 0, %s57
      %s46 = sphi 0, %s53
      %s47 = sphi 0, %s45
      %s48 = sphi 0, %s46
      %s49 = sphi 0, %s47
      %s50 = sphi 0, %s48
      %s60 = sphi 0, %s62
      %s63 = sphi 0, %s60
      %s64 = sphi 0, %s63
      %s80 = sphi 0, %s64
      %s88 = sphi 0, %s90
      %s91 = sphi 0, %s88
      %s92 = sphi 0, %s91
      %s108 = sphi 0, %s92
      %s112 = sphi 0, %s112
      %s114 = sphi 0, %s112
      %s115 = sphi 0, %s114
      %s129 = sphi 0, %s115
      %s133 = sphi 0, %s133
      %s135 = sphi 0, %s133
      %s136 = sphi 0, %s135
      %s150 = sphi 0, %s136
      %s154 = sphi 0, %s154
      %s156 = sphi 0, %s154
      %s157 = sphi 0, %s156
      %s171 = sphi 0, %s157
      %s175 = sphi 0, %s175
      %s177 = sphi 0, %s175
      %s178 = sphi 0, %s177
      %s192 = sphi 0, %s178
      %s196 = sphi 0, %s196
      %s198 = sphi 0, %s196
      %s199 = sphi 0, %s198
      %s213 = sphi 0, %s199
      %s217 = sphi 0, %s217
      %s219 = sphi 0, %s217
      %s220 = sphi 0, %s219
      %s234 = sphi 0, %s220
      %s238 = sphi 0, %s238
      %s240 = sphi 0, %s238
      %s241 = sphi 0, %s240
      %s255 = sphi 0, %s241
      %s259 = sphi 0, %s259
      %s261 = sphi 0, %s259
      %s262 = sphi 0, %s261
      %s276 = sphi 0, %s262
      %s280 = sphi 0, %s280
      %s282 = sphi 0, %s280
      %s283 = sphi 0, %s282
      %s297 = sphi 0, %s283
      %s301 = sphi 0, %s301
      %s303 = sphi 0, %s301
      %s304 = sphi 0, %s303
      %s318 = sphi 0, %s304
      %s322 = sphi 0, %s322
      %s324 = sphi 0, %s322
      %s325 = sphi 0, %s324
      %s339 = sphi 0, %s325
      %s343 = sphi 0, %s343
      %s345 = sphi 0, %s343
      %s346 = sphi 0, %s345
      %s360 = sphi 0, %s346
      %s364 = sphi 0, %s364
      %s366 = sphi 0, %s364
      %s367 = sphi 0, %s366
      %s381 = sphi 0, %s367
      %s385 = sphi 0, %s385
      %s387 = sphi 0, %s385
      %s388 = sphi 0, %s387
      %s402 = sphi 0, %s388
      %s410 = sphi 0, %s412
      %s413 = sphi 0, %s410
      %s414 = sphi 0, %s413
      %s430 = sphi 0, %s414
    $region4: #{tpu_custom_call.1} parent=1 // loop_header_branch
      %41 = sbr.rel (%p39) target = $region8
    $region5: #{tpu_custom_call.1} parent=1 // loop_body
      %s43 = ssub.s32 %s38, 1
      %s44 = ssub.s32 %s38, 2
      %s51 = sadd.s32 1, %s46
      %p52 = scmp.ge.s32.totalorder %s51, 1
      %s53 = scalar_select %p52, 0, %s51
      %s54 = sadd.s32 1, %s45
      %s55 = scalar_select %p52, %s54, %s45
      %p56 = scmp.ge.s32.totalorder %s55, 2
      %s57 = scalar_select %p56, 0, %s55
      %s58 = ssub.s32 %s45, %s57
      %p59 = scmp.eq.s32.totalorder %s58, 0
      %s61 = sadd.s32 %s60, 1
      %s62 = scalar_select %p59, %s60, %s61
      %p65 = pneg %p59
      %p66 = scmp.eq.s32.totalorder %s38, 1
      %p67 = por %p65, %p66
      %p68 = scmp.ne.s32.totalorder %s60, %s63
      %p69 = scmp.eq.s32.totalorder %s38, 0
      %p70 = por %p68, %p69
      %p71 = scmp.ne.s32.totalorder %s60, %s63
      %p72 = scmp.eq.s32.totalorder %s43, 1
      %p73 = por %p71, %p72
      %p74 = scmp.ne.s32.totalorder %s63, %s64
      %p75 = scmp.eq.s32.totalorder %s43, 0
      %p76 = por %p74, %p75
      %p77 = scmp.ne.s32.totalorder %s63, %s64
      %p78 = scmp.eq.s32.totalorder %s44, 1
      %p79 = por %p77, %p78
      %p81 = scmp.ne.s32.totalorder %s64, %s80
      %p82 = scmp.eq.s32.totalorder %s44, 0
      %p83 = por %p81, %p82
      %s84 = ssub.s32 %s45, %s57
      %s85 = ssub.s32 %s46, %s53
      %s86 = sor.u32 %s84, %s85
      %p87 = scmp.eq.s32.totalorder %s86, 0
      %s89 = sadd.s32 %s88, 1
      %s90 = scalar_select %p87, %s88, %s89
      %p93 = pneg %p87
      %p94 = scmp.eq.s32.totalorder %s38, 1
      %p95 = por %p93, %p94
      %p96 = scmp.ne.s32.totalorder %s88, %s91
      %p97 = scmp.eq.s32.totalorder %s38, 0
      %p98 = por %p96, %p97
      %p99 = scmp.ne.s32.totalorder %s88, %s91
      %p100 = scmp.eq.s32.totalorder %s43, 1
      %p101 = por %p99, %p100
      %p102 = scmp.ne.s32.totalorder %s91, %s92
      %p103 = scmp.eq.s32.totalorder %s43, 0
      %p104 = por %p102, %p103
      %p105 = scmp.ne.s32.totalorder %s91, %s92
      %p106 = scmp.eq.s32.totalorder %s44, 1
      %p107 = por %p105, %p106
      %p109 = scmp.ne.s32.totalorder %s92, %s108
      %p110 = scmp.eq.s32.totalorder %s44, 0
      %p111 = por %p109, %p110
      %s113 = sadd.s32 %s112, 1
      %p116 = scmp.eq.s32.totalorder %s38, 1
      %p117 = scmp.ne.s32.totalorder %s112, %s114
      %p118 = scmp.eq.s32.totalorder %s38, 0
      %p119 = por %p117, %p118
      %p120 = scmp.ne.s32.totalorder %s112, %s114
      %p121 = scmp.eq.s32.totalorder %s43, 1
      %p122 = por %p120, %p121
      %p123 = scmp.ne.s32.totalorder %s114, %s115
      %p124 = scmp.eq.s32.totalorder %s43, 0
      %p125 = por %p123, %p124
      %p126 = scmp.ne.s32.totalorder %s114, %s115
      %p127 = scmp.eq.s32.totalorder %s44, 1
      %p128 = por %p126, %p127
      %p130 = scmp.ne.s32.totalorder %s115, %s129
      %p131 = scmp.eq.s32.totalorder %s44, 0
      %p132 = por %p130, %p131
      %s134 = sadd.s32 %s133, 1
      %p137 = scmp.eq.s32.totalorder %s38, 1
      %p138 = scmp.ne.s32.totalorder %s133, %s135
      %p139 = scmp.eq.s32.totalorder %s38, 0
      %p140 = por %p138, %p139
      %p141 = scmp.ne.s32.totalorder %s133, %s135
      %p142 = scmp.eq.s32.totalorder %s43, 1
      %p143 = por %p141, %p142
      %p144 = scmp.ne.s32.totalorder %s135, %s136
      %p145 = scmp.eq.s32.totalorder %s43, 0
      %p146 = por %p144, %p145
      %p147 = scmp.ne.s32.totalorder %s135, %s136
      %p148 = scmp.eq.s32.totalorder %s44, 1
      %p149 = por %p147, %p148
      %p151 = scmp.ne.s32.totalorder %s136, %s150
      %p152 = scmp.eq.s32.totalorder %s44, 0
      %p153 = por %p151, %p152
      %s155 = sadd.s32 %s154, 1
      %p158 = scmp.eq.s32.totalorder %s38, 1
      %p159 = scmp.ne.s32.totalorder %s154, %s156
      %p160 = scmp.eq.s32.totalorder %s38, 0
      %p161 = por %p159, %p160
      %p162 = scmp.ne.s32.totalorder %s154, %s156
      %p163 = scmp.eq.s32.totalorder %s43, 1
      %p164 = por %p162, %p163
      %p165 = scmp.ne.s32.totalorder %s156, %s157
      %p166 = scmp.eq.s32.totalorder %s43, 0
      %p167 = por %p165, %p166
      %p168 = scmp.ne.s32.totalorder %s156, %s157
      %p169 = scmp.eq.s32.totalorder %s44, 1
      %p170 = por %p168, %p169
      %p172 = scmp.ne.s32.totalorder %s157, %s171
      %p173 = scmp.eq.s32.totalorder %s44, 0
      %p174 = por %p172, %p173
      %s176 = sadd.s32 %s175, 1
      %p179 = scmp.eq.s32.totalorder %s38, 1
      %p180 = scmp.ne.s32.totalorder %s175, %s177
      %p181 = scmp.eq.s32.totalorder %s38, 0
      %p182 = por %p180, %p181
      %p183 = scmp.ne.s32.totalorder %s175, %s177
      %p184 = scmp.eq.s32.totalorder %s43, 1
      %p185 = por %p183, %p184
      %p186 = scmp.ne.s32.totalorder %s177, %s178
      %p187 = scmp.eq.s32.totalorder %s43, 0
      %p188 = por %p186, %p187
      %p189 = scmp.ne.s32.totalorder %s177, %s178
      %p190 = scmp.eq.s32.totalorder %s44, 1
      %p191 = por %p189, %p190
      %p193 = scmp.ne.s32.totalorder %s178, %s192
      %p194 = scmp.eq.s32.totalorder %s44, 0
      %p195 = por %p193, %p194
      %s197 = sadd.s32 %s196, 1
      %p200 = scmp.eq.s32.totalorder %s38, 1
      %p201 = scmp.ne.s32.totalorder %s196, %s198
      %p202 = scmp.eq.s32.totalorder %s38, 0
      %p203 = por %p201, %p202
      %p204 = scmp.ne.s32.totalorder %s196, %s198
      %p205 = scmp.eq.s32.totalorder %s43, 1
      %p206 = por %p204, %p205
      %p207 = scmp.ne.s32.totalorder %s198, %s199
      %p208 = scmp.eq.s32.totalorder %s43, 0
      %p209 = por %p207, %p208
      %p210 = scmp.ne.s32.totalorder %s198, %s199
      %p211 = scmp.eq.s32.totalorder %s44, 1
      %p212 = por %p210, %p211
      %p214 = scmp.ne.s32.totalorder %s199, %s213
      %p215 = scmp.eq.s32.totalorder %s44, 0
      %p216 = por %p214, %p215
      %s218 = sadd.s32 %s217, 1
      %p221 = scmp.eq.s32.totalorder %s38, 1
      %p222 = scmp.ne.s32.totalorder %s217, %s219
      %p223 = scmp.eq.s32.totalorder %s38, 0
      %p224 = por %p222, %p223
      %p225 = scmp.ne.s32.totalorder %s217, %s219
      %p226 = scmp.eq.s32.totalorder %s43, 1
      %p227 = por %p225, %p226
      %p228 = scmp.ne.s32.totalorder %s219, %s220
      %p229 = scmp.eq.s32.totalorder %s43, 0
      %p230 = por %p228, %p229
      %p231 = scmp.ne.s32.totalorder %s219, %s220
      %p232 = scmp.eq.s32.totalorder %s44, 1
      %p233 = por %p231, %p232
      %p235 = scmp.ne.s32.totalorder %s220, %s234
      %p236 = scmp.eq.s32.totalorder %s44, 0
      %p237 = por %p235, %p236
      %s239 = sadd.s32 %s238, 1
      %p242 = scmp.eq.s32.totalorder %s38, 1
      %p243 = scmp.ne.s32.totalorder %s238, %s240
      %p244 = scmp.eq.s32.totalorder %s38, 0
      %p245 = por %p243, %p244
      %p246 = scmp.ne.s32.totalorder %s238, %s240
      %p247 = scmp.eq.s32.totalorder %s43, 1
      %p248 = por %p246, %p247
      %p249 = scmp.ne.s32.totalorder %s240, %s241
      %p250 = scmp.eq.s32.totalorder %s43, 0
      %p251 = por %p249, %p250
      %p252 = scmp.ne.s32.totalorder %s240, %s241
      %p253 = scmp.eq.s32.totalorder %s44, 1
      %p254 = por %p252, %p253
      %p256 = scmp.ne.s32.totalorder %s241, %s255
      %p257 = scmp.eq.s32.totalorder %s44, 0
      %p258 = por %p256, %p257
      %s260 = sadd.s32 %s259, 1
      %p263 = scmp.eq.s32.totalorder %s38, 1
      %p264 = scmp.ne.s32.totalorder %s259, %s261
      %p265 = scmp.eq.s32.totalorder %s38, 0
      %p266 = por %p264, %p265
      %p267 = scmp.ne.s32.totalorder %s259, %s261
      %p268 = scmp.eq.s32.totalorder %s43, 1
      %p269 = por %p267, %p268
      %p270 = scmp.ne.s32.totalorder %s261, %s262
      %p271 = scmp.eq.s32.totalorder %s43, 0
      %p272 = por %p270, %p271
      %p273 = scmp.ne.s32.totalorder %s261, %s262
      %p274 = scmp.eq.s32.totalorder %s44, 1
      %p275 = por %p273, %p274
      %p277 = scmp.ne.s32.totalorder %s262, %s276
      %p278 = scmp.eq.s32.totalorder %s44, 0
      %p279 = por %p277, %p278
      %s281 = sadd.s32 %s280, 1
      %p284 = scmp.eq.s32.totalorder %s38, 1
      %p285 = scmp.ne.s32.totalorder %s280, %s282
      %p286 = scmp.eq.s32.totalorder %s38, 0
      %p287 = por %p285, %p286
      %p288 = scmp.ne.s32.totalorder %s280, %s282
      %p289 = scmp.eq.s32.totalorder %s43, 1
      %p290 = por %p288, %p289
      %p291 = scmp.ne.s32.totalorder %s282, %s283
      %p292 = scmp.eq.s32.totalorder %s43, 0
      %p293 = por %p291, %p292
      %p294 = scmp.ne.s32.totalorder %s282, %s283
      %p295 = scmp.eq.s32.totalorder %s44, 1
      %p296 = por %p294, %p295
      %p298 = scmp.ne.s32.totalorder %s283, %s297
      %p299 = scmp.eq.s32.totalorder %s44, 0
      %p300 = por %p298, %p299
      %s302 = sadd.s32 %s301, 1
      %p305 = scmp.eq.s32.totalorder %s38, 1
      %p306 = scmp.ne.s32.totalorder %s301, %s303
      %p307 = scmp.eq.s32.totalorder %s38, 0
      %p308 = por %p306, %p307
      %p309 = scmp.ne.s32.totalorder %s301, %s303
      %p310 = scmp.eq.s32.totalorder %s43, 1
      %p311 = por %p309, %p310
      %p312 = scmp.ne.s32.totalorder %s303, %s304
      %p313 = scmp.eq.s32.totalorder %s43, 0
      %p314 = por %p312, %p313
      %p315 = scmp.ne.s32.totalorder %s303, %s304
      %p316 = scmp.eq.s32.totalorder %s44, 1
      %p317 = por %p315, %p316
      %p319 = scmp.ne.s32.totalorder %s304, %s318
      %p320 = scmp.eq.s32.totalorder %s44, 0
      %p321 = por %p319, %p320
      %s323 = sadd.s32 %s322, 1
      %p326 = scmp.eq.s32.totalorder %s38, 1
      %p327 = scmp.ne.s32.totalorder %s322, %s324
      %p328 = scmp.eq.s32.totalorder %s38, 0
      %p329 = por %p327, %p328
      %p330 = scmp.ne.s32.totalorder %s322, %s324
      %p331 = scmp.eq.s32.totalorder %s43, 1
      %p332 = por %p330, %p331
      %p333 = scmp.ne.s32.totalorder %s324, %s325
      %p334 = scmp.eq.s32.totalorder %s43, 0
      %p335 = por %p333, %p334
      %p336 = scmp.ne.s32.totalorder %s324, %s325
      %p337 = scmp.eq.s32.totalorder %s44, 1
      %p338 = por %p336, %p337
      %p340 = scmp.ne.s32.totalorder %s325, %s339
      %p341 = scmp.eq.s32.totalorder %s44, 0
      %p342 = por %p340, %p341
      %s344 = sadd.s32 %s343, 1
      %p347 = scmp.eq.s32.totalorder %s38, 1
      %p348 = scmp.ne.s32.totalorder %s343, %s345
      %p349 = scmp.eq.s32.totalorder %s38, 0
      %p350 = por %p348, %p349
      %p351 = scmp.ne.s32.totalorder %s343, %s345
      %p352 = scmp.eq.s32.totalorder %s43, 1
      %p353 = por %p351, %p352
      %p354 = scmp.ne.s32.totalorder %s345, %s346
      %p355 = scmp.eq.s32.totalorder %s43, 0
      %p356 = por %p354, %p355
      %p357 = scmp.ne.s32.totalorder %s345, %s346
      %p358 = scmp.eq.s32.totalorder %s44, 1
      %p359 = por %p357, %p358
      %p361 = scmp.ne.s32.totalorder %s346, %s360
      %p362 = scmp.eq.s32.totalorder %s44, 0
      %p363 = por %p361, %p362
      %s365 = sadd.s32 %s364, 1
      %p368 = scmp.eq.s32.totalorder %s38, 1
      %p369 = scmp.ne.s32.totalorder %s364, %s366
      %p370 = scmp.eq.s32.totalorder %s38, 0
      %p371 = por %p369, %p370
      %p372 = scmp.ne.s32.totalorder %s364, %s366
      %p373 = scmp.eq.s32.totalorder %s43, 1
      %p374 = por %p372, %p373
      %p375 = scmp.ne.s32.totalorder %s366, %s367
      %p376 = scmp.eq.s32.totalorder %s43, 0
      %p377 = por %p375, %p376
      %p378 = scmp.ne.s32.totalorder %s366, %s367
      %p379 = scmp.eq.s32.totalorder %s44, 1
      %p380 = por %p378, %p379
      %p382 = scmp.ne.s32.totalorder %s367, %s381
      %p383 = scmp.eq.s32.totalorder %s44, 0
      %p384 = por %p382, %p383
      %s386 = sadd.s32 %s385, 1
      %p389 = scmp.eq.s32.totalorder %s38, 1
      %p390 = scmp.ne.s32.totalorder %s385, %s387
      %p391 = scmp.eq.s32.totalorder %s38, 0
      %p392 = por %p390, %p391
      %p393 = scmp.ne.s32.totalorder %s385, %s387
      %p394 = scmp.eq.s32.totalorder %s43, 1
      %p395 = por %p393, %p394
      %p396 = scmp.ne.s32.totalorder %s387, %s388
      %p397 = scmp.eq.s32.totalorder %s43, 0
      %p398 = por %p396, %p397
      %p399 = scmp.ne.s32.totalorder %s387, %s388
      %p400 = scmp.eq.s32.totalorder %s44, 1
      %p401 = por %p399, %p400
      %p403 = scmp.ne.s32.totalorder %s388, %s402
      %p404 = scmp.eq.s32.totalorder %s44, 0
      %p405 = por %p403, %p404
      %s406 = ssub.s32 %s45, %s57
      %s407 = ssub.s32 %s46, %s53
      %s408 = sor.u32 %s406, %s407
      %p409 = scmp.eq.s32.totalorder %s408, 0
      %s411 = sadd.s32 %s410, 1
      %s412 = scalar_select %p409, %s410, %s411
      %p415 = pneg %p409
      %p416 = scmp.eq.s32.totalorder %s38, 1
      %p417 = por %p415, %p416
      %p418 = scmp.ne.s32.totalorder %s410, %s413
      %p419 = scmp.eq.s32.totalorder %s38, 0
      %p420 = por %p418, %p419
      %p421 = scmp.ne.s32.totalorder %s410, %s413
      %p422 = scmp.eq.s32.totalorder %s43, 1
      %p423 = por %p421, %p422
      %p424 = scmp.ne.s32.totalorder %s413, %s414
      %p425 = scmp.eq.s32.totalorder %s43, 0
      %p426 = por %p424, %p425
      %p427 = scmp.ne.s32.totalorder %s413, %s414
      %p428 = scmp.eq.s32.totalorder %s44, 1
      %p429 = por %p427, %p428
      %p431 = scmp.ne.s32.totalorder %s414, %s430
      %p432 = scmp.eq.s32.totalorder %s44, 0
      %p433 = por %p431, %p432
      %p434 = scmp.le.s32.totalorder 1, %s38
      %p435 = scmp.lt.s32.totalorder %s38, 3
      %p436 = pnand %p434, %p435
      %p437 = pneg %p436
      // Predicated region
      $region9: #{tpu_custom_call.1} parent=5 // pred_check
        _
      $region10: #{tpu_custom_call.1} parent=5 // pred_check_branch
        %439 = sbr.rel (%p436) target = $region12
      $region11: #{tpu_custom_call.1} parent=5 // pred_region
        %s440 = ssub.s32 %s38, 1
        // Predicated region
        $region13: #{tpu_custom_call.1} parent=11 // pred_check
          %p441 = pneg %p125
        $region14: #{tpu_custom_call.1} parent=11 // pred_check_branch
          %443 = sbr.rel (%p441) target = $region16
        $region15: #{tpu_custom_call.1} parent=11 // pred_region
          %s445 = ssub.s32 1024, 1024
          %446 = vsyncadd [#allocation11], %s445
          %s447 = sshll.u32 [#allocation12], 4
          %s448 = int_to_ptr.vmem [resolvable:$true] %s447
          %453 = dma.hbm_to_vmem [thread:$0]  %s3, 1024, %s448, [#allocation11], 64, 64, 4
        $region16: #{tpu_custom_call.1} parent=11 // pred_fallthru
          _
        // Predicated region
        $region17: #{tpu_custom_call.1} parent=11 // pred_check
          %p454 = pneg %p146
        $region18: #{tpu_custom_call.1} parent=11 // pred_check_branch
          %456 = sbr.rel (%p454) target = $region20
        $region19: #{tpu_custom_call.1} parent=11 // pred_region
          _
        $region20: #{tpu_custom_call.1} parent=11 // pred_fallthru
          _
        // Predicated region
        $region21: #{tpu_custom_call.1} parent=11 // pred_check
          %p457 = pneg %p167
        $region22: #{tpu_custom_call.1} parent=11 // pred_check_branch
          %459 = sbr.rel (%p457) target = $region24
        $region23: #{tpu_custom_call.1} parent=11 // pred_region
          %s461 = ssub.s32 2048, 2048
          %462 = vsyncadd [#allocation14], %s461
          %s463 = sshll.u32 [#allocation13], 4
          %s464 = int_to_ptr.vmem [resolvable:$true] %s463
          %469 = dma.hbm_to_vmem [thread:$0]  %s5, 2048, %s464, [#allocation14], 128, 128, 8
        $region24: #{tpu_custom_call.1} parent=11 // pred_fallthru
          _
        // Predicated region
        $region25: #{tpu_custom_call.1} parent=11 // pred_check
          %p470 = pneg %p188
        $region26: #{tpu_custom_call.1} parent=11 // pred_check_branch
          %472 = sbr.rel (%p470) target = $region28
        $region27: #{tpu_custom_call.1} parent=11 // pred_region
          _
        $region28: #{tpu_custom_call.1} parent=11 // pred_fallthru
          _
        // Predicated region
        $region29: #{tpu_custom_call.1} parent=11 // pred_check
          %p473 = pneg %p209
        $region30: #{tpu_custom_call.1} parent=11 // pred_check_branch
          %475 = sbr.rel (%p473) target = $region32
        $region31: #{tpu_custom_call.1} parent=11 // pred_region
          %s477 = ssub.s32 1024, 1024
          %478 = vsyncadd [#allocation14], %s477
          %s479 = sshll.u32 [#allocation15], 4
          %s480 = int_to_ptr.vmem [resolvable:$true] %s479
          %485 = dma.hbm_to_vmem [thread:$0]  %s7, 1024, %s480, [#allocation14], 64, 64, 4
        $region32: #{tpu_custom_call.1} parent=11 // pred_fallthru
          _
        // Predicated region
        $region33: #{tpu_custom_call.1} parent=11 // pred_check
          %p486 = pneg %p230
        $region34: #{tpu_custom_call.1} parent=11 // pred_check_branch
          %488 = sbr.rel (%p486) target = $region36
        $region35: #{tpu_custom_call.1} parent=11 // pred_region
          _
        $region36: #{tpu_custom_call.1} parent=11 // pred_fallthru
          _
        // Predicated region
        $region37: #{tpu_custom_call.1} parent=11 // pred_check
          %p489 = pneg %p251
        $region38: #{tpu_custom_call.1} parent=11 // pred_check_branch
          %491 = sbr.rel (%p489) target = $region40
        $region39: #{tpu_custom_call.1} parent=11 // pred_region
          _
        $region40: #{tpu_custom_call.1} parent=11 // pred_fallthru
          _
        // Predicated region
        $region41: #{tpu_custom_call.1} parent=11 // pred_check
          %p492 = pneg %p272
        $region42: #{tpu_custom_call.1} parent=11 // pred_check_branch
          %494 = sbr.rel (%p492) target = $region44
        $region43: #{tpu_custom_call.1} parent=11 // pred_region
          _
        $region44: #{tpu_custom_call.1} parent=11 // pred_fallthru
          _
        // Predicated region
        $region45: #{tpu_custom_call.1} parent=11 // pred_check
          %p495 = pneg %p293
        $region46: #{tpu_custom_call.1} parent=11 // pred_check_branch
          %497 = sbr.rel (%p495) target = $region48
        $region47: #{tpu_custom_call.1} parent=11 // pred_region
          %s499 = ssub.s32 2048, 2048
          %500 = vsyncadd [#allocation17], %s499
          %s501 = sshll.u32 [#allocation16], 4
          %s502 = int_to_ptr.vmem [resolvable:$true] %s501
          %507 = dma.hbm_to_vmem [thread:$0]  %s11, 2048, %s502, [#allocation17], 128, 128, 8
        $region48: #{tpu_custom_call.1} parent=11 // pred_fallthru
          _
        // Predicated region
        $region49: #{tpu_custom_call.1} parent=11 // pred_check
          %p508 = pneg %p314
        $region50: #{tpu_custom_call.1} parent=11 // pred_check_branch
          %510 = sbr.rel (%p508) target = $region52
        $region51: #{tpu_custom_call.1} parent=11 // pred_region
          _
        $region52: #{tpu_custom_call.1} parent=11 // pred_fallthru
          _
        // Predicated region
        $region53: #{tpu_custom_call.1} parent=11 // pred_check
          %p511 = pneg %p335
        $region54: #{tpu_custom_call.1} parent=11 // pred_check_branch
          %513 = sbr.rel (%p511) target = $region56
        $region55: #{tpu_custom_call.1} parent=11 // pred_region
          %s515 = ssub.s32 2048, 2048
          %516 = vsyncadd [#allocation17], %s515
          %s517 = sshll.u32 [#allocation18], 4
          %s518 = int_to_ptr.vmem [resolvable:$true] %s517
          %523 = dma.hbm_to_vmem [thread:$0]  %s13, 2048, %s518, [#allocation17], 64, 64, 4
        $region56: #{tpu_custom_call.1} parent=11 // pred_fallthru
          _
        // Predicated region
        $region57: #{tpu_custom_call.1} parent=11 // pred_check
          %p524 = pneg %p356
        $region58: #{tpu_custom_call.1} parent=11 // pred_check_branch
          %526 = sbr.rel (%p524) target = $region60
        $region59: #{tpu_custom_call.1} parent=11 // pred_region
          _
        $region60: #{tpu_custom_call.1} parent=11 // pred_fallthru
          _
        // Predicated region
        $region61: #{tpu_custom_call.1} parent=11 // pred_check
          %p527 = pneg %p377
        $region62: #{tpu_custom_call.1} parent=11 // pred_check_branch
          %529 = sbr.rel (%p527) target = $region64
        $region63: #{tpu_custom_call.1} parent=11 // pred_region
          _
        $region64: #{tpu_custom_call.1} parent=11 // pred_fallthru
          _
        // Predicated region
        $region65: #{tpu_custom_call.1} parent=11 // pred_check
          %p530 = pneg %p398
        $region66: #{tpu_custom_call.1} parent=11 // pred_check_branch
          %532 = sbr.rel (%p530) target = $region68
        $region67: #{tpu_custom_call.1} parent=11 // pred_region
          _
        $region68: #{tpu_custom_call.1} parent=11 // pred_fallthru
          _
      $region12: #{tpu_custom_call.1} parent=5 // pred_fallthru
        _
      %p533 = scmp.lt.s32.totalorder %s38, 2
      // Predicated region
      $region69: #{tpu_custom_call.1} parent=5 // pred_check
        %p534 = pneg %p533
      $region70: #{tpu_custom_call.1} parent=5 // pred_check_branch
        %536 = sbr.rel (%p534) target = $region72
      $region71: #{tpu_custom_call.1} parent=5 // pred_region
        // Predicated region
        $region73: #{tpu_custom_call.1} parent=71 // pred_check
          %p537 = pneg %p70
        $region74: #{tpu_custom_call.1} parent=71 // pred_check_branch
          %539 = sbr.rel (%p537) target = $region76
        $region75: #{tpu_custom_call.1} parent=71 // pred_region
          %s540 = sand.u32 %s60, 1
          %s541 = scalar_lea.sflag [#allocation8], %s540
          %s542 = sand.u32 %s60, 1
          %s543 = smul.addr %s542, 8
          %s544 = scalar_lea.vmem [#allocation7], %s543
          %s546 = ssub.s32 128, 128
          %547 = vsyncadd %s541, %s546
          %s548 = smul.addr %s45, 2
          %s549 = smul.addr %s548, 64
          %s550 = scalar_lea.hbm %s1, %s549
          %s551 = sshll.u32 %s544, 4
          %s552 = int_to_ptr.vmem [resolvable:$true] %s551
          %557 = dma.hbm_to_vmem [thread:$0]  %s550, 128, %s552, %s541, 64, 64, 4
        $region76: #{tpu_custom_call.1} parent=71 // pred_fallthru
          _
        // Predicated region
        $region77: #{tpu_custom_call.1} parent=71 // pred_check
          %p558 = pneg %p98
        $region78: #{tpu_custom_call.1} parent=71 // pred_check_branch
          %560 = sbr.rel (%p558) target = $region80
        $region79: #{tpu_custom_call.1} parent=71 // pred_region
          %s561 = sand.u32 %s38, 1
          %s562 = scalar_lea.sflag [#allocation11], %s561
          %s563 = sand.u32 %s88, 1
          %s564 = smul.addr %s563, 16
          %s565 = scalar_lea.vmem [#allocation10], %s564
          %s566 = smul.u32 2, %s46
          %s568 = ssub.s32 256, 256
          %569 = vsyncadd %s562, %s568
          %s570 = smul.addr %s45, 2
          %s571 = sadd.s32 %s566, %s570
          %s572 = smul.addr %s571, 128
          %s573 = scalar_lea.hbm %s2, %s572
          %s574 = sshll.u32 %s565, 4
          %s575 = int_to_ptr.vmem [resolvable:$true] %s574
          %580 = dma.hbm_to_vmem [thread:$0]  %s573, 256, %s575, %s562, 128, 128, 8
        $region80: #{tpu_custom_call.1} parent=71 // pred_fallthru
          _
      $region72: #{tpu_custom_call.1} parent=5 // pred_fallthru
        _
      %p581 = scmp.le.s32.totalorder 1, %s38
      %p582 = scmp.lt.s32.totalorder %s38, 3
      %p583 = pnand %p581, %p582
      %p584 = pneg %p583
      // Predicated region
      $region81: #{tpu_custom_call.1} parent=5 // pred_check
        _
      $region82: #{tpu_custom_call.1} parent=5 // pred_check_branch
        %586 = sbr.rel (%p583) target = $region84
      $region83: #{tpu_custom_call.1} parent=5 // pred_region
        %s587 = ssub.s32 %s38, 1
        %s588 = sand.u32 %s63, 1
        %s589 = scalar_lea.sflag [#allocation8], %s588
        %s590 = sand.u32 %s63, 1
        %s591 = smul.addr %s590, 8
        %s592 = scalar_lea.vmem [#allocation7], %s591
        // Predicated region
        $region85: #{tpu_custom_call.1} parent=83 // pred_check
          %p593 = pneg %p76
        $region86: #{tpu_custom_call.1} parent=83 // pred_check_branch
          %595 = sbr.rel (%p593) target = $region88
        $region87: #{tpu_custom_call.1} parent=83 // pred_region
          %596 = dma.done %s589, 128
        $region88: #{tpu_custom_call.1} parent=83 // pred_fallthru
          _
        %s597 = sand.u32 %s43, 1
        %s598 = scalar_lea.sflag [#allocation11], %s597
        %s599 = sand.u32 %s91, 1
        %s600 = smul.addr %s599, 16
        %s601 = scalar_lea.vmem [#allocation10], %s600
        // Predicated region
        $region89: #{tpu_custom_call.1} parent=83 // pred_check
          %p602 = pneg %p104
        $region90: #{tpu_custom_call.1} parent=83 // pred_check_branch
          %604 = sbr.rel (%p602) target = $region92
        $region91: #{tpu_custom_call.1} parent=83 // pred_region
          %605 = dma.done %s598, 256
        $region92: #{tpu_custom_call.1} parent=83 // pred_fallthru
          _
        // Predicated region
        $region93: #{tpu_custom_call.1} parent=83 // pred_check
          %p606 = pneg %p125
        $region94: #{tpu_custom_call.1} parent=83 // pred_check_branch
          %608 = sbr.rel (%p606) target = $region96
        $region95: #{tpu_custom_call.1} parent=83 // pred_region
          %609 = dma.done [#allocation11], 1024
        $region96: #{tpu_custom_call.1} parent=83 // pred_fallthru
          _
        // Predicated region
        $region97: #{tpu_custom_call.1} parent=83 // pred_check
          %p610 = pneg %p167
        $region98: #{tpu_custom_call.1} parent=83 // pred_check_branch
          %612 = sbr.rel (%p610) target = $region100
        $region99: #{tpu_custom_call.1} parent=83 // pred_region
          %613 = dma.done [#allocation14], 2048
        $region100: #{tpu_custom_call.1} parent=83 // pred_fallthru
          _
        // Predicated region
        $region101: #{tpu_custom_call.1} parent=83 // pred_check
          %p614 = pneg %p209
        $region102: #{tpu_custom_call.1} parent=83 // pred_check_branch
          %616 = sbr.rel (%p614) target = $region104
        $region103: #{tpu_custom_call.1} parent=83 // pred_region
          %617 = dma.done [#allocation14], 1024
        $region104: #{tpu_custom_call.1} parent=83 // pred_fallthru
          _
        // Predicated region
        $region105: #{tpu_custom_call.1} parent=83 // pred_check
          %p618 = pneg %p293
        $region106: #{tpu_custom_call.1} parent=83 // pred_check_branch
          %620 = sbr.rel (%p618) target = $region108
        $region107: #{tpu_custom_call.1} parent=83 // pred_region
          %621 = dma.done [#allocation17], 2048
        $region108: #{tpu_custom_call.1} parent=83 // pred_fallthru
          _
        // Predicated region
        $region109: #{tpu_custom_call.1} parent=83 // pred_check
          %p622 = pneg %p335
        $region110: #{tpu_custom_call.1} parent=83 // pred_check_branch
          %624 = sbr.rel (%p622) target = $region112
        $region111: #{tpu_custom_call.1} parent=83 // pred_region
          %625 = dma.done [#allocation17], 2048
        $region112: #{tpu_custom_call.1} parent=83 // pred_fallthru
          _
        %s626 = sand.u32 %s63, 1
        %s627 = scalar_lea.sflag [#allocation8], %s626
        %s628 = sand.u32 %s63, 1
        %s629 = smul.addr %s628, 8
        %s630 = scalar_lea.vmem [#allocation7], %s629
        %p631 = pneg %p76
        %p632 = pneg %p73
        %s633 = sand.u32 %s43, 1
        %s634 = scalar_lea.sflag [#allocation11], %s633
        %s635 = sand.u32 %s91, 1
        %s636 = smul.addr %s635, 16
        %s637 = scalar_lea.vmem [#allocation10], %s636
        %p638 = pneg %p104
        %p639 = pneg %p101
        %p640 = pneg %p125
        %p641 = pneg %p122
        %p642 = pneg %p146
        %p643 = pneg %p143
        %p644 = pneg %p167
        %p645 = pneg %p164
        %p646 = pneg %p188
        %p647 = pneg %p185
        %p648 = pneg %p209
        %p649 = pneg %p206
        %p650 = pneg %p230
        %p651 = pneg %p227
        %p652 = pneg %p251
        %p653 = pneg %p248
        %p654 = pneg %p272
        %p655 = pneg %p269
        %p656 = pneg %p293
        %p657 = pneg %p290
        %p658 = pneg %p314
        %p659 = pneg %p311
        %p660 = pneg %p335
        %p661 = pneg %p332
        %p662 = pneg %p356
        %p663 = pneg %p353
        %p664 = pneg %p377
        %p665 = pneg %p374
        %p666 = pneg %p398
        %p667 = pneg %p395
        %p668 = pneg %p426
        %p669 = pneg %p423
        %s670 = sand.u32 %s413, 1
        %s671 = scalar_lea.sflag [#allocation9], %s670
        %s672 = sand.u32 %s413, 1
        %s673 = smul.addr %s672, 16
        %s674 = scalar_lea.vmem [#allocation19], %s673
        %s675 = smul.u32 2, %s48
        %s676 = smul.u32 2, %s48
        %p678 = scmp.eq.s32.totalorder %s48, 0
        // Predicated region
        $region113: #{tpu_custom_call.1} parent=83 // pred_check
          %p679 = pneg %p678
        $region114: #{tpu_custom_call.1} parent=83 // pred_check_branch
          %681 = sbr.rel (%p679) target = $region116
        $region115: #{tpu_custom_call.1} parent=83 // pred_region
          %v682 = vld [vmem:[%s592] sm:$0xf]
          %v683 = vld [vmem:[%s592 + $0x4] sm:$0xf]
          %v684 = vld [vmem:[#allocation13] sm:$0xff]
          %v685 = vld [vmem:[#allocation13 + $0x8] sm:$0xff]
          %v686 = vld [vmem:[#allocation13 + $0x10] sm:$0xff]
          %v687 = vld [vmem:[#allocation13 + $0x18] sm:$0xff]
          %v688 = vld [vmem:[#allocation13 + $0x20] sm:$0xff]
          %v689 = vld [vmem:[#allocation13 + $0x28] sm:$0xff]
          %v690 = vld [vmem:[#allocation13 + $0x30] sm:$0xff]
          %v691 = vld [vmem:[#allocation13 + $0x38] sm:$0xff]
          %v692 = vld [vmem:[#allocation13 + $0x40] sm:$0xff]
          %v693 = vld [vmem:[#allocation13 + $0x48] sm:$0xff]
          %v694 = vld [vmem:[#allocation13 + $0x50] sm:$0xff]
          %v695 = vld [vmem:[#allocation13 + $0x58] sm:$0xff]
          %v696 = vld [vmem:[#allocation13 + $0x60] sm:$0xff]
          %v697 = vld [vmem:[#allocation13 + $0x68] sm:$0xff]
          %v698 = vld [vmem:[#allocation13 + $0x70] sm:$0xff]
          %v699 = vld [vmem:[#allocation13 + $0x78] sm:$0xff]
          %v700 = vld [vmem:[%s6] sm:$0x3]
          %v702 = vlaneseq
          %v703 = vshrl.u32 %v702, 7
          %v704 = vsub.s32 0, %v703
          %v705 = vrot.slane %v700, %v704
          %v706 = vlaneseq
          %v707 = vshrl.u32 %v706, 7
          %v708 = vsub.s32 1, %v707
          %v709 = vrot.slane %v700, %v708
          %v714 = vunpack.c.l.b16 %v682
          %v715 = vunpack.c.l.b16 %v683
          %v716 = vpack.c.b16 %v715, %v714
          %v734 = vunpack.c.l.b16 %v684
          %v735 = vunpack.c.h.b16 %v684
          %v736 = vunpack.c.l.b16 %v685
          %v737 = vunpack.c.h.b16 %v685
          %v738 = vunpack.c.l.b16 %v686
          %v739 = vunpack.c.h.b16 %v686
          %v740 = vunpack.c.l.b16 %v687
          %v741 = vunpack.c.h.b16 %v687
          %v742 = vunpack.c.l.b16 %v688
          %v743 = vunpack.c.h.b16 %v688
          %v744 = vunpack.c.l.b16 %v689
          %v745 = vunpack.c.h.b16 %v689
          %v746 = vunpack.c.l.b16 %v690
          %v747 = vunpack.c.h.b16 %v690
          %v748 = vunpack.c.l.b16 %v691
          %v749 = vunpack.c.h.b16 %v691
          %v750 = vunpack.c.l.b16 %v692
          %v751 = vunpack.c.h.b16 %v692
          %v752 = vunpack.c.l.b16 %v693
          %v753 = vunpack.c.h.b16 %v693
          %v754 = vunpack.c.l.b16 %v694
          %v755 = vunpack.c.h.b16 %v694
          %v756 = vunpack.c.l.b16 %v695
          %v757 = vunpack.c.h.b16 %v695
          %v758 = vunpack.c.l.b16 %v696
          %v759 = vunpack.c.h.b16 %v696
          %v760 = vunpack.c.l.b16 %v697
          %v761 = vunpack.c.h.b16 %v697
          %v762 = vunpack.c.l.b16 %v698
          %v763 = vunpack.c.h.b16 %v698
          %v764 = vunpack.c.l.b16 %v699
          %v765 = vunpack.c.h.b16 %v699
          %v766 = vpack.c.b16 %v736, %v734
          %v767 = vpack.c.b16 %v737, %v735
          %v768 = vpack.c.b16 %v740, %v738
          %v769 = vpack.c.b16 %v741, %v739
          %v770 = vpack.c.b16 %v744, %v742
          %v771 = vpack.c.b16 %v745, %v743
          %v772 = vpack.c.b16 %v748, %v746
          %v773 = vpack.c.b16 %v749, %v747
          %v774 = vpack.c.b16 %v752, %v750
          %v775 = vpack.c.b16 %v753, %v751
          %v776 = vpack.c.b16 %v756, %v754
          %v777 = vpack.c.b16 %v757, %v755
          %v778 = vpack.c.b16 %v760, %v758
          %v779 = vpack.c.b16 %v761, %v759
          %v780 = vpack.c.b16 %v764, %v762
          %v781 = vpack.c.b16 %v765, %v763
          %798 = vmatprep.subr.bf16.mxu0 %v767
          %799 = vmatpush1.bf16.msra.mxu0 %v766
          %800 = vmatprep.subr.bf16.mxu0 %v769
          %801 = vmatpush1.bf16.msra.mxu0 %v768
          %802 = vmatprep.subr.bf16.mxu0 %v771
          %803 = vmatpush1.bf16.msra.mxu0 %v770
          %804 = vmatprep.subr.bf16.mxu0 %v773
          %805 = vmatpush1.bf16.msra.mxu0 %v772
          %806 = vmatprep.subr.bf16.mxu0 %v775
          %807 = vmatpush1.bf16.msra.mxu0 %v774
          %808 = vmatprep.subr.bf16.mxu0 %v777
          %809 = vmatpush1.bf16.msra.mxu0 %v776
          %810 = vmatprep.subr.bf16.mxu0 %v779
          %811 = vmatpush1.bf16.msra.mxu0 %v778
          %812 = vmatprep.subr.bf16.mxu0 %v781
          %813 = vmatpush1.bf16.msra.mxu0 %v780
          %814 = vmatprep.subr.bf16.mxu0 0
          %815 = vmatpush1.bf16.msra.mxu0 0
          %816 = vmatprep.subr.bf16.mxu0 0
          %817 = vmatpush1.bf16.msra.mxu0 0
          %818 = vmatprep.subr.bf16.mxu0 0
          %819 = vmatpush1.bf16.msra.mxu0 0
          %820 = vmatprep.subr.bf16.mxu0 0
          %821 = vmatpush1.bf16.msra.mxu0 0
          %822 = vmatprep.subr.bf16.mxu0 0
          %823 = vmatpush1.bf16.msra.mxu0 0
          %824 = vmatprep.subr.bf16.mxu0 0
          %825 = vmatpush1.bf16.msra.mxu0 0
          %826 = vmatprep.subr.bf16.mxu0 0
          %827 = vmatpush1.bf16.msra.mxu0 0
          %828 = vmatprep.subr.bf16.mxu0 0
          %829 = vmatpush1.bf16.msra.mxu0 0
          %830 = vmatprep.mubr.bf16.mxu0 0
          %831 = vmatmul.mubr.bf16.gmra.mrb[0].mxu0 %v716
          %v832 = vpop.f32.mrb[0].mxu0
          %v833 = vadd.f32 %v705, %v832
          %v834 = vpop.f32.mrb[0].mxu0
          %v835 = vadd.f32 %v709, %v834
          %v836 = vpop.f32.mrb[0].mxu0
          %v837 = vadd.f32 %v705, %v836
          %v838 = vpop.f32.mrb[0].mxu0
          %v839 = vadd.f32 %v709, %v838
          %840 = vdwg.mxu0
          %v841 = vpack.c.bf16 %v837, %v833
          %v842 = vpack.c.bf16 %v839, %v835
          %vm843 = vcmask 261120
          %844 = vst.msk [vmem:[#allocation2] sm:$0xff] %vm843, %v841
          %845 = vst.msk [vmem:[#allocation3] sm:$0xff] %vm843, %v842
          %847 = vrot.lane.b32.xlu0 %v841, 96
          %v848 = vpop.permute.xlu0 %847
          %s850 = scalar_lea.vmem [#allocation2], 8
          %851 = vst.msk [vmem:[%s850] sm:$0xff] %vm843, %v848
          %853 = vrot.lane.b32.xlu0 %v842, 96
          %v854 = vpop.permute.xlu0 %853
          %s856 = scalar_lea.vmem [#allocation3], 8
          %857 = vst.msk [vmem:[%s856] sm:$0xff] %vm843, %v854
          %858 = vrot.lane.b32.xlu0 %v841, 64
          %v859 = vpop.permute.xlu0 %858
          %s861 = scalar_lea.vmem [#allocation2], 16
          %862 = vst.msk [vmem:[%s861] sm:$0xff] %vm843, %v859
          %863 = vrot.lane.b32.xlu0 %v842, 64
          %v864 = vpop.permute.xlu0 %863
          %s866 = scalar_lea.vmem [#allocation3], 16
          %867 = vst.msk [vmem:[%s866] sm:$0xff] %vm843, %v864
          %868 = vrot.lane.b32.xlu0 %v841, 32
          %v869 = vpop.permute.xlu0 %868
          %s871 = scalar_lea.vmem [#allocation2], 24
          %872 = vst.msk [vmem:[%s871] sm:$0xff] %vm843, %v869
          %873 = vrot.lane.b32.xlu0 %v842, 32
          %v874 = vpop.permute.xlu0 %873
          %s876 = scalar_lea.vmem [#allocation3], 24
          %877 = vst.msk [vmem:[%s876] sm:$0xff] %vm843, %v874
        $region116: #{tpu_custom_call.1} parent=83 // pred_fallthru
          _
        %v878 = vld [vmem:[%s601] sm:$0xff]
        %v879 = vld [vmem:[%s601 + $0x8] sm:$0xff]
        %v880 = vpack.c.bf16 %v879, %v878
        %v881 = vld [vmem:[#allocation12] sm:$0xf]
        %v882 = vld [vmem:[#allocation12 + $0x4] sm:$0xf]
        %v883 = vld [vmem:[#allocation12 + $0x8] sm:$0xf]
        %v884 = vld [vmem:[#allocation12 + $0xc] sm:$0xf]
        %v885 = vld [vmem:[#allocation12 + $0x10] sm:$0xf]
        %v886 = vld [vmem:[#allocation12 + $0x14] sm:$0xf]
        %v887 = vld [vmem:[#allocation12 + $0x18] sm:$0xf]
        %v888 = vld [vmem:[#allocation12 + $0x1c] sm:$0xf]
        %v889 = vld [vmem:[#allocation12 + $0x20] sm:$0xf]
        %v890 = vld [vmem:[#allocation12 + $0x24] sm:$0xf]
        %v891 = vld [vmem:[#allocation12 + $0x28] sm:$0xf]
        %v892 = vld [vmem:[#allocation12 + $0x2c] sm:$0xf]
        %v893 = vld [vmem:[#allocation12 + $0x30] sm:$0xf]
        %v894 = vld [vmem:[#allocation12 + $0x34] sm:$0xf]
        %v895 = vld [vmem:[#allocation12 + $0x38] sm:$0xf]
        %v896 = vld [vmem:[#allocation12 + $0x3c] sm:$0xf]
        %v897 = vld [vmem:[%s4] sm:$0x1]
        %v899 = vlaneseq
        %v900 = vshrl.u32 %v899, 7
        %v901 = vsub.s32 0, %v900
        %v902 = vrot.slane %v897, %v901
        %v920 = vunpack.c.l.b16 %v881
        %v921 = vunpack.c.l.b16 %v882
        %v922 = vunpack.c.l.b16 %v883
        %v923 = vunpack.c.l.b16 %v884
        %v924 = vunpack.c.l.b16 %v885
        %v925 = vunpack.c.l.b16 %v886
        %v926 = vunpack.c.l.b16 %v887
        %v927 = vunpack.c.l.b16 %v888
        %v928 = vunpack.c.l.b16 %v889
        %v929 = vunpack.c.l.b16 %v890
        %v930 = vunpack.c.l.b16 %v891
        %v931 = vunpack.c.l.b16 %v892
        %v932 = vunpack.c.l.b16 %v893
        %v933 = vunpack.c.l.b16 %v894
        %v934 = vunpack.c.l.b16 %v895
        %v935 = vunpack.c.l.b16 %v896
        %v936 = vpack.c.b16 %v921, %v920
        %v937 = vpack.c.b16 %v923, %v922
        %v938 = vpack.c.b16 %v925, %v924
        %v939 = vpack.c.b16 %v927, %v926
        %v940 = vpack.c.b16 %v929, %v928
        %v941 = vpack.c.b16 %v931, %v930
        %v942 = vpack.c.b16 %v933, %v932
        %v943 = vpack.c.b16 %v935, %v934
        %952 = vmatprep.subr.bf16.mxu0 0
        %953 = vmatpush1.bf16.msra.mxu0 %v936
        %954 = vmatprep.subr.bf16.mxu0 0
        %955 = vmatpush1.bf16.msra.mxu0 %v937
        %956 = vmatprep.subr.bf16.mxu0 0
        %957 = vmatpush1.bf16.msra.mxu0 %v938
        %958 = vmatprep.subr.bf16.mxu0 0
        %959 = vmatpush1.bf16.msra.mxu0 %v939
        %960 = vmatprep.subr.bf16.mxu0 0
        %961 = vmatpush1.bf16.msra.mxu0 %v940
        %962 = vmatprep.subr.bf16.mxu0 0
        %963 = vmatpush1.bf16.msra.mxu0 %v941
        %964 = vmatprep.subr.bf16.mxu0 0
        %965 = vmatpush1.bf16.msra.mxu0 %v942
        %966 = vmatprep.subr.bf16.mxu0 0
        %967 = vmatpush1.bf16.msra.mxu0 %v943
        %968 = vmatprep.subr.bf16.mxu0 0
        %969 = vmatpush1.bf16.msra.mxu0 0
        %970 = vmatprep.subr.bf16.mxu0 0
        %971 = vmatpush1.bf16.msra.mxu0 0
        %972 = vmatprep.subr.bf16.mxu0 0
        %973 = vmatpush1.bf16.msra.mxu0 0
        %974 = vmatprep.subr.bf16.mxu0 0
        %975 = vmatpush1.bf16.msra.mxu0 0
        %976 = vmatprep.subr.bf16.mxu0 0
        %977 = vmatpush1.bf16.msra.mxu0 0
        %978 = vmatprep.subr.bf16.mxu0 0
        %979 = vmatpush1.bf16.msra.mxu0 0
        %980 = vmatprep.subr.bf16.mxu0 0
        %981 = vmatpush1.bf16.msra.mxu0 0
        %982 = vmatprep.subr.bf16.mxu0 0
        %983 = vmatpush1.bf16.msra.mxu0 0
        %984 = vmatprep.mubr.bf16.mxu0 0
        %985 = vmatmul.mubr.bf16.gmra.mrb[0].mxu0 %v880
        %v986 = vpop.f32.mrb[0].mxu0
        %v987 = vadd.f32 %v902, %v986
        %v988 = vpop.f32.mrb[0].mxu0
        %v989 = vpop.f32.mrb[0].mxu0
        %v990 = vadd.f32 %v902, %v989
        %v991 = vpop.f32.mrb[0].mxu0
        %992 = vdwg.mxu0
        %v993 = vmul.f32 %v987, 0.17677669
        %v994 = vmul.f32 %v990, 0.17677669
        %v995 = vpack.c.bf16 %v994, %v993
        %s996 = sld [smem:[#allocation6 + %s47]]
        %v997 = vlaneseq
        %v998 = vand.u32 %v997, 127
        %v999 = vstv %s996
        %vm1000 = vcmp.lt.s32.totalorder %v998, %v999
        %v1001 = vld [vmem:[#allocation2] sm:$0xff]
        %vm1002 = vcmask 261120
        %v1004 = vsel %vm1002, %v995, 0
        %v1007 = vsel %vm1002, %v1001, 0
        %1009 = vmatprep.subr.bf16.mxu0 0
        %1010 = vmatpush1.bf16.xpose.msra.mxu0 %v1007
        %1011 = vmatprep.subr.bf16.mxu0 0
        %1012 = vmatpush1.bf16.xpose.msra.mxu0 0
        %1013 = vmatprep.subr.bf16.mxu0 0
        %1014 = vmatpush1.bf16.xpose.msra.mxu0 0
        %1015 = vmatprep.subr.bf16.mxu0 0
        %1016 = vmatpush1.bf16.xpose.msra.mxu0 0
        %1017 = vmatprep.subr.bf16.mxu0 0
        %1018 = vmatpush1.bf16.xpose.msra.mxu0 0
        %1019 = vmatprep.subr.bf16.mxu0 0
        %1020 = vmatpush1.bf16.xpose.msra.mxu0 0
        %1021 = vmatprep.subr.bf16.mxu0 0
        %1022 = vmatpush1.bf16.xpose.msra.mxu0 0
        %1023 = vmatprep.subr.bf16.mxu0 0
        %1024 = vmatpush1.bf16.xpose.msra.mxu0 0
        %1025 = vmatprep.subr.bf16.mxu0 0
        %1026 = vmatpush1.bf16.xpose.msra.mxu0 0
        %1027 = vmatprep.subr.bf16.mxu0 0
        %1028 = vmatpush1.bf16.xpose.msra.mxu0 0
        %1029 = vmatprep.subr.bf16.mxu0 0
        %1030 = vmatpush1.bf16.xpose.msra.mxu0 0
        %1031 = vmatprep.subr.bf16.mxu0 0
        %1032 = vmatpush1.bf16.xpose.msra.mxu0 0
        %1033 = vmatprep.subr.bf16.mxu0 0
        %1034 = vmatpush1.bf16.xpose.msra.mxu0 0
        %1035 = vmatprep.subr.bf16.mxu0 0
        %1036 = vmatpush1.bf16.xpose.msra.mxu0 0
        %1037 = vmatprep.subr.bf16.mxu0 0
        %1038 = vmatpush1.bf16.xpose.msra.mxu0 0
        %1039 = vmatprep.subr.bf16.mxu0 0
        %1040 = vmatpush1.bf16.xpose.msra.mxu0 0
        %1041 = vmatprep.mubr.bf16.mxu0 0
        %1042 = vmatmul.mubr.bf16.gmra.mrb[0].mxu0 %v1004
        %v1043 = vpop.f32.mrb[0].mxu0
        %v1044 = vadd.f32 0.0, %v1043
        %v1045 = vpop.f32.mrb[0].mxu0
        %v1046 = vpop.f32.mrb[0].mxu0
        %v1047 = vadd.f32 0.0, %v1046
        %v1048 = vpop.f32.mrb[0].mxu0
        %1049 = vdwg.mxu0
        %v1050 = vsel %vm1000, %v1044, -1e+09
        %v1051 = vsel %vm1000, %v1047, -1e+09
        %vm1052 = vcmask 130048
        %v1053 = vsel %vm1052, %v1050, -inf
        %1054 = vmax.xlane.f32.xlu0 %v1053
        %v1055 = vpop.xlane.xlu0 %1054
        %v1056 = vsel %vm1052, %v1051, -inf
        %1057 = vmax.xlane.f32.xlu0 %v1056
        %v1058 = vpop.xlane.xlu0 %1057
        %v1059 = vsub.f32 %v1050, %v1055
        %v1060 = vsub.f32 %v1051, %v1058
        %v1061 = vmul.f32 %v1059, 1.442695
        %v1062 = vpow.pop %v1061
        %v1063 = vmul.f32 %v1060, 1.442695
        %v1064 = vpow.pop %v1063
        %v1065 = vsel %vm1052, %v1062, 0.0
        %1066 = vadd.xlane.f32.xlu0 %v1065
        %v1067 = vpop.xlane.xlu0 %1066
        %v1068 = vsel %vm1052, %v1064, 0.0
        %1069 = vadd.xlane.f32.xlu0 %v1068
        %v1070 = vpop.xlane.xlu0 %1069
        %v1071 = vrcp.pop %v1067
        %v1072 = vrcp.pop %v1070
        %v1073 = vmul.f32 %v1062, %v1071
        %v1074 = vmul.f32 %v1064, %v1072
        %v1075 = vpack.c.bf16 %v1074, %v1073
        %v1076 = vld [vmem:[#allocation3] sm:$0xff]
        %v1078 = vsel %vm1052, %v1075, 0
        %1080 = vmatprep.subr.bf16.mxu0 0
        %1081 = vmatpush1.bf16.msra.mxu0 %v1076
        %1082 = vmatprep.subr.bf16.mxu0 0
        %1083 = vmatpush1.bf16.msra.mxu0 0
        %1084 = vmatprep.subr.bf16.mxu0 0
        %1085 = vmatpush1.bf16.msra.mxu0 0
        %1086 = vmatprep.subr.bf16.mxu0 0
        %1087 = vmatpush1.bf16.msra.mxu0 0
        %1088 = vmatprep.subr.bf16.mxu0 0
        %1089 = vmatpush1.bf16.msra.mxu0 0
        %1090 = vmatprep.subr.bf16.mxu0 0
        %1091 = vmatpush1.bf16.msra.mxu0 0
        %1092 = vmatprep.subr.bf16.mxu0 0
        %1093 = vmatpush1.bf16.msra.mxu0 0
        %1094 = vmatprep.subr.bf16.mxu0 0
        %1095 = vmatpush1.bf16.msra.mxu0 0
        %1096 = vmatprep.subr.bf16.mxu0 0
        %1097 = vmatpush1.bf16.msra.mxu0 0
        %1098 = vmatprep.subr.bf16.mxu0 0
        %1099 = vmatpush1.bf16.msra.mxu0 0
        %1100 = vmatprep.subr.bf16.mxu0 0
        %1101 = vmatpush1.bf16.msra.mxu0 0
        %1102 = vmatprep.subr.bf16.mxu0 0
        %1103 = vmatpush1.bf16.msra.mxu0 0
        %1104 = vmatprep.subr.bf16.mxu0 0
        %1105 = vmatpush1.bf16.msra.mxu0 0
        %1106 = vmatprep.subr.bf16.mxu0 0
        %1107 = vmatpush1.bf16.msra.mxu0 0
        %1108 = vmatprep.subr.bf16.mxu0 0
        %1109 = vmatpush1.bf16.msra.mxu0 0
        %1110 = vmatprep.subr.bf16.mxu0 0
        %1111 = vmatpush1.bf16.msra.mxu0 0
        %1112 = vmatprep.mubr.bf16.mxu0 0
        %1113 = vmatmul.mubr.bf16.gmra.mrb[0].mxu0 %v1078
        %v1114 = vpop.f32.mrb[0].mxu0
        %v1115 = vadd.f32 0.0, %v1114
        %v1116 = vpop.f32.mrb[0].mxu0
        %v1117 = vpop.f32.mrb[0].mxu0
        %v1118 = vadd.f32 0.0, %v1117
        %v1119 = vpop.f32.mrb[0].mxu0
        %1120 = vdwg.mxu0
        %v1121 = vpack.c.bf16 %v1118, %v1115
        %1122 = vst.msk [vmem:[#allocation4] sm:$0xff] %vm1002, %v1121
        %s1123 = scalar_lea.vmem [#allocation2], 8
        %v1124 = vld [vmem:[%s1123] sm:$0xff]
        %1126 = vrot.lane.b32.xlu0 %v995, 96
        %v1127 = vpop.permute.xlu0 %1126
        %v1129 = vsel %vm1002, %v1127, 0
        %v1132 = vsel %vm1002, %v1124, 0
        %1134 = vmatprep.subr.bf16.mxu0 0
        %1135 = vmatpush1.bf16.xpose.msra.mxu0 %v1132
        %1136 = vmatprep.subr.bf16.mxu0 0
        %1137 = vmatpush1.bf16.xpose.msra.mxu0 0
        %1138 = vmatprep.subr.bf16.mxu0 0
        %1139 = vmatpush1.bf16.xpose.msra.mxu0 0
        %1140 = vmatprep.subr.bf16.mxu0 0
        %1141 = vmatpush1.bf16.xpose.msra.mxu0 0
        %1142 = vmatprep.subr.bf16.mxu0 0
        %1143 = vmatpush1.bf16.xpose.msra.mxu0 0
        %1144 = vmatprep.subr.bf16.mxu0 0
        %1145 = vmatpush1.bf16.xpose.msra.mxu0 0
        %1146 = vmatprep.subr.bf16.mxu0 0
        %1147 = vmatpush1.bf16.xpose.msra.mxu0 0
        %1148 = vmatprep.subr.bf16.mxu0 0
        %1149 = vmatpush1.bf16.xpose.msra.mxu0 0
        %1150 = vmatprep.subr.bf16.mxu0 0
        %1151 = vmatpush1.bf16.xpose.msra.mxu0 0
        %1152 = vmatprep.subr.bf16.mxu0 0
        %1153 = vmatpush1.bf16.xpose.msra.mxu0 0
        %1154 = vmatprep.subr.bf16.mxu0 0
        %1155 = vmatpush1.bf16.xpose.msra.mxu0 0
        %1156 = vmatprep.subr.bf16.mxu0 0
        %1157 = vmatpush1.bf16.xpose.msra.mxu0 0
        %1158 = vmatprep.subr.bf16.mxu0 0
        %1159 = vmatpush1.bf16.xpose.msra.mxu0 0
        %1160 = vmatprep.subr.bf16.mxu0 0
        %1161 = vmatpush1.bf16.xpose.msra.mxu0 0
        %1162 = vmatprep.subr.bf16.mxu0 0
        %1163 = vmatpush1.bf16.xpose.msra.mxu0 0
        %1164 = vmatprep.subr.bf16.mxu0 0
        %1165 = vmatpush1.bf16.xpose.msra.mxu0 0
        %1166 = vmatprep.mubr.bf16.mxu0 0
        %1167 = vmatmul.mubr.bf16.gmra.mrb[0].mxu0 %v1129
        %v1168 = vpop.f32.mrb[0].mxu0
        %v1169 = vadd.f32 0.0, %v1168
        %v1170 = vpop.f32.mrb[0].mxu0
        %v1171 = vpop.f32.mrb[0].mxu0
        %v1172 = vadd.f32 0.0, %v1171
        %v1173 = vpop.f32.mrb[0].mxu0
        %1174 = vdwg.mxu0
        %v1175 = vsel %vm1000, %v1169, -1e+09
        %v1176 = vsel %vm1000, %v1172, -1e+09
        %v1177 = vsel %vm1052, %v1175, -inf
        %1178 = vmax.xlane.f32.xlu0 %v1177
        %v1179 = vpop.xlane.xlu0 %1178
        %v1180 = vsel %vm1052, %v1176, -inf
        %1181 = vmax.xlane.f32.xlu0 %v1180
        %v1182 = vpop.xlane.xlu0 %1181
        %v1183 = vsub.f32 %v1175, %v1179
        %v1184 = vsub.f32 %v1176, %v1182
        %v1185 = vmul.f32 %v1183, 1.442695
        %v1186 = vpow.pop %v1185
        %v1187 = vmul.f32 %v1184, 1.442695
        %v1188 = vpow.pop %v1187
        %v1189 = vsel %vm1052, %v1186, 0.0
        %1190 = vadd.xlane.f32.xlu0 %v1189
        %v1191 = vpop.xlane.xlu0 %1190
        %v1192 = vsel %vm1052, %v1188, 0.0
        %1193 = vadd.xlane.f32.xlu0 %v1192
        %v1194 = vpop.xlane.xlu0 %1193
        %v1195 = vrcp.pop %v1191
        %v1196 = vrcp.pop %v1194
        %v1197 = vmul.f32 %v1186, %v1195
        %v1198 = vmul.f32 %v1188, %v1196
        %v1199 = vpack.c.bf16 %v1198, %v1197
        %s1200 = scalar_lea.vmem [#allocation3], 8
        %v1201 = vld [vmem:[%s1200] sm:$0xff]
        %v1203 = vsel %vm1052, %v1199, 0
        %1205 = vmatprep.subr.bf16.mxu0 0
        %1206 = vmatpush1.bf16.msra.mxu0 %v1201
        %1207 = vmatprep.subr.bf16.mxu0 0
        %1208 = vmatpush1.bf16.msra.mxu0 0
        %1209 = vmatprep.subr.bf16.mxu0 0
        %1210 = vmatpush1.bf16.msra.mxu0 0
        %1211 = vmatprep.subr.bf16.mxu0 0
        %1212 = vmatpush1.bf16.msra.mxu0 0
        %1213 = vmatprep.subr.bf16.mxu0 0
        %1214 = vmatpush1.bf16.msra.mxu0 0
        %1215 = vmatprep.subr.bf16.mxu0 0
        %1216 = vmatpush1.bf16.msra.mxu0 0
        %1217 = vmatprep.subr.bf16.mxu0 0
        %1218 = vmatpush1.bf16.msra.mxu0 0
        %1219 = vmatprep.subr.bf16.mxu0 0
        %1220 = vmatpush1.bf16.msra.mxu0 0
        %1221 = vmatprep.subr.bf16.mxu0 0
        %1222 = vmatpush1.bf16.msra.mxu0 0
        %1223 = vmatprep.subr.bf16.mxu0 0
        %1224 = vmatpush1.bf16.msra.mxu0 0
        %1225 = vmatprep.subr.bf16.mxu0 0
        %1226 = vmatpush1.bf16.msra.mxu0 0
        %1227 = vmatprep.subr.bf16.mxu0 0
        %1228 = vmatpush1.bf16.msra.mxu0 0
        %1229 = vmatprep.subr.bf16.mxu0 0
        %1230 = vmatpush1.bf16.msra.mxu0 0
        %1231 = vmatprep.subr.bf16.mxu0 0
        %1232 = vmatpush1.bf16.msra.mxu0 0
        %1233 = vmatprep.subr.bf16.mxu0 0
        %1234 = vmatpush1.bf16.msra.mxu0 0
        %1235 = vmatprep.subr.bf16.mxu0 0
        %1236 = vmatpush1.bf16.msra.mxu0 0
        %1237 = vmatprep.mubr.bf16.mxu0 0
        %1238 = vmatmul.mubr.bf16.gmra.mrb[0].mxu0 %v1203
        %v1239 = vpop.f32.mrb[0].mxu0
        %v1240 = vadd.f32 0.0, %v1239
        %v1241 = vpop.f32.mrb[0].mxu0
        %v1242 = vpop.f32.mrb[0].mxu0
        %v1243 = vadd.f32 0.0, %v1242
        %v1244 = vpop.f32.mrb[0].mxu0
        %1245 = vdwg.mxu0
        %v1246 = vpack.c.bf16 %v1243, %v1240
        %1248 = vrot.lane.b32.xlu0 %v1246, 32
        %v1249 = vpop.permute.xlu0 %1248
        %vm1251 = vcmask 523520
        %1252 = vst.msk [vmem:[#allocation4] sm:$0xff] %vm1251, %v1249
        %s1253 = scalar_lea.vmem [#allocation2], 16
        %v1254 = vld [vmem:[%s1253] sm:$0xff]
        %1255 = vrot.lane.b32.xlu0 %v995, 64
        %v1256 = vpop.permute.xlu0 %1255
        %v1258 = vsel %vm1002, %v1256, 0
        %v1261 = vsel %vm1002, %v1254, 0
        %1263 = vmatprep.subr.bf16.mxu0 0
        %1264 = vmatpush1.bf16.xpose.msra.mxu0 %v1261
        %1265 = vmatprep.subr.bf16.mxu0 0
        %1266 = vmatpush1.bf16.xpose.msra.mxu0 0
        %1267 = vmatprep.subr.bf16.mxu0 0
        %1268 = vmatpush1.bf16.xpose.msra.mxu0 0
        %1269 = vmatprep.subr.bf16.mxu0 0
        %1270 = vmatpush1.bf16.xpose.msra.mxu0 0
        %1271 = vmatprep.subr.bf16.mxu0 0
        %1272 = vmatpush1.bf16.xpose.msra.mxu0 0
        %1273 = vmatprep.subr.bf16.mxu0 0
        %1274 = vmatpush1.bf16.xpose.msra.mxu0 0
        %1275 = vmatprep.subr.bf16.mxu0 0
        %1276 = vmatpush1.bf16.xpose.msra.mxu0 0
        %1277 = vmatprep.subr.bf16.mxu0 0
        %1278 = vmatpush1.bf16.xpose.msra.mxu0 0
        %1279 = vmatprep.subr.bf16.mxu0 0
        %1280 = vmatpush1.bf16.xpose.msra.mxu0 0
        %1281 = vmatprep.subr.bf16.mxu0 0
        %1282 = vmatpush1.bf16.xpose.msra.mxu0 0
        %1283 = vmatprep.subr.bf16.mxu0 0
        %1284 = vmatpush1.bf16.xpose.msra.mxu0 0
        %1285 = vmatprep.subr.bf16.mxu0 0
        %1286 = vmatpush1.bf16.xpose.msra.mxu0 0
        %1287 = vmatprep.subr.bf16.mxu0 0
        %1288 = vmatpush1.bf16.xpose.msra.mxu0 0
        %1289 = vmatprep.subr.bf16.mxu0 0
        %1290 = vmatpush1.bf16.xpose.msra.mxu0 0
        %1291 = vmatprep.subr.bf16.mxu0 0
        %1292 = vmatpush1.bf16.xpose.msra.mxu0 0
        %1293 = vmatprep.subr.bf16.mxu0 0
        %1294 = vmatpush1.bf16.xpose.msra.mxu0 0
        %1295 = vmatprep.mubr.bf16.mxu0 0
        %1296 = vmatmul.mubr.bf16.gmra.mrb[0].mxu0 %v1258
        %v1297 = vpop.f32.mrb[0].mxu0
        %v1298 = vadd.f32 0.0, %v1297
        %v1299 = vpop.f32.mrb[0].mxu0
        %v1300 = vpop.f32.mrb[0].mxu0
        %v1301 = vadd.f32 0.0, %v1300
        %v1302 = vpop.f32.mrb[0].mxu0
        %1303 = vdwg.mxu0
        %v1304 = vsel %vm1000, %v1298, -1e+09
        %v1305 = vsel %vm1000, %v1301, -1e+09
        %v1306 = vsel %vm1052, %v1304, -inf
        %1307 = vmax.xlane.f32.xlu0 %v1306
        %v1308 = vpop.xlane.xlu0 %1307
        %v1309 = vsel %vm1052, %v1305, -inf
        %1310 = vmax.xlane.f32.xlu0 %v1309
        %v1311 = vpop.xlane.xlu0 %1310
        %v1312 = vsub.f32 %v1304, %v1308
        %v1313 = vsub.f32 %v1305, %v1311
        %v1314 = vmul.f32 %v1312, 1.442695
        %v1315 = vpow.pop %v1314
        %v1316 = vmul.f32 %v1313, 1.442695
        %v1317 = vpow.pop %v1316
        %v1318 = vsel %vm1052, %v1315, 0.0
        %1319 = vadd.xlane.f32.xlu0 %v1318
        %v1320 = vpop.xlane.xlu0 %1319
        %v1321 = vsel %vm1052, %v1317, 0.0
        %1322 = vadd.xlane.f32.xlu0 %v1321
        %v1323 = vpop.xlane.xlu0 %1322
        %v1324 = vrcp.pop %v1320
        %v1325 = vrcp.pop %v1323
        %v1326 = vmul.f32 %v1315, %v1324
        %v1327 = vmul.f32 %v1317, %v1325
        %v1328 = vpack.c.bf16 %v1327, %v1326
        %s1329 = scalar_lea.vmem [#allocation3], 16
        %v1330 = vld [vmem:[%s1329] sm:$0xff]
        %v1332 = vsel %vm1052, %v1328, 0
        %1334 = vmatprep.subr.bf16.mxu0 0
        %1335 = vmatpush1.bf16.msra.mxu0 %v1330
        %1336 = vmatprep.subr.bf16.mxu0 0
        %1337 = vmatpush1.bf16.msra.mxu0 0
        %1338 = vmatprep.subr.bf16.mxu0 0
        %1339 = vmatpush1.bf16.msra.mxu0 0
        %1340 = vmatprep.subr.bf16.mxu0 0
        %1341 = vmatpush1.bf16.msra.mxu0 0
        %1342 = vmatprep.subr.bf16.mxu0 0
        %1343 = vmatpush1.bf16.msra.mxu0 0
        %1344 = vmatprep.subr.bf16.mxu0 0
        %1345 = vmatpush1.bf16.msra.mxu0 0
        %1346 = vmatprep.subr.bf16.mxu0 0
        %1347 = vmatpush1.bf16.msra.mxu0 0
        %1348 = vmatprep.subr.bf16.mxu0 0
        %1349 = vmatpush1.bf16.msra.mxu0 0
        %1350 = vmatprep.subr.bf16.mxu0 0
        %1351 = vmatpush1.bf16.msra.mxu0 0
        %1352 = vmatprep.subr.bf16.mxu0 0
        %1353 = vmatpush1.bf16.msra.mxu0 0
        %1354 = vmatprep.subr.bf16.mxu0 0
        %1355 = vmatpush1.bf16.msra.mxu0 0
        %1356 = vmatprep.subr.bf16.mxu0 0
        %1357 = vmatpush1.bf16.msra.mxu0 0
        %1358 = vmatprep.subr.bf16.mxu0 0
        %1359 = vmatpush1.bf16.msra.mxu0 0
        %1360 = vmatprep.subr.bf16.mxu0 0
        %1361 = vmatpush1.bf16.msra.mxu0 0
        %1362 = vmatprep.subr.bf16.mxu0 0
        %1363 = vmatpush1.bf16.msra.mxu0 0
        %1364 = vmatprep.subr.bf16.mxu0 0
        %1365 = vmatpush1.bf16.msra.mxu0 0
        %1366 = vmatprep.mubr.bf16.mxu0 0
        %1367 = vmatmul.mubr.bf16.gmra.mrb[0].mxu0 %v1332
        %v1368 = vpop.f32.mrb[0].mxu0
        %v1369 = vadd.f32 0.0, %v1368
        %v1370 = vpop.f32.mrb[0].mxu0
        %v1371 = vpop.f32.mrb[0].mxu0
        %v1372 = vadd.f32 0.0, %v1371
        %v1373 = vpop.f32.mrb[0].mxu0
        %1374 = vdwg.mxu0
        %v1375 = vpack.c.bf16 %v1372, %v1369
        %1377 = vrot.lane.b32.xlu0 %v1375, 64
        %v1378 = vpop.permute.xlu0 %1377
        %vm1380 = vcmask 785920
        %1381 = vst.msk [vmem:[#allocation4] sm:$0xff] %vm1380, %v1378
        %s1382 = scalar_lea.vmem [#allocation2], 24
        %v1383 = vld [vmem:[%s1382] sm:$0xff]
        %1384 = vrot.lane.b32.xlu0 %v995, 32
        %v1385 = vpop.permute.xlu0 %1384
        %v1387 = vsel %vm1002, %v1385, 0
        %v1390 = vsel %vm1002, %v1383, 0
        %1392 = vmatprep.subr.bf16.mxu0 0
        %1393 = vmatpush1.bf16.xpose.msra.mxu0 %v1390
        %1394 = vmatprep.subr.bf16.mxu0 0
        %1395 = vmatpush1.bf16.xpose.msra.mxu0 0
        %1396 = vmatprep.subr.bf16.mxu0 0
        %1397 = vmatpush1.bf16.xpose.msra.mxu0 0
        %1398 = vmatprep.subr.bf16.mxu0 0
        %1399 = vmatpush1.bf16.xpose.msra.mxu0 0
        %1400 = vmatprep.subr.bf16.mxu0 0
        %1401 = vmatpush1.bf16.xpose.msra.mxu0 0
        %1402 = vmatprep.subr.bf16.mxu0 0
        %1403 = vmatpush1.bf16.xpose.msra.mxu0 0
        %1404 = vmatprep.subr.bf16.mxu0 0
        %1405 = vmatpush1.bf16.xpose.msra.mxu0 0
        %1406 = vmatprep.subr.bf16.mxu0 0
        %1407 = vmatpush1.bf16.xpose.msra.mxu0 0
        %1408 = vmatprep.subr.bf16.mxu0 0
        %1409 = vmatpush1.bf16.xpose.msra.mxu0 0
        %1410 = vmatprep.subr.bf16.mxu0 0
        %1411 = vmatpush1.bf16.xpose.msra.mxu0 0
        %1412 = vmatprep.subr.bf16.mxu0 0
        %1413 = vmatpush1.bf16.xpose.msra.mxu0 0
        %1414 = vmatprep.subr.bf16.mxu0 0
        %1415 = vmatpush1.bf16.xpose.msra.mxu0 0
        %1416 = vmatprep.subr.bf16.mxu0 0
        %1417 = vmatpush1.bf16.xpose.msra.mxu0 0
        %1418 = vmatprep.subr.bf16.mxu0 0
        %1419 = vmatpush1.bf16.xpose.msra.mxu0 0
        %1420 = vmatprep.subr.bf16.mxu0 0
        %1421 = vmatpush1.bf16.xpose.msra.mxu0 0
        %1422 = vmatprep.subr.bf16.mxu0 0
        %1423 = vmatpush1.bf16.xpose.msra.mxu0 0
        %1424 = vmatprep.mubr.bf16.mxu0 0
        %1425 = vmatmul.mubr.bf16.gmra.mrb[0].mxu0 %v1387
        %v1426 = vpop.f32.mrb[0].mxu0
        %v1427 = vadd.f32 0.0, %v1426
        %v1428 = vpop.f32.mrb[0].mxu0
        %v1429 = vpop.f32.mrb[0].mxu0
        %v1430 = vadd.f32 0.0, %v1429
        %v1431 = vpop.f32.mrb[0].mxu0
        %1432 = vdwg.mxu0
        %v1433 = vsel %vm1000, %v1427, -1e+09
        %v1434 = vsel %vm1000, %v1430, -1e+09
        %v1435 = vsel %vm1052, %v1433, -inf
        %1436 = vmax.xlane.f32.xlu0 %v1435
        %v1437 = vpop.xlane.xlu0 %1436
        %v1438 = vsel %vm1052, %v1434, -inf
        %1439 = vmax.xlane.f32.xlu0 %v1438
        %v1440 = vpop.xlane.xlu0 %1439
        %v1441 = vsub.f32 %v1433, %v1437
        %v1442 = vsub.f32 %v1434, %v1440
        %v1443 = vmul.f32 %v1441, 1.442695
        %v1444 = vpow.pop %v1443
        %v1445 = vmul.f32 %v1442, 1.442695
        %v1446 = vpow.pop %v1445
        %v1447 = vsel %vm1052, %v1444, 0.0
        %1448 = vadd.xlane.f32.xlu0 %v1447
        %v1449 = vpop.xlane.xlu0 %1448
        %v1450 = vsel %vm1052, %v1446, 0.0
        %1451 = vadd.xlane.f32.xlu0 %v1450
        %v1452 = vpop.xlane.xlu0 %1451
        %v1453 = vrcp.pop %v1449
        %v1454 = vrcp.pop %v1452
        %v1455 = vmul.f32 %v1444, %v1453
        %v1456 = vmul.f32 %v1446, %v1454
        %v1457 = vpack.c.bf16 %v1456, %v1455
        %s1458 = scalar_lea.vmem [#allocation3], 24
        %v1459 = vld [vmem:[%s1458] sm:$0xff]
        %v1461 = vsel %vm1052, %v1457, 0
        %1463 = vmatprep.subr.bf16.mxu0 0
        %1464 = vmatpush1.bf16.msra.mxu0 %v1459
        %1465 = vmatprep.subr.bf16.mxu0 0
        %1466 = vmatpush1.bf16.msra.mxu0 0
        %1467 = vmatprep.subr.bf16.mxu0 0
        %1468 = vmatpush1.bf16.msra.mxu0 0
        %1469 = vmatprep.subr.bf16.mxu0 0
        %1470 = vmatpush1.bf16.msra.mxu0 0
        %1471 = vmatprep.subr.bf16.mxu0 0
        %1472 = vmatpush1.bf16.msra.mxu0 0
        %1473 = vmatprep.subr.bf16.mxu0 0
        %1474 = vmatpush1.bf16.msra.mxu0 0
        %1475 = vmatprep.subr.bf16.mxu0 0
        %1476 = vmatpush1.bf16.msra.mxu0 0
        %1477 = vmatprep.subr.bf16.mxu0 0
        %1478 = vmatpush1.bf16.msra.mxu0 0
        %1479 = vmatprep.subr.bf16.mxu0 0
        %1480 = vmatpush1.bf16.msra.mxu0 0
        %1481 = vmatprep.subr.bf16.mxu0 0
        %1482 = vmatpush1.bf16.msra.mxu0 0
        %1483 = vmatprep.subr.bf16.mxu0 0
        %1484 = vmatpush1.bf16.msra.mxu0 0
        %1485 = vmatprep.subr.bf16.mxu0 0
        %1486 = vmatpush1.bf16.msra.mxu0 0
        %1487 = vmatprep.subr.bf16.mxu0 0
        %1488 = vmatpush1.bf16.msra.mxu0 0
        %1489 = vmatprep.subr.bf16.mxu0 0
        %1490 = vmatpush1.bf16.msra.mxu0 0
        %1491 = vmatprep.subr.bf16.mxu0 0
        %1492 = vmatpush1.bf16.msra.mxu0 0
        %1493 = vmatprep.subr.bf16.mxu0 0
        %1494 = vmatpush1.bf16.msra.mxu0 0
        %1495 = vmatprep.mubr.bf16.mxu0 0
        %1496 = vmatmul.mubr.bf16.gmra.mrb[0].mxu0 %v1461
        %v1497 = vpop.f32.mrb[0].mxu0
        %v1498 = vadd.f32 0.0, %v1497
        %v1499 = vpop.f32.mrb[0].mxu0
        %v1500 = vpop.f32.mrb[0].mxu0
        %v1501 = vadd.f32 0.0, %v1500
        %v1502 = vpop.f32.mrb[0].mxu0
        %1503 = vdwg.mxu0
        %v1504 = vpack.c.bf16 %v1501, %v1498
        %1506 = vrot.lane.b32.xlu0 %v1504, 96
        %v1507 = vpop.permute.xlu0 %1506
        %vm1509 = vcmask 1048320
        %1510 = vst.msk [vmem:[#allocation4] sm:$0xff] %vm1509, %v1507
        %v1511 = vld [vmem:[#allocation4] sm:$0xff]
        %v1512 = vld [vmem:[#allocation15] sm:$0xf]
        %v1513 = vld [vmem:[#allocation15 + $0x4] sm:$0xf]
        %v1514 = vld [vmem:[#allocation15 + $0x8] sm:$0xf]
        %v1515 = vld [vmem:[#allocation15 + $0xc] sm:$0xf]
        %v1516 = vld [vmem:[#allocation15 + $0x10] sm:$0xf]
        %v1517 = vld [vmem:[#allocation15 + $0x14] sm:$0xf]
        %v1518 = vld [vmem:[#allocation15 + $0x18] sm:$0xf]
        %v1519 = vld [vmem:[#allocation15 + $0x1c] sm:$0xf]
        %v1520 = vld [vmem:[#allocation15 + $0x20] sm:$0xf]
        %v1521 = vld [vmem:[#allocation15 + $0x24] sm:$0xf]
        %v1522 = vld [vmem:[#allocation15 + $0x28] sm:$0xf]
        %v1523 = vld [vmem:[#allocation15 + $0x2c] sm:$0xf]
        %v1524 = vld [vmem:[#allocation15 + $0x30] sm:$0xf]
        %v1525 = vld [vmem:[#allocation15 + $0x34] sm:$0xf]
        %v1526 = vld [vmem:[#allocation15 + $0x38] sm:$0xf]
        %v1527 = vld [vmem:[#allocation15 + $0x3c] sm:$0xf]
        %v1528 = vld [vmem:[%s8] sm:$0x1]
        %v1530 = vlaneseq
        %v1531 = vshrl.u32 %v1530, 7
        %v1532 = vsub.s32 0, %v1531
        %v1533 = vrot.slane %v1528, %v1532
        %v1551 = vunpack.c.l.b16 %v1512
        %v1552 = vunpack.c.l.b16 %v1513
        %v1553 = vunpack.c.l.b16 %v1514
        %v1554 = vunpack.c.l.b16 %v1515
        %v1555 = vunpack.c.l.b16 %v1516
        %v1556 = vunpack.c.l.b16 %v1517
        %v1557 = vunpack.c.l.b16 %v1518
        %v1558 = vunpack.c.l.b16 %v1519
        %v1559 = vunpack.c.l.b16 %v1520
        %v1560 = vunpack.c.l.b16 %v1521
        %v1561 = vunpack.c.l.b16 %v1522
        %v1562 = vunpack.c.l.b16 %v1523
        %v1563 = vunpack.c.l.b16 %v1524
        %v1564 = vunpack.c.l.b16 %v1525
        %v1565 = vunpack.c.l.b16 %v1526
        %v1566 = vunpack.c.l.b16 %v1527
        %v1567 = vpack.c.b16 %v1552, %v1551
        %v1568 = vpack.c.b16 %v1554, %v1553
        %v1569 = vpack.c.b16 %v1556, %v1555
        %v1570 = vpack.c.b16 %v1558, %v1557
        %v1571 = vpack.c.b16 %v1560, %v1559
        %v1572 = vpack.c.b16 %v1562, %v1561
        %v1573 = vpack.c.b16 %v1564, %v1563
        %v1574 = vpack.c.b16 %v1566, %v1565
        %1583 = vmatprep.subr.bf16.mxu0 0
        %1584 = vmatpush1.bf16.msra.mxu0 %v1567
        %1585 = vmatprep.subr.bf16.mxu0 0
        %1586 = vmatpush1.bf16.msra.mxu0 %v1568
        %1587 = vmatprep.subr.bf16.mxu0 0
        %1588 = vmatpush1.bf16.msra.mxu0 %v1569
        %1589 = vmatprep.subr.bf16.mxu0 0
        %1590 = vmatpush1.bf16.msra.mxu0 %v1570
        %1591 = vmatprep.subr.bf16.mxu0 0
        %1592 = vmatpush1.bf16.msra.mxu0 %v1571
        %1593 = vmatprep.subr.bf16.mxu0 0
        %1594 = vmatpush1.bf16.msra.mxu0 %v1572
        %1595 = vmatprep.subr.bf16.mxu0 0
        %1596 = vmatpush1.bf16.msra.mxu0 %v1573
        %1597 = vmatprep.subr.bf16.mxu0 0
        %1598 = vmatpush1.bf16.msra.mxu0 %v1574
        %1599 = vmatprep.subr.bf16.mxu0 0
        %1600 = vmatpush1.bf16.msra.mxu0 0
        %1601 = vmatprep.subr.bf16.mxu0 0
        %1602 = vmatpush1.bf16.msra.mxu0 0
        %1603 = vmatprep.subr.bf16.mxu0 0
        %1604 = vmatpush1.bf16.msra.mxu0 0
        %1605 = vmatprep.subr.bf16.mxu0 0
        %1606 = vmatpush1.bf16.msra.mxu0 0
        %1607 = vmatprep.subr.bf16.mxu0 0
        %1608 = vmatpush1.bf16.msra.mxu0 0
        %1609 = vmatprep.subr.bf16.mxu0 0
        %1610 = vmatpush1.bf16.msra.mxu0 0
        %1611 = vmatprep.subr.bf16.mxu0 0
        %1612 = vmatpush1.bf16.msra.mxu0 0
        %1613 = vmatprep.subr.bf16.mxu0 0
        %1614 = vmatpush1.bf16.msra.mxu0 0
        %1615 = vmatprep.mubr.bf16.mxu0 0
        %1616 = vmatmul.mubr.bf16.gmra.mrb[0].mxu0 %v1511
        %v1617 = vpop.f32.mrb[0].mxu0
        %v1618 = vadd.f32 %v1533, %v1617
        %v1619 = vpop.f32.mrb[0].mxu0
        %v1620 = vpop.f32.mrb[0].mxu0
        %v1621 = vadd.f32 %v1533, %v1620
        %v1622 = vpop.f32.mrb[0].mxu0
        %1623 = vdwg.mxu0
        %v1624 = vadd.f32 %v1618, %v878
        %v1625 = vadd.f32 %v1621, %v879
        %v1626 = vld [vmem:[%s9] sm:$0x1]
        %v1627 = vld [vmem:[%s10] sm:$0x1]
        %1628 = vadd.xlane.f32.xlu0 %v1624
        %v1629 = vpop.xlane.xlu0 %1628
        %1630 = vadd.xlane.f32.xlu0 %v1625
        %v1631 = vpop.xlane.xlu0 %1630
        %v1632 = vrcp.pop 128.0
        %v1633 = vmul.f32 %v1629, %v1632
        %v1634 = vmul.f32 %v1631, %v1632
        %v1635 = vsub.f32 %v1624, %v1633
        %v1636 = vsub.f32 %v1625, %v1634
        %v1637 = vmul.f32 %v1635, %v1635
        %v1638 = vmul.f32 %v1636, %v1636
        %1639 = vadd.xlane.f32.xlu0 %v1637
        %v1640 = vpop.xlane.xlu0 %1639
        %1641 = vadd.xlane.f32.xlu0 %v1638
        %v1642 = vpop.xlane.xlu0 %1641
        %v1643 = vmul.f32 %v1640, %v1632
        %v1644 = vmul.f32 %v1642, %v1632
        %v1645 = vadd.f32 %v1643, 1e-05
        %v1646 = vadd.f32 %v1644, 1e-05
        %v1647 = vrsqrt.pop %v1645
        %v1648 = vrsqrt.pop %v1646
        %v1649 = vmul.f32 %v1635, %v1647
        %v1650 = vmul.f32 %v1636, %v1648
        %v1652 = vlaneseq
        %v1653 = vshrl.u32 %v1652, 7
        %v1654 = vsub.s32 0, %v1653
        %v1655 = vrot.slane %v1626, %v1654
        %v1657 = vmul.f32 %v1649, %v1655
        %v1658 = vmul.f32 %v1650, %v1655
        %v1660 = vlaneseq
        %v1661 = vshrl.u32 %v1660, 7
        %v1662 = vsub.s32 0, %v1661
        %v1663 = vrot.slane %v1627, %v1662
        %v1665 = vadd.f32 %v1657, %v1663
        %v1666 = vadd.f32 %v1658, %v1663
        %v1667 = vpack.c.bf16 %v1666, %v1665
        %v1668 = vld [vmem:[#allocation16] sm:$0xff]
        %v1669 = vld [vmem:[#allocation16 + $0x8] sm:$0xff]
        %v1670 = vld [vmem:[#allocation16 + $0x10] sm:$0xff]
        %v1671 = vld [vmem:[#allocation16 + $0x18] sm:$0xff]
        %v1672 = vld [vmem:[#allocation16 + $0x20] sm:$0xff]
        %v1673 = vld [vmem:[#allocation16 + $0x28] sm:$0xff]
        %v1674 = vld [vmem:[#allocation16 + $0x30] sm:$0xff]
        %v1675 = vld [vmem:[#allocation16 + $0x38] sm:$0xff]
        %v1676 = vld [vmem:[#allocation16 + $0x40] sm:$0xff]
        %v1677 = vld [vmem:[#allocation16 + $0x48] sm:$0xff]
        %v1678 = vld [vmem:[#allocation16 + $0x50] sm:$0xff]
        %v1679 = vld [vmem:[#allocation16 + $0x58] sm:$0xff]
        %v1680 = vld [vmem:[#allocation16 + $0x60] sm:$0xff]
        %v1681 = vld [vmem:[#allocation16 + $0x68] sm:$0xff]
        %v1682 = vld [vmem:[#allocation16 + $0x70] sm:$0xff]
        %v1683 = vld [vmem:[#allocation16 + $0x78] sm:$0xff]
        %v1684 = vld [vmem:[%s12] sm:$0x3]
        %v1686 = vlaneseq
        %v1687 = vshrl.u32 %v1686, 7
        %v1688 = vsub.s32 0, %v1687
        %v1689 = vrot.slane %v1684, %v1688
        %v1690 = vlaneseq
        %v1691 = vshrl.u32 %v1690, 7
        %v1692 = vsub.s32 1, %v1691
        %v1693 = vrot.slane %v1684, %v1692
        %v1712 = vunpack.c.l.b16 %v1668
        %v1713 = vunpack.c.h.b16 %v1668
        %v1714 = vunpack.c.l.b16 %v1669
        %v1715 = vunpack.c.h.b16 %v1669
        %v1716 = vunpack.c.l.b16 %v1670
        %v1717 = vunpack.c.h.b16 %v1670
        %v1718 = vunpack.c.l.b16 %v1671
        %v1719 = vunpack.c.h.b16 %v1671
        %v1720 = vunpack.c.l.b16 %v1672
        %v1721 = vunpack.c.h.b16 %v1672
        %v1722 = vunpack.c.l.b16 %v1673
        %v1723 = vunpack.c.h.b16 %v1673
        %v1724 = vunpack.c.l.b16 %v1674
        %v1725 = vunpack.c.h.b16 %v1674
        %v1726 = vunpack.c.l.b16 %v1675
        %v1727 = vunpack.c.h.b16 %v1675
        %v1728 = vunpack.c.l.b16 %v1676
        %v1729 = vunpack.c.h.b16 %v1676
        %v1730 = vunpack.c.l.b16 %v1677
        %v1731 = vunpack.c.h.b16 %v1677
        %v1732 = vunpack.c.l.b16 %v1678
        %v1733 = vunpack.c.h.b16 %v1678
        %v1734 = vunpack.c.l.b16 %v1679
        %v1735 = vunpack.c.h.b16 %v1679
        %v1736 = vunpack.c.l.b16 %v1680
        %v1737 = vunpack.c.h.b16 %v1680
        %v1738 = vunpack.c.l.b16 %v1681
        %v1739 = vunpack.c.h.b16 %v1681
        %v1740 = vunpack.c.l.b16 %v1682
        %v1741 = vunpack.c.h.b16 %v1682
        %v1742 = vunpack.c.l.b16 %v1683
        %v1743 = vunpack.c.h.b16 %v1683
        %v1744 = vpack.c.b16 %v1714, %v1712
        %v1745 = vpack.c.b16 %v1715, %v1713
        %v1746 = vpack.c.b16 %v1718, %v1716
        %v1747 = vpack.c.b16 %v1719, %v1717
        %v1748 = vpack.c.b16 %v1722, %v1720
        %v1749 = vpack.c.b16 %v1723, %v1721
        %v1750 = vpack.c.b16 %v1726, %v1724
        %v1751 = vpack.c.b16 %v1727, %v1725
        %v1752 = vpack.c.b16 %v1730, %v1728
        %v1753 = vpack.c.b16 %v1731, %v1729
        %v1754 = vpack.c.b16 %v1734, %v1732
        %v1755 = vpack.c.b16 %v1735, %v1733
        %v1756 = vpack.c.b16 %v1738, %v1736
        %v1757 = vpack.c.b16 %v1739, %v1737
        %v1758 = vpack.c.b16 %v1742, %v1740
        %v1759 = vpack.c.b16 %v1743, %v1741
        %1776 = vmatprep.subr.bf16.mxu0 %v1745
        %1777 = vmatpush1.bf16.msra.mxu0 %v1744
        %1778 = vmatprep.subr.bf16.mxu0 %v1747
        %1779 = vmatpush1.bf16.msra.mxu0 %v1746
        %1780 = vmatprep.subr.bf16.mxu0 %v1749
        %1781 = vmatpush1.bf16.msra.mxu0 %v1748
        %1782 = vmatprep.subr.bf16.mxu0 %v1751
        %1783 = vmatpush1.bf16.msra.mxu0 %v1750
        %1784 = vmatprep.subr.bf16.mxu0 %v1753
        %1785 = vmatpush1.bf16.msra.mxu0 %v1752
        %1786 = vmatprep.subr.bf16.mxu0 %v1755
        %1787 = vmatpush1.bf16.msra.mxu0 %v1754
        %1788 = vmatprep.subr.bf16.mxu0 %v1757
        %1789 = vmatpush1.bf16.msra.mxu0 %v1756
        %1790 = vmatprep.subr.bf16.mxu0 %v1759
        %1791 = vmatpush1.bf16.msra.mxu0 %v1758
        %1792 = vmatprep.subr.bf16.mxu0 0
        %1793 = vmatpush1.bf16.msra.mxu0 0
        %1794 = vmatprep.subr.bf16.mxu0 0
        %1795 = vmatpush1.bf16.msra.mxu0 0
        %1796 = vmatprep.subr.bf16.mxu0 0
        %1797 = vmatpush1.bf16.msra.mxu0 0
        %1798 = vmatprep.subr.bf16.mxu0 0
        %1799 = vmatpush1.bf16.msra.mxu0 0
        %1800 = vmatprep.subr.bf16.mxu0 0
        %1801 = vmatpush1.bf16.msra.mxu0 0
        %1802 = vmatprep.subr.bf16.mxu0 0
        %1803 = vmatpush1.bf16.msra.mxu0 0
        %1804 = vmatprep.subr.bf16.mxu0 0
        %1805 = vmatpush1.bf16.msra.mxu0 0
        %1806 = vmatprep.subr.bf16.mxu0 0
        %1807 = vmatpush1.bf16.msra.mxu0 0
        %1808 = vmatprep.mubr.bf16.mxu0 0
        %1809 = vmatmul.mubr.bf16.gmra.mrb[0].mxu0 %v1667
        %v1810 = vpop.f32.mrb[0].mxu0
        %v1811 = vadd.f32 %v1689, %v1810
        %v1812 = vpop.f32.mrb[0].mxu0
        %v1813 = vadd.f32 %v1693, %v1812
        %v1814 = vpop.f32.mrb[0].mxu0
        %v1815 = vadd.f32 %v1689, %v1814
        %v1816 = vpop.f32.mrb[0].mxu0
        %v1817 = vadd.f32 %v1693, %v1816
        %1818 = vdwg.mxu0
        %v1819 = vmax.f32 %v1811, 0.0
        %v1820 = vmax.f32 %v1813, 0.0
        %v1821 = vmax.f32 %v1815, 0.0
        %v1822 = vmax.f32 %v1817, 0.0
        %v1823 = vpack.c.bf16 %v1821, %v1819
        %v1824 = vpack.c.bf16 %v1822, %v1820
        %v1825 = vld [vmem:[#allocation18] sm:$0xf]
        %v1826 = vld [vmem:[#allocation18 + $0x4] sm:$0xf]
        %v1827 = vld [vmem:[#allocation18 + $0x8] sm:$0xf]
        %v1828 = vld [vmem:[#allocation18 + $0xc] sm:$0xf]
        %v1829 = vld [vmem:[#allocation18 + $0x10] sm:$0xf]
        %v1830 = vld [vmem:[#allocation18 + $0x14] sm:$0xf]
        %v1831 = vld [vmem:[#allocation18 + $0x18] sm:$0xf]
        %v1832 = vld [vmem:[#allocation18 + $0x1c] sm:$0xf]
        %v1833 = vld [vmem:[#allocation18 + $0x20] sm:$0xf]
        %v1834 = vld [vmem:[#allocation18 + $0x24] sm:$0xf]
        %v1835 = vld [vmem:[#allocation18 + $0x28] sm:$0xf]
        %v1836 = vld [vmem:[#allocation18 + $0x2c] sm:$0xf]
        %v1837 = vld [vmem:[#allocation18 + $0x30] sm:$0xf]
        %v1838 = vld [vmem:[#allocation18 + $0x34] sm:$0xf]
        %v1839 = vld [vmem:[#allocation18 + $0x38] sm:$0xf]
        %v1840 = vld [vmem:[#allocation18 + $0x3c] sm:$0xf]
        %v1841 = vld [vmem:[#allocation18 + $0x40] sm:$0xf]
        %v1842 = vld [vmem:[#allocation18 + $0x44] sm:$0xf]
        %v1843 = vld [vmem:[#allocation18 + $0x48] sm:$0xf]
        %v1844 = vld [vmem:[#allocation18 + $0x4c] sm:$0xf]
        %v1845 = vld [vmem:[#allocation18 + $0x50] sm:$0xf]
        %v1846 = vld [vmem:[#allocation18 + $0x54] sm:$0xf]
        %v1847 = vld [vmem:[#allocation18 + $0x58] sm:$0xf]
        %v1848 = vld [vmem:[#allocation18 + $0x5c] sm:$0xf]
        %v1849 = vld [vmem:[#allocation18 + $0x60] sm:$0xf]
        %v1850 = vld [vmem:[#allocation18 + $0x64] sm:$0xf]
        %v1851 = vld [vmem:[#allocation18 + $0x68] sm:$0xf]
        %v1852 = vld [vmem:[#allocation18 + $0x6c] sm:$0xf]
        %v1853 = vld [vmem:[#allocation18 + $0x70] sm:$0xf]
        %v1854 = vld [vmem:[#allocation18 + $0x74] sm:$0xf]
        %v1855 = vld [vmem:[#allocation18 + $0x78] sm:$0xf]
        %v1856 = vld [vmem:[#allocation18 + $0x7c] sm:$0xf]
        %v1857 = vld [vmem:[%s14] sm:$0x1]
        %v1859 = vlaneseq
        %v1860 = vshrl.u32 %v1859, 7
        %v1861 = vsub.s32 0, %v1860
        %v1862 = vrot.slane %v1857, %v1861
        %v1896 = vunpack.c.l.b16 %v1825
        %v1897 = vunpack.c.l.b16 %v1826
        %v1898 = vunpack.c.l.b16 %v1827
        %v1899 = vunpack.c.l.b16 %v1828
        %v1900 = vunpack.c.l.b16 %v1829
        %v1901 = vunpack.c.l.b16 %v1830
        %v1902 = vunpack.c.l.b16 %v1831
        %v1903 = vunpack.c.l.b16 %v1832
        %v1904 = vunpack.c.l.b16 %v1833
        %v1905 = vunpack.c.l.b16 %v1834
        %v1906 = vunpack.c.l.b16 %v1835
        %v1907 = vunpack.c.l.b16 %v1836
        %v1908 = vunpack.c.l.b16 %v1837
        %v1909 = vunpack.c.l.b16 %v1838
        %v1910 = vunpack.c.l.b16 %v1839
        %v1911 = vunpack.c.l.b16 %v1840
        %v1912 = vunpack.c.l.b16 %v1841
        %v1913 = vunpack.c.l.b16 %v1842
        %v1914 = vunpack.c.l.b16 %v1843
        %v1915 = vunpack.c.l.b16 %v1844
        %v1916 = vunpack.c.l.b16 %v1845
        %v1917 = vunpack.c.l.b16 %v1846
        %v1918 = vunpack.c.l.b16 %v1847
        %v1919 = vunpack.c.l.b16 %v1848
        %v1920 = vunpack.c.l.b16 %v1849
        %v1921 = vunpack.c.l.b16 %v1850
        %v1922 = vunpack.c.l.b16 %v1851
        %v1923 = vunpack.c.l.b16 %v1852
        %v1924 = vunpack.c.l.b16 %v1853
        %v1925 = vunpack.c.l.b16 %v1854
        %v1926 = vunpack.c.l.b16 %v1855
        %v1927 = vunpack.c.l.b16 %v1856
        %v1928 = vpack.c.b16 %v1897, %v1896
        %v1929 = vpack.c.b16 %v1899, %v1898
        %v1930 = vpack.c.b16 %v1901, %v1900
        %v1931 = vpack.c.b16 %v1903, %v1902
        %v1932 = vpack.c.b16 %v1905, %v1904
        %v1933 = vpack.c.b16 %v1907, %v1906
        %v1934 = vpack.c.b16 %v1909, %v1908
        %v1935 = vpack.c.b16 %v1911, %v1910
        %v1936 = vpack.c.b16 %v1913, %v1912
        %v1937 = vpack.c.b16 %v1915, %v1914
        %v1938 = vpack.c.b16 %v1917, %v1916
        %v1939 = vpack.c.b16 %v1919, %v1918
        %v1940 = vpack.c.b16 %v1921, %v1920
        %v1941 = vpack.c.b16 %v1923, %v1922
        %v1942 = vpack.c.b16 %v1925, %v1924
        %v1943 = vpack.c.b16 %v1927, %v1926
        %1960 = vmatprep.subr.bf16.mxu0 0
        %1961 = vmatpush1.bf16.msra.mxu0 %v1928
        %1962 = vmatprep.subr.bf16.mxu0 0
        %1963 = vmatpush1.bf16.msra.mxu0 %v1929
        %1964 = vmatprep.subr.bf16.mxu0 0
        %1965 = vmatpush1.bf16.msra.mxu0 %v1930
        %1966 = vmatprep.subr.bf16.mxu0 0
        %1967 = vmatpush1.bf16.msra.mxu0 %v1931
        %1968 = vmatprep.subr.bf16.mxu0 0
        %1969 = vmatpush1.bf16.msra.mxu0 %v1932
        %1970 = vmatprep.subr.bf16.mxu0 0
        %1971 = vmatpush1.bf16.msra.mxu0 %v1933
        %1972 = vmatprep.subr.bf16.mxu0 0
        %1973 = vmatpush1.bf16.msra.mxu0 %v1934
        %1974 = vmatprep.subr.bf16.mxu0 0
        %1975 = vmatpush1.bf16.msra.mxu0 %v1935
        %1976 = vmatprep.subr.bf16.mxu0 0
        %1977 = vmatpush1.bf16.msra.mxu0 %v1936
        %1978 = vmatprep.subr.bf16.mxu0 0
        %1979 = vmatpush1.bf16.msra.mxu0 %v1937
        %1980 = vmatprep.subr.bf16.mxu0 0
        %1981 = vmatpush1.bf16.msra.mxu0 %v1938
        %1982 = vmatprep.subr.bf16.mxu0 0
        %1983 = vmatpush1.bf16.msra.mxu0 %v1939
        %1984 = vmatprep.subr.bf16.mxu0 0
        %1985 = vmatpush1.bf16.msra.mxu0 %v1940
        %1986 = vmatprep.subr.bf16.mxu0 0
        %1987 = vmatpush1.bf16.msra.mxu0 %v1941
        %1988 = vmatprep.subr.bf16.mxu0 0
        %1989 = vmatpush1.bf16.msra.mxu0 %v1942
        %1990 = vmatprep.subr.bf16.mxu0 0
        %1991 = vmatpush1.bf16.msra.mxu0 %v1943
        %1992 = vmatprep.mubr.bf16.mxu0 %v1824
        %1993 = vmatmul.mubr.bf16.gmra.mrb[0].mxu0 %v1823
        %v1994 = vpop.f32.mrb[0].mxu0
        %v1995 = vadd.f32 %v1862, %v1994
        %v1996 = vpop.f32.mrb[0].mxu0
        %v1997 = vpop.f32.mrb[0].mxu0
        %v1998 = vadd.f32 %v1862, %v1997
        %v1999 = vpop.f32.mrb[0].mxu0
        %2000 = vdwg.mxu0
        %v2001 = vadd.f32 %v1995, %v1665
        %v2002 = vadd.f32 %v1998, %v1666
        %v2003 = vld [vmem:[%s15] sm:$0x1]
        %v2004 = vld [vmem:[%s16] sm:$0x1]
        %2005 = vadd.xlane.f32.xlu0 %v2001
        %v2006 = vpop.xlane.xlu0 %2005
        %2007 = vadd.xlane.f32.xlu0 %v2002
        %v2008 = vpop.xlane.xlu0 %2007
        %v2009 = vmul.f32 %v2006, %v1632
        %v2010 = vmul.f32 %v2008, %v1632
        %v2011 = vsub.f32 %v2001, %v2009
        %v2012 = vsub.f32 %v2002, %v2010
        %v2013 = vmul.f32 %v2011, %v2011
        %v2014 = vmul.f32 %v2012, %v2012
        %2015 = vadd.xlane.f32.xlu0 %v2013
        %v2016 = vpop.xlane.xlu0 %2015
        %2017 = vadd.xlane.f32.xlu0 %v2014
        %v2018 = vpop.xlane.xlu0 %2017
        %v2019 = vmul.f32 %v2016, %v1632
        %v2020 = vmul.f32 %v2018, %v1632
        %v2021 = vadd.f32 %v2019, 1e-05
        %v2022 = vadd.f32 %v2020, 1e-05
        %v2023 = vrsqrt.pop %v2021
        %v2024 = vrsqrt.pop %v2022
        %v2025 = vmul.f32 %v2011, %v2023
        %v2026 = vmul.f32 %v2012, %v2024
        %v2028 = vlaneseq
        %v2029 = vshrl.u32 %v2028, 7
        %v2030 = vsub.s32 0, %v2029
        %v2031 = vrot.slane %v2003, %v2030
        %v2033 = vmul.f32 %v2025, %v2031
        %v2034 = vmul.f32 %v2026, %v2031
        %v2036 = vlaneseq
        %v2037 = vshrl.u32 %v2036, 7
        %v2038 = vsub.s32 0, %v2037
        %v2039 = vrot.slane %v2004, %v2038
        %v2041 = vadd.f32 %v2033, %v2039
        %v2042 = vadd.f32 %v2034, %v2039
        %2043 = vst [vmem:[%s674] sm:$0xff] %v2041
        %2044 = vst [vmem:[%s674 + $0x8] sm:$0xff] %v2042
        %s2045 = sand.u32 %s413, 1
        %s2046 = scalar_lea.sflag [#allocation9], %s2045
        %s2047 = sand.u32 %s413, 1
        %s2048 = smul.addr %s2047, 16
        %s2049 = scalar_lea.vmem [#allocation19], %s2048
        // Predicated region
        $region117: #{tpu_custom_call.1} parent=83 // pred_check
          %p2050 = pneg %p423
        $region118: #{tpu_custom_call.1} parent=83 // pred_check_branch
          %2052 = sbr.rel (%p2050) target = $region120
        $region119: #{tpu_custom_call.1} parent=83 // pred_region
          %s2053 = smul.u32 2, %s48
          %s2055 = ssub.s32 256, 256
          %2056 = vsyncadd %s2046, %s2055
          %s2057 = smul.addr %s47, 2
          %s2058 = sadd.s32 %s2053, %s2057
          %s2059 = smul.addr %s2058, 128
          %s2060 = scalar_lea.hbm %s17, %s2059
          %s2061 = sshll.u32 %s2049, 4
          %s2062 = int_to_ptr.vmem [resolvable:$true] %s2061
          %2067 = dma.vmem_to_hbm [thread:$0]  %s2062, 256, %s2060, %s2046, 128, 128, 8
        $region120: #{tpu_custom_call.1} parent=83 // pred_fallthru
          _
      $region84: #{tpu_custom_call.1} parent=5 // pred_fallthru
        _
      %p2068 = scmp.le.s32.totalorder 2, %s38
      // Predicated region
      $region121: #{tpu_custom_call.1} parent=5 // pred_check
        %p2069 = pneg %p2068
      $region122: #{tpu_custom_call.1} parent=5 // pred_check_branch
        %2071 = sbr.rel (%p2069) target = $region124
      $region123: #{tpu_custom_call.1} parent=5 // pred_region
        %s2072 = ssub.s32 %s38, 2
        // Predicated region
        $region125: #{tpu_custom_call.1} parent=123 // pred_check
          %p2073 = pneg %p429
        $region126: #{tpu_custom_call.1} parent=123 // pred_check_branch
          %2075 = sbr.rel (%p2073) target = $region128
        $region127: #{tpu_custom_call.1} parent=123 // pred_region
          %s2076 = sand.u32 %s414, 1
          %s2077 = scalar_lea.sflag [#allocation9], %s2076
          %s2078 = sand.u32 %s414, 1
          %s2079 = smul.addr %s2078, 16
          %s2080 = scalar_lea.vmem [#allocation19], %s2079
          %2081 = dma.done %s2077, 256
        $region128: #{tpu_custom_call.1} parent=123 // pred_fallthru
          _
      $region124: #{tpu_custom_call.1} parent=5 // pred_fallthru
        _
    $region6: #{tpu_custom_call.1} parent=1 // loop_footer
      %s42 = sadd.s32 1, %s38
    $region7: #{tpu_custom_call.1} parent=1 // loop_footer_branch
      %37 = sbr.rel target = $region3
    $region8: #{tpu_custom_call.1} parent=1 // loop_exit
      _
    %2082 = vsyncpa [#allocation8], 1
    %s2083 = scalar_lea.sflag [#allocation8], 1
    %2084 = vsyncpa %s2083, 1
    %2085 = vsyncpa [#allocation11], 1
    %s2086 = scalar_lea.sflag [#allocation11], 1
    %2087 = vsyncpa %s2086, 1
    %2088 = vsyncpa [#allocation14], 1
    %2089 = vsyncpa [#allocation17], 1
    %2090 = vsyncpa [#allocation9], 1
    %s2091 = scalar_lea.sflag [#allocation9], 1
    %2092 = vsyncpa %s2091, 1

// kernel: tpu_custom_call.1
$region0: #{tpu_custom_call.1}
  #allocation0 [shape = 'u32[]', space=smem, size = 0x4, offset = 0x4, fixed_abs, tag = 'smem constant byte address 0x4 - core index']
  #allocation1 [shape = 'u32[144,128]{1,0:T(1,128)}', space=vmem, size = 0x12000, scoped, tag = 'internal scratch']
  #allocation2 [shape = 'bf16[4,16,32]{2,1,0:T(16,128)(2,1)}', space=vmem, size = 0x4000, scoped, tag = 'scratch operand']
  #allocation3 [shape = 'bf16[4,16,32]{2,1,0:T(16,128)(2,1)}', space=vmem, size = 0x4000, scoped, tag = 'scratch operand']
  #allocation4 [shape = 'bf16[16,128]{1,0:T(16,128)(2,1)}', space=vmem, size = 0x1000, scoped, tag = 'scratch operand']
  #allocation5 [shape = 's32[1]{0}', space=sflag, size = 0x4, scoped, tag = 'scoped memory for tpu_custom_call.1']
  #allocation6 [shape = 'u8[512]{0}', space=smem, size = 0x200, scoped, tag = 'prefetched SMEM operand 0']
  %s0 = inlined_call_operand.hbm [shape: s32[2], index: 0, kind: input, shape index: {}]
  %s1 = inlined_call_operand.hbm [shape: bf16[2,16,128], index: 1, kind: input, shape index: {}]
  %s2 = inlined_call_operand.hbm [shape: f32[2,16,128], index: 2, kind: input, shape index: {}]
  %s3 = inlined_call_operand.hbm [shape: bf16[128,128], index: 3, kind: input, shape index: {}]
  %s4 = inlined_call_operand.vmem [shape: f32[1,128], index: 4, kind: input, shape index: {}]
  %s5 = inlined_call_operand.hbm [shape: bf16[128,256], index: 5, kind: input, shape index: {}]
  %s6 = inlined_call_operand.vmem [shape: f32[1,256], index: 6, kind: input, shape index: {}]
  %s7 = inlined_call_operand.hbm [shape: bf16[128,128], index: 7, kind: input, shape index: {}]
  %s8 = inlined_call_operand.vmem [shape: f32[1,128], index: 8, kind: input, shape index: {}]
  %s9 = inlined_call_operand.vmem [shape: f32[1,128], index: 9, kind: input, shape index: {}]
  %s10 = inlined_call_operand.vmem [shape: f32[1,128], index: 10, kind: input, shape index: {}]
  %s11 = inlined_call_operand.hbm [shape: bf16[128,256], index: 11, kind: input, shape index: {}]
  %s12 = inlined_call_operand.vmem [shape: f32[1,256], index: 12, kind: input, shape index: {}]
  %s13 = inlined_call_operand.hbm [shape: bf16[256,128], index: 13, kind: input, shape index: {}]
  %s14 = inlined_call_operand.vmem [shape: f32[1,128], index: 14, kind: input, shape index: {}]
  %s15 = inlined_call_operand.vmem [shape: f32[1,128], index: 15, kind: input, shape index: {}]
  %s16 = inlined_call_operand.vmem [shape: f32[1,128], index: 16, kind: input, shape index: {}]
  %s17 = inlined_call_operand.hbm [shape: f32[2,16,128], index: 17, kind: output, shape index: {}]
  %s18 = sld [smem:[#allocation0]]
  $region129: #{tpu_custom_call.1} parent=0
    _
  %s20 = ssub.s32 1, %s18
  %s21 = scalar_select 0, %s20, %s18
  %23 = dma.hbm_to_smem %s0, 16, [#allocation6], [#allocation5]
  %24 = dma.done [#allocation5], 16
  %25 = sfence
  $region1: #{tpu_custom_call.1} parent=0
    #allocation7 [shape = 'u8[8192]{0}', space=vmem, size = 0x2000, scoped, tag = 'input window, operand 1']
    #allocation8 [shape = 's32[2]{0}', space=sflag, size = 0x8, scoped, tag = 'scoped memory for tpu_custom_call.1']
    #allocation9 [shape = 's32[2]{0}', space=sflag, size = 0x8, scoped, tag = 'scoped memory for tpu_custom_call.1']
    #allocation10 [shape = 'u8[16384]{0}', space=vmem, size = 0x4000, scoped, tag = 'input window, operand 2']
    #allocation11 [shape = 's32[2]{0}', space=sflag, size = 0x8, scoped, tag = 'scoped memory for tpu_custom_call.1']
    #allocation12 [shape = 'u8[32768]{0}', space=vmem, size = 0x8000, scoped, tag = 'input window, operand 3, single buffered']
    #allocation13 [shape = 'u8[65536]{0}', space=vmem, size = 0x10000, scoped, tag = 'input window, operand 5, single buffered']
    #allocation14 [shape = 's32[1]{0}', space=sflag, size = 0x4, scoped, tag = 'scoped memory for tpu_custom_call.1']
    #allocation15 [shape = 'u8[32768]{0}', space=vmem, size = 0x8000, scoped, tag = 'input window, operand 7, single buffered']
    #allocation16 [shape = 'u8[65536]{0}', space=vmem, size = 0x10000, scoped, tag = 'input window, operand 11, single buffered']
    #allocation17 [shape = 's32[1]{0}', space=sflag, size = 0x4, scoped, tag = 'scoped memory for tpu_custom_call.1']
    #allocation18 [shape = 'u8[65536]{0}', space=vmem, size = 0x10000, scoped, tag = 'input window, operand 13, single buffered']
    #allocation19 [shape = 'u8[16384]{0}', space=vmem, size = 0x4000, scoped, tag = 'output window, operand 0']
    %26 = vsyncpa [#allocation8], 0
    %s27 = scalar_lea.sflag [#allocation8], 1
    %28 = vsyncpa %s27, 0
    %29 = vsyncpa [#allocation11], 0
    %s30 = scalar_lea.sflag [#allocation11], 1
    %31 = vsyncpa %s30, 0
    %32 = vsyncpa [#allocation14], 0
    %33 = vsyncpa [#allocation17], 0
    %34 = vsyncpa [#allocation9], 0
    %s35 = scalar_lea.sflag [#allocation9], 1
    %36 = vsyncpa %s35, 0
    loop: start=0, step=1, limit=4
    $region2: #{tpu_custom_call.1} parent=1 // loop_pre_header
      _
    $region3: #{tpu_custom_call.1} parent=1 // loop_header
      %s38 = sphi 0, %s42
      %p39 = scmp.ge.s32.totalorder %s38, 4
      %s45 = sphi 0, %s57
      %s46 = sphi 0, %s53
      %s47 = sphi 0, %s45
      %s48 = sphi 0, %s46
      %s49 = sphi 0, %s47
      %s50 = sphi 0, %s48
      %s60 = sphi 0, %s62
      %s63 = sphi 0, %s60
      %s64 = sphi 0, %s63
      %s80 = sphi 0, %s64
      %s88 = sphi 0, %s90
      %s91 = sphi 0, %s88
      %s92 = sphi 0, %s91
      %s108 = sphi 0, %s92
      %s112 = sphi 0, %s112
      %s114 = sphi 0, %s112
      %s115 = sphi 0, %s114
      %s129 = sphi 0, %s115
      %s133 = sphi 0, %s133
      %s135 = sphi 0, %s133
      %s136 = sphi 0, %s135
      %s150 = sphi 0, %s136
      %s154 = sphi 0, %s154
      %s156 = sphi 0, %s154
      %s157 = sphi 0, %s156
      %s171 = sphi 0, %s157
      %s175 = sphi 0, %s175
      %s177 = sphi 0, %s175
      %s178 = sphi 0, %s177
      %s192 = sphi 0, %s178
      %s196 = sphi 0, %s196
      %s198 = sphi 0, %s196
      %s199 = sphi 0, %s198
      %s213 = sphi 0, %s199
      %s217 = sphi 0, %s217
      %s219 = sphi 0, %s217
      %s220 = sphi 0, %s219
      %s234 = sphi 0, %s220
      %s238 = sphi 0, %s238
      %s240 = sphi 0, %s238
      %s241 = sphi 0, %s240
      %s255 = sphi 0, %s241
      %s259 = sphi 0, %s259
      %s261 = sphi 0, %s259
      %s262 = sphi 0, %s261
      %s276 = sphi 0, %s262
      %s280 = sphi 0, %s280
      %s282 = sphi 0, %s280
      %s283 = sphi 0, %s282
      %s297 = sphi 0, %s283
      %s301 = sphi 0, %s301
      %s303 = sphi 0, %s301
      %s304 = sphi 0, %s303
      %s318 = sphi 0, %s304
      %s322 = sphi 0, %s322
      %s324 = sphi 0, %s322
      %s325 = sphi 0, %s324
      %s339 = sphi 0, %s325
      %s343 = sphi 0, %s343
      %s345 = sphi 0, %s343
      %s346 = sphi 0, %s345
      %s360 = sphi 0, %s346
      %s364 = sphi 0, %s364
      %s366 = sphi 0, %s364
      %s367 = sphi 0, %s366
      %s381 = sphi 0, %s367
      %s385 = sphi 0, %s385
      %s387 = sphi 0, %s385
      %s388 = sphi 0, %s387
      %s402 = sphi 0, %s388
      %s410 = sphi 0, %s412
      %s413 = sphi 0, %s410
      %s414 = sphi 0, %s413
      %s430 = sphi 0, %s414
    $region4: #{tpu_custom_call.1} parent=1 // loop_header_branch
      %41 = sbr.rel (%p39) target = $region8
    $region5: #{tpu_custom_call.1} parent=1 // loop_body
      %s43 = ssub.s32 %s38, 1
      %s44 = ssub.s32 %s38, 2
      %s51 = sadd.s32 1, %s46
      %p52 = scmp.ge.s32.totalorder %s51, 1
      %s53 = scalar_select %p52, 0, %s51
      %s54 = sadd.s32 1, %s45
      %s55 = scalar_select %p52, %s54, %s45
      %p56 = scmp.ge.s32.totalorder %s55, 2
      %s57 = scalar_select %p56, 0, %s55
      %s58 = ssub.s32 %s45, %s57
      %p59 = scmp.eq.s32.totalorder %s58, 0
      %s61 = sadd.s32 %s60, 1
      %s62 = scalar_select %p59, %s60, %s61
      %p65 = pneg %p59
      %p66 = scmp.eq.s32.totalorder %s38, 1
      %p67 = por %p65, %p66
      %p68 = scmp.ne.s32.totalorder %s60, %s63
      %p69 = scmp.eq.s32.totalorder %s38, 0
      %p70 = por %p68, %p69
      %p71 = scmp.ne.s32.totalorder %s60, %s63
      %p72 = scmp.eq.s32.totalorder %s43, 1
      %p73 = por %p71, %p72
      %p74 = scmp.ne.s32.totalorder %s63, %s64
      %p75 = scmp.eq.s32.totalorder %s43, 0
      %p76 = por %p74, %p75
      %p77 = scmp.ne.s32.totalorder %s63, %s64
      %p78 = scmp.eq.s32.totalorder %s44, 1
      %p79 = por %p77, %p78
      %p81 = scmp.ne.s32.totalorder %s64, %s80
      %p82 = scmp.eq.s32.totalorder %s44, 0
      %p83 = por %p81, %p82
      %s84 = ssub.s32 %s45, %s57
      %s85 = ssub.s32 %s46, %s53
      %s86 = sor.u32 %s84, %s85
      %p87 = scmp.eq.s32.totalorder %s86, 0
      %s89 = sadd.s32 %s88, 1
      %s90 = scalar_select %p87, %s88, %s89
      %p93 = pneg %p87
      %p94 = scmp.eq.s32.totalorder %s38, 1
      %p95 = por %p93, %p94
      %p96 = scmp.ne.s32.totalorder %s88, %s91
      %p97 = scmp.eq.s32.totalorder %s38, 0
      %p98 = por %p96, %p97
      %p99 = scmp.ne.s32.totalorder %s88, %s91
      %p100 = scmp.eq.s32.totalorder %s43, 1
      %p101 = por %p99, %p100
      %p102 = scmp.ne.s32.totalorder %s91, %s92
      %p103 = scmp.eq.s32.totalorder %s43, 0
      %p104 = por %p102, %p103
      %p105 = scmp.ne.s32.totalorder %s91, %s92
      %p106 = scmp.eq.s32.totalorder %s44, 1
      %p107 = por %p105, %p106
      %p109 = scmp.ne.s32.totalorder %s92, %s108
      %p110 = scmp.eq.s32.totalorder %s44, 0
      %p111 = por %p109, %p110
      %s113 = sadd.s32 %s112, 1
      %p116 = scmp.eq.s32.totalorder %s38, 1
      %p117 = scmp.ne.s32.totalorder %s112, %s114
      %p118 = scmp.eq.s32.totalorder %s38, 0
      %p119 = por %p117, %p118
      %p120 = scmp.ne.s32.totalorder %s112, %s114
      %p121 = scmp.eq.s32.totalorder %s43, 1
      %p122 = por %p120, %p121
      %p123 = scmp.ne.s32.totalorder %s114, %s115
      %p124 = scmp.eq.s32.totalorder %s43, 0
      %p125 = por %p123, %p124
      %p126 = scmp.ne.s32.totalorder %s114, %s115
      %p127 = scmp.eq.s32.totalorder %s44, 1
      %p128 = por %p126, %p127
      %p130 = scmp.ne.s32.totalorder %s115, %s129
      %p131 = scmp.eq.s32.totalorder %s44, 0
      %p132 = por %p130, %p131
      %s134 = sadd.s32 %s133, 1
      %p137 = scmp.eq.s32.totalorder %s38, 1
      %p138 = scmp.ne.s32.totalorder %s133, %s135
      %p139 = scmp.eq.s32.totalorder %s38, 0
      %p140 = por %p138, %p139
      %p141 = scmp.ne.s32.totalorder %s133, %s135
      %p142 = scmp.eq.s32.totalorder %s43, 1
      %p143 = por %p141, %p142
      %p144 = scmp.ne.s32.totalorder %s135, %s136
      %p145 = scmp.eq.s32.totalorder %s43, 0
      %p146 = por %p144, %p145
      %p147 = scmp.ne.s32.totalorder %s135, %s136
      %p148 = scmp.eq.s32.totalorder %s44, 1
      %p149 = por %p147, %p148
      %p151 = scmp.ne.s32.totalorder %s136, %s150
      %p152 = scmp.eq.s32.totalorder %s44, 0
      %p153 = por %p151, %p152
      %s155 = sadd.s32 %s154, 1
      %p158 = scmp.eq.s32.totalorder %s38, 1
      %p159 = scmp.ne.s32.totalorder %s154, %s156
      %p160 = scmp.eq.s32.totalorder %s38, 0
      %p161 = por %p159, %p160
      %p162 = scmp.ne.s32.totalorder %s154, %s156
      %p163 = scmp.eq.s32.totalorder %s43, 1
      %p164 = por %p162, %p163
      %p165 = scmp.ne.s32.totalorder %s156, %s157
      %p166 = scmp.eq.s32.totalorder %s43, 0
      %p167 = por %p165, %p166
      %p168 = scmp.ne.s32.totalorder %s156, %s157
      %p169 = scmp.eq.s32.totalorder %s44, 1
      %p170 = por %p168, %p169
      %p172 = scmp.ne.s32.totalorder %s157, %s171
      %p173 = scmp.eq.s32.totalorder %s44, 0
      %p174 = por %p172, %p173
      %s176 = sadd.s32 %s175, 1
      %p179 = scmp.eq.s32.totalorder %s38, 1
      %p180 = scmp.ne.s32.totalorder %s175, %s177
      %p181 = scmp.eq.s32.totalorder %s38, 0
      %p182 = por %p180, %p181
      %p183 = scmp.ne.s32.totalorder %s175, %s177
      %p184 = scmp.eq.s32.totalorder %s43, 1
      %p185 = por %p183, %p184
      %p186 = scmp.ne.s32.totalorder %s177, %s178
      %p187 = scmp.eq.s32.totalorder %s43, 0
      %p188 = por %p186, %p187
      %p189 = scmp.ne.s32.totalorder %s177, %s178
      %p190 = scmp.eq.s32.totalorder %s44, 1
      %p191 = por %p189, %p190
      %p193 = scmp.ne.s32.totalorder %s178, %s192
      %p194 = scmp.eq.s32.totalorder %s44, 0
      %p195 = por %p193, %p194
      %s197 = sadd.s32 %s196, 1
      %p200 = scmp.eq.s32.totalorder %s38, 1
      %p201 = scmp.ne.s32.totalorder %s196, %s198
      %p202 = scmp.eq.s32.totalorder %s38, 0
      %p203 = por %p201, %p202
      %p204 = scmp.ne.s32.totalorder %s196, %s198
      %p205 = scmp.eq.s32.totalorder %s43, 1
      %p206 = por %p204, %p205
      %p207 = scmp.ne.s32.totalorder %s198, %s199
      %p208 = scmp.eq.s32.totalorder %s43, 0
      %p209 = por %p207, %p208
      %p210 = scmp.ne.s32.totalorder %s198, %s199
      %p211 = scmp.eq.s32.totalorder %s44, 1
      %p212 = por %p210, %p211
      %p214 = scmp.ne.s32.totalorder %s199, %s213
      %p215 = scmp.eq.s32.totalorder %s44, 0
      %p216 = por %p214, %p215
      %s218 = sadd.s32 %s217, 1
      %p221 = scmp.eq.s32.totalorder %s38, 1
      %p222 = scmp.ne.s32.totalorder %s217, %s219
      %p223 = scmp.eq.s32.totalorder %s38, 0
      %p224 = por %p222, %p223
      %p225 = scmp.ne.s32.totalorder %s217, %s219
      %p226 = scmp.eq.s32.totalorder %s43, 1
      %p227 = por %p225, %p226
      %p228 = scmp.ne.s32.totalorder %s219, %s220
      %p229 = scmp.eq.s32.totalorder %s43, 0
      %p230 = por %p228, %p229
      %p231 = scmp.ne.s32.totalorder %s219, %s220
      %p232 = scmp.eq.s32.totalorder %s44, 1
      %p233 = por %p231, %p232
      %p235 = scmp.ne.s32.totalorder %s220, %s234
      %p236 = scmp.eq.s32.totalorder %s44, 0
      %p237 = por %p235, %p236
      %s239 = sadd.s32 %s238, 1
      %p242 = scmp.eq.s32.totalorder %s38, 1
      %p243 = scmp.ne.s32.totalorder %s238, %s240
      %p244 = scmp.eq.s32.totalorder %s38, 0
      %p245 = por %p243, %p244
      %p246 = scmp.ne.s32.totalorder %s238, %s240
      %p247 = scmp.eq.s32.totalorder %s43, 1
      %p248 = por %p246, %p247
      %p249 = scmp.ne.s32.totalorder %s240, %s241
      %p250 = scmp.eq.s32.totalorder %s43, 0
      %p251 = por %p249, %p250
      %p252 = scmp.ne.s32.totalorder %s240, %s241
      %p253 = scmp.eq.s32.totalorder %s44, 1
      %p254 = por %p252, %p253
      %p256 = scmp.ne.s32.totalorder %s241, %s255
      %p257 = scmp.eq.s32.totalorder %s44, 0
      %p258 = por %p256, %p257
      %s260 = sadd.s32 %s259, 1
      %p263 = scmp.eq.s32.totalorder %s38, 1
      %p264 = scmp.ne.s32.totalorder %s259, %s261
      %p265 = scmp.eq.s32.totalorder %s38, 0
      %p266 = por %p264, %p265
      %p267 = scmp.ne.s32.totalorder %s259, %s261
      %p268 = scmp.eq.s32.totalorder %s43, 1
      %p269 = por %p267, %p268
      %p270 = scmp.ne.s32.totalorder %s261, %s262
      %p271 = scmp.eq.s32.totalorder %s43, 0
      %p272 = por %p270, %p271
      %p273 = scmp.ne.s32.totalorder %s261, %s262
      %p274 = scmp.eq.s32.totalorder %s44, 1
      %p275 = por %p273, %p274
      %p277 = scmp.ne.s32.totalorder %s262, %s276
      %p278 = scmp.eq.s32.totalorder %s44, 0
      %p279 = por %p277, %p278
      %s281 = sadd.s32 %s280, 1
      %p284 = scmp.eq.s32.totalorder %s38, 1
      %p285 = scmp.ne.s32.totalorder %s280, %s282
      %p286 = scmp.eq.s32.totalorder %s38, 0
      %p287 = por %p285, %p286
      %p288 = scmp.ne.s32.totalorder %s280, %s282
      %p289 = scmp.eq.s32.totalorder %s43, 1
      %p290 = por %p288, %p289
      %p291 = scmp.ne.s32.totalorder %s282, %s283
      %p292 = scmp.eq.s32.totalorder %s43, 0
      %p293 = por %p291, %p292
      %p294 = scmp.ne.s32.totalorder %s282, %s283
      %p295 = scmp.eq.s32.totalorder %s44, 1
      %p296 = por %p294, %p295
      %p298 = scmp.ne.s32.totalorder %s283, %s297
      %p299 = scmp.eq.s32.totalorder %s44, 0
      %p300 = por %p298, %p299
      %s302 = sadd.s32 %s301, 1
      %p305 = scmp.eq.s32.totalorder %s38, 1
      %p306 = scmp.ne.s32.totalorder %s301, %s303
      %p307 = scmp.eq.s32.totalorder %s38, 0
      %p308 = por %p306, %p307
      %p309 = scmp.ne.s32.totalorder %s301, %s303
      %p310 = scmp.eq.s32.totalorder %s43, 1
      %p311 = por %p309, %p310
      %p312 = scmp.ne.s32.totalorder %s303, %s304
      %p313 = scmp.eq.s32.totalorder %s43, 0
      %p314 = por %p312, %p313
      %p315 = scmp.ne.s32.totalorder %s303, %s304
      %p316 = scmp.eq.s32.totalorder %s44, 1
      %p317 = por %p315, %p316
      %p319 = scmp.ne.s32.totalorder %s304, %s318
      %p320 = scmp.eq.s32.totalorder %s44, 0
      %p321 = por %p319, %p320
      %s323 = sadd.s32 %s322, 1
      %p326 = scmp.eq.s32.totalorder %s38, 1
      %p327 = scmp.ne.s32.totalorder %s322, %s324
      %p328 = scmp.eq.s32.totalorder %s38, 0
      %p329 = por %p327, %p328
      %p330 = scmp.ne.s32.totalorder %s322, %s324
      %p331 = scmp.eq.s32.totalorder %s43, 1
      %p332 = por %p330, %p331
      %p333 = scmp.ne.s32.totalorder %s324, %s325
      %p334 = scmp.eq.s32.totalorder %s43, 0
      %p335 = por %p333, %p334
      %p336 = scmp.ne.s32.totalorder %s324, %s325
      %p337 = scmp.eq.s32.totalorder %s44, 1
      %p338 = por %p336, %p337
      %p340 = scmp.ne.s32.totalorder %s325, %s339
      %p341 = scmp.eq.s32.totalorder %s44, 0
      %p342 = por %p340, %p341
      %s344 = sadd.s32 %s343, 1
      %p347 = scmp.eq.s32.totalorder %s38, 1
      %p348 = scmp.ne.s32.totalorder %s343, %s345
      %p349 = scmp.eq.s32.totalorder %s38, 0
      %p350 = por %p348, %p349
      %p351 = scmp.ne.s32.totalorder %s343, %s345
      %p352 = scmp.eq.s32.totalorder %s43, 1
      %p353 = por %p351, %p352
      %p354 = scmp.ne.s32.totalorder %s345, %s346
      %p355 = scmp.eq.s32.totalorder %s43, 0
      %p356 = por %p354, %p355
      %p357 = scmp.ne.s32.totalorder %s345, %s346
      %p358 = scmp.eq.s32.totalorder %s44, 1
      %p359 = por %p357, %p358
      %p361 = scmp.ne.s32.totalorder %s346, %s360
      %p362 = scmp.eq.s32.totalorder %s44, 0
      %p363 = por %p361, %p362
      %s365 = sadd.s32 %s364, 1
      %p368 = scmp.eq.s32.totalorder %s38, 1
      %p369 = scmp.ne.s32.totalorder %s364, %s366
      %p370 = scmp.eq.s32.totalorder %s38, 0
      %p371 = por %p369, %p370
      %p372 = scmp.ne.s32.totalorder %s364, %s366
      %p373 = scmp.eq.s32.totalorder %s43, 1
      %p374 = por %p372, %p373
      %p375 = scmp.ne.s32.totalorder %s366, %s367
      %p376 = scmp.eq.s32.totalorder %s43, 0
      %p377 = por %p375, %p376
      %p378 = scmp.ne.s32.totalorder %s366, %s367
      %p379 = scmp.eq.s32.totalorder %s44, 1
      %p380 = por %p378, %p379
      %p382 = scmp.ne.s32.totalorder %s367, %s381
      %p383 = scmp.eq.s32.totalorder %s44, 0
      %p384 = por %p382, %p383
      %s386 = sadd.s32 %s385, 1
      %p389 = scmp.eq.s32.totalorder %s38, 1
      %p390 = scmp.ne.s32.totalorder %s385, %s387
      %p391 = scmp.eq.s32.totalorder %s38, 0
      %p392 = por %p390, %p391
      %p393 = scmp.ne.s32.totalorder %s385, %s387
      %p394 = scmp.eq.s32.totalorder %s43, 1
      %p395 = por %p393, %p394
      %p396 = scmp.ne.s32.totalorder %s387, %s388
      %p397 = scmp.eq.s32.totalorder %s43, 0
      %p398 = por %p396, %p397
      %p399 = scmp.ne.s32.totalorder %s387, %s388
      %p400 = scmp.eq.s32.totalorder %s44, 1
      %p401 = por %p399, %p400
      %p403 = scmp.ne.s32.totalorder %s388, %s402
      %p404 = scmp.eq.s32.totalorder %s44, 0
      %p405 = por %p403, %p404
      %s406 = ssub.s32 %s45, %s57
      %s407 = ssub.s32 %s46, %s53
      %s408 = sor.u32 %s406, %s407
      %p409 = scmp.eq.s32.totalorder %s408, 0
      %s411 = sadd.s32 %s410, 1
      %s412 = scalar_select %p409, %s410, %s411
      %p415 = pneg %p409
      %p416 = scmp.eq.s32.totalorder %s38, 1
      %p417 = por %p415, %p416
      %p418 = scmp.ne.s32.totalorder %s410, %s413
      %p419 = scmp.eq.s32.totalorder %s38, 0
      %p420 = por %p418, %p419
      %p421 = scmp.ne.s32.totalorder %s410, %s413
      %p422 = scmp.eq.s32.totalorder %s43, 1
      %p423 = por %p421, %p422
      %p424 = scmp.ne.s32.totalorder %s413, %s414
      %p425 = scmp.eq.s32.totalorder %s43, 0
      %p426 = por %p424, %p425
      %p427 = scmp.ne.s32.totalorder %s413, %s414
      %p428 = scmp.eq.s32.totalorder %s44, 1
      %p429 = por %p427, %p428
      %p431 = scmp.ne.s32.totalorder %s414, %s430
      %p432 = scmp.eq.s32.totalorder %s44, 0
      %p433 = por %p431, %p432
      %p434 = scmp.le.s32.totalorder 1, %s38
      %p435 = scmp.lt.s32.totalorder %s38, 3
      %p436 = pnand %p434, %p435
      %p437 = pneg %p436
      // Predicated region
      $region9: #{tpu_custom_call.1} parent=5 // pred_check
        _
      $region10: #{tpu_custom_call.1} parent=5 // pred_check_branch
        %439 = sbr.rel (%p436) target = $region12
      $region11: #{tpu_custom_call.1} parent=5 // pred_region
        %s440 = ssub.s32 %s38, 1
        // Predicated region
        $region13: #{tpu_custom_call.1} parent=11 // pred_check
          %p441 = pneg %p125
        $region14: #{tpu_custom_call.1} parent=11 // pred_check_branch
          %443 = sbr.rel (%p441) target = $region16
        $region15: #{tpu_custom_call.1} parent=11 // pred_region
          %s445 = ssub.s32 1024, 1024
          %446 = vsyncadd [#allocation11], %s445
          %s447 = sshll.u32 [#allocation12], 4
          %s448 = int_to_ptr.vmem [resolvable:$true] %s447
          %453 = dma.hbm_to_vmem [thread:$0]  %s3, 1024, %s448, [#allocation11], 64, 64, 4
        $region16: #{tpu_custom_call.1} parent=11 // pred_fallthru
          _
        // Predicated region
        $region17: #{tpu_custom_call.1} parent=11 // pred_check
          %p454 = pneg %p146
        $region18: #{tpu_custom_call.1} parent=11 // pred_check_branch
          %456 = sbr.rel (%p454) target = $region20
        $region19: #{tpu_custom_call.1} parent=11 // pred_region
          _
        $region20: #{tpu_custom_call.1} parent=11 // pred_fallthru
          _
        // Predicated region
        $region21: #{tpu_custom_call.1} parent=11 // pred_check
          %p457 = pneg %p167
        $region22: #{tpu_custom_call.1} parent=11 // pred_check_branch
          %459 = sbr.rel (%p457) target = $region24
        $region23: #{tpu_custom_call.1} parent=11 // pred_region
          %s461 = ssub.s32 2048, 2048
          %462 = vsyncadd [#allocation14], %s461
          %s463 = sshll.u32 [#allocation13], 4
          %s464 = int_to_ptr.vmem [resolvable:$true] %s463
          %469 = dma.hbm_to_vmem [thread:$0]  %s5, 2048, %s464, [#allocation14], 128, 128, 8
        $region24: #{tpu_custom_call.1} parent=11 // pred_fallthru
          _
        // Predicated region
        $region25: #{tpu_custom_call.1} parent=11 // pred_check
          %p470 = pneg %p188
        $region26: #{tpu_custom_call.1} parent=11 // pred_check_branch
          %472 = sbr.rel (%p470) target = $region28
        $region27: #{tpu_custom_call.1} parent=11 // pred_region
          _
        $region28: #{tpu_custom_call.1} parent=11 // pred_fallthru
          _
        // Predicated region
        $region29: #{tpu_custom_call.1} parent=11 // pred_check
          %p473 = pneg %p209
        $region30: #{tpu_custom_call.1} parent=11 // pred_check_branch
          %475 = sbr.rel (%p473) target = $region32
        $region31: #{tpu_custom_call.1} parent=11 // pred_region
          %s477 = ssub.s32 1024, 1024
          %478 = vsyncadd [#allocation14], %s477
          %s479 = sshll.u32 [#allocation15], 4
          %s480 = int_to_ptr.vmem [resolvable:$true] %s479
          %485 = dma.hbm_to_vmem [thread:$0]  %s7, 1024, %s480, [#allocation14], 64, 64, 4
        $region32: #{tpu_custom_call.1} parent=11 // pred_fallthru
          _
        // Predicated region
        $region33: #{tpu_custom_call.1} parent=11 // pred_check
          %p486 = pneg %p230
        $region34: #{tpu_custom_call.1} parent=11 // pred_check_branch
          %488 = sbr.rel (%p486) target = $region36
        $region35: #{tpu_custom_call.1} parent=11 // pred_region
          _
        $region36: #{tpu_custom_call.1} parent=11 // pred_fallthru
          _
        // Predicated region
        $region37: #{tpu_custom_call.1} parent=11 // pred_check
          %p489 = pneg %p251
        $region38: #{tpu_custom_call.1} parent=11 // pred_check_branch
          %491 = sbr.rel (%p489) target = $region40
        $region39: #{tpu_custom_call.1} parent=11 // pred_region
          _
        $region40: #{tpu_custom_call.1} parent=11 // pred_fallthru
          _
        // Predicated region
        $region41: #{tpu_custom_call.1} parent=11 // pred_check
          %p492 = pneg %p272
        $region42: #{tpu_custom_call.1} parent=11 // pred_check_branch
          %494 = sbr.rel (%p492) target = $region44
        $region43: #{tpu_custom_call.1} parent=11 // pred_region
          _
        $region44: #{tpu_custom_call.1} parent=11 // pred_fallthru
          _
        // Predicated region
        $region45: #{tpu_custom_call.1} parent=11 // pred_check
          %p495 = pneg %p293
        $region46: #{tpu_custom_call.1} parent=11 // pred_check_branch
          %497 = sbr.rel (%p495) target = $region48
        $region47: #{tpu_custom_call.1} parent=11 // pred_region
          %s499 = ssub.s32 2048, 2048
          %500 = vsyncadd [#allocation17], %s499
          %s501 = sshll.u32 [#allocation16], 4
          %s502 = int_to_ptr.vmem [resolvable:$true] %s501
          %507 = dma.hbm_to_vmem [thread:$0]  %s11, 2048, %s502, [#allocation17], 128, 128, 8
        $region48: #{tpu_custom_call.1} parent=11 // pred_fallthru
          _
        // Predicated region
        $region49: #{tpu_custom_call.1} parent=11 // pred_check
          %p508 = pneg %p314
        $region50: #{tpu_custom_call.1} parent=11 // pred_check_branch
          %510 = sbr.rel (%p508) target = $region52
        $region51: #{tpu_custom_call.1} parent=11 // pred_region
          _
        $region52: #{tpu_custom_call.1} parent=11 // pred_fallthru
          _
        // Predicated region
        $region53: #{tpu_custom_call.1} parent=11 // pred_check
          %p511 = pneg %p335
        $region54: #{tpu_custom_call.1} parent=11 // pred_check_branch
          %513 = sbr.rel (%p511) target = $region56
        $region55: #{tpu_custom_call.1} parent=11 // pred_region
          %s515 = ssub.s32 2048, 2048
          %516 = vsyncadd [#allocation17], %s515
          %s517 = sshll.u32 [#allocation18], 4
          %s518 = int_to_ptr.vmem [resolvable:$true] %s517
          %523 = dma.hbm_to_vmem [thread:$0]  %s13, 2048, %s518, [#allocation17], 64, 64, 4
        $region56: #{tpu_custom_call.1} parent=11 // pred_fallthru
          _
        // Predicated region
        $region57: #{tpu_custom_call.1} parent=11 // pred_check
          %p524 = pneg %p356
        $region58: #{tpu_custom_call.1} parent=11 // pred_check_branch
          %526 = sbr.rel (%p524) target = $region60
        $region59: #{tpu_custom_call.1} parent=11 // pred_region
          _
        $region60: #{tpu_custom_call.1} parent=11 // pred_fallthru
          _
        // Predicated region
        $region61: #{tpu_custom_call.1} parent=11 // pred_check
          %p527 = pneg %p377
        $region62: #{tpu_custom_call.1} parent=11 // pred_check_branch
          %529 = sbr.rel (%p527) target = $region64
        $region63: #{tpu_custom_call.1} parent=11 // pred_region
          _
        $region64: #{tpu_custom_call.1} parent=11 // pred_fallthru
          _
        // Predicated region
        $region65: #{tpu_custom_call.1} parent=11 // pred_check
          %p530 = pneg %p398
        $region66: #{tpu_custom_call.1} parent=11 // pred_check_branch
          %532 = sbr.rel (%p530) target = $region68
        $region67: #{tpu_custom_call.1} parent=11 // pred_region
          _
        $region68: #{tpu_custom_call.1} parent=11 // pred_fallthru
          _
      $region12: #{tpu_custom_call.1} parent=5 // pred_fallthru
        _
      %p533 = scmp.lt.s32.totalorder %s38, 2
      // Predicated region
      $region69: #{tpu_custom_call.1} parent=5 // pred_check
        %p534 = pneg %p533
      $region70: #{tpu_custom_call.1} parent=5 // pred_check_branch
        %536 = sbr.rel (%p534) target = $region72
      $region71: #{tpu_custom_call.1} parent=5 // pred_region
        // Predicated region
        $region73: #{tpu_custom_call.1} parent=71 // pred_check
          %p537 = pneg %p70
        $region74: #{tpu_custom_call.1} parent=71 // pred_check_branch
          %539 = sbr.rel (%p537) target = $region76
        $region75: #{tpu_custom_call.1} parent=71 // pred_region
          %s540 = sand.u32 %s60, 1
          %s541 = scalar_lea.sflag [#allocation8], %s540
          %s542 = sand.u32 %s60, 1
          %s543 = smul.addr %s542, 8
          %s544 = scalar_lea.vmem [#allocation7], %s543
          %s546 = ssub.s32 128, 128
          %547 = vsyncadd %s541, %s546
          %s548 = smul.addr %s45, 2
          %s549 = smul.addr %s548, 64
          %s550 = scalar_lea.hbm %s1, %s549
          %s551 = sshll.u32 %s544, 4
          %s552 = int_to_ptr.vmem [resolvable:$true] %s551
          %557 = dma.hbm_to_vmem [thread:$0]  %s550, 128, %s552, %s541, 64, 64, 4
        $region76: #{tpu_custom_call.1} parent=71 // pred_fallthru
          _
        // Predicated region
        $region77: #{tpu_custom_call.1} parent=71 // pred_check
          %p558 = pneg %p98
        $region78: #{tpu_custom_call.1} parent=71 // pred_check_branch
          %560 = sbr.rel (%p558) target = $region80
        $region79: #{tpu_custom_call.1} parent=71 // pred_region
          %s561 = sand.u32 %s38, 1
          %s562 = scalar_lea.sflag [#allocation11], %s561
          %s563 = sand.u32 %s88, 1
          %s564 = smul.addr %s563, 16
          %s565 = scalar_lea.vmem [#allocation10], %s564
          %s566 = smul.u32 2, %s46
          %s568 = ssub.s32 256, 256
          %569 = vsyncadd %s562, %s568
          %s570 = smul.addr %s45, 2
          %s571 = sadd.s32 %s566, %s570
          %s572 = smul.addr %s571, 128
          %s573 = scalar_lea.hbm %s2, %s572
          %s574 = sshll.u32 %s565, 4
          %s575 = int_to_ptr.vmem [resolvable:$true] %s574
          %580 = dma.hbm_to_vmem [thread:$0]  %s573, 256, %s575, %s562, 128, 128, 8
        $region80: #{tpu_custom_call.1} parent=71 // pred_fallthru
          _
      $region72: #{tpu_custom_call.1} parent=5 // pred_fallthru
        _
      %p581 = scmp.le.s32.totalorder 1, %s38
      %p582 = scmp.lt.s32.totalorder %s38, 3
      %p583 = pnand %p581, %p582
      %p584 = pneg %p583
      // Predicated region
      $region81: #{tpu_custom_call.1} parent=5 // pred_check
        _
      $region82: #{tpu_custom_call.1} parent=5 // pred_check_branch
        %586 = sbr.rel (%p583) target = $region84
      $region83: #{tpu_custom_call.1} parent=5 // pred_region
        %s587 = ssub.s32 %s38, 1
        %s588 = sand.u32 %s63, 1
        %s589 = scalar_lea.sflag [#allocation8], %s588
        %s590 = sand.u32 %s63, 1
        %s591 = smul.addr %s590, 8
        %s592 = scalar_lea.vmem [#allocation7], %s591
        // Predicated region
        $region85: #{tpu_custom_call.1} parent=83 // pred_check
          %p593 = pneg %p76
        $region86: #{tpu_custom_call.1} parent=83 // pred_check_branch
          %595 = sbr.rel (%p593) target = $region88
        $region87: #{tpu_custom_call.1} parent=83 // pred_region
          %596 = dma.done %s589, 128
        $region88: #{tpu_custom_call.1} parent=83 // pred_fallthru
          _
        %s597 = sand.u32 %s43, 1
        %s598 = scalar_lea.sflag [#allocation11], %s597
        %s599 = sand.u32 %s91, 1
        %s600 = smul.addr %s599, 16
        %s601 = scalar_lea.vmem [#allocation10], %s600
        // Predicated region
        $region89: #{tpu_custom_call.1} parent=83 // pred_check
          %p602 = pneg %p104
        $region90: #{tpu_custom_call.1} parent=83 // pred_check_branch
          %604 = sbr.rel (%p602) target = $region92
        $region91: #{tpu_custom_call.1} parent=83 // pred_region
          %605 = dma.done %s598, 256
        $region92: #{tpu_custom_call.1} parent=83 // pred_fallthru
          _
        // Predicated region
        $region93: #{tpu_custom_call.1} parent=83 // pred_check
          %p606 = pneg %p125
        $region94: #{tpu_custom_call.1} parent=83 // pred_check_branch
          %608 = sbr.rel (%p606) target = $region96
        $region95: #{tpu_custom_call.1} parent=83 // pred_region
          %609 = dma.done [#allocation11], 1024
        $region96: #{tpu_custom_call.1} parent=83 // pred_fallthru
          _
        // Predicated region
        $region97: #{tpu_custom_call.1} parent=83 // pred_check
          %p610 = pneg %p167
        $region98: #{tpu_custom_call.1} parent=83 // pred_check_branch
          %612 = sbr.rel (%p610) target = $region100
        $region99: #{tpu_custom_call.1} parent=83 // pred_region
          %613 = dma.done [#allocation14], 2048
        $region100: #{tpu_custom_call.1} parent=83 // pred_fallthru
          _
        // Predicated region
        $region101: #{tpu_custom_call.1} parent=83 // pred_check
          %p614 = pneg %p209
        $region102: #{tpu_custom_call.1} parent=83 // pred_check_branch
          %616 = sbr.rel (%p614) target = $region104
        $region103: #{tpu_custom_call.1} parent=83 // pred_region
          %617 = dma.done [#allocation14], 1024
        $region104: #{tpu_custom_call.1} parent=83 // pred_fallthru
          _
        // Predicated region
        $region105: #{tpu_custom_call.1} parent=83 // pred_check
          %p618 = pneg %p293
        $region106: #{tpu_custom_call.1} parent=83 // pred_check_branch
          %620 = sbr.rel (%p618) target = $region108
        $region107: #{tpu_custom_call.1} parent=83 // pred_region
          %621 = dma.done [#allocation17], 2048
        $region108: #{tpu_custom_call.1} parent=83 // pred_fallthru
          _
        // Predicated region
        $region109: #{tpu_custom_call.1} parent=83 // pred_check
          %p622 = pneg %p335
        $region110: #{tpu_custom_call.1} parent=83 // pred_check_branch
          %624 = sbr.rel (%p622) target = $region112
        $region111: #{tpu_custom_call.1} parent=83 // pred_region
          %625 = dma.done [#allocation17], 2048
        $region112: #{tpu_custom_call.1} parent=83 // pred_fallthru
          _
        %s626 = sand.u32 %s63, 1
        %s627 = scalar_lea.sflag [#allocation8], %s626
        %s628 = sand.u32 %s63, 1
        %s629 = smul.addr %s628, 8
        %s630 = scalar_lea.vmem [#allocation7], %s629
        %p631 = pneg %p76
        %p632 = pneg %p73
        %s633 = sand.u32 %s43, 1
        %s634 = scalar_lea.sflag [#allocation11], %s633
        %s635 = sand.u32 %s91, 1
        %s636 = smul.addr %s635, 16
        %s637 = scalar_lea.vmem [#allocation10], %s636
        %p638 = pneg %p104
        %p639 = pneg %p101
        %p640 = pneg %p125
        %p641 = pneg %p122
        %p642 = pneg %p146
        %p643 = pneg %p143
        %p644 = pneg %p167
        %p645 = pneg %p164
        %p646 = pneg %p188
        %p647 = pneg %p185
        %p648 = pneg %p209
        %p649 = pneg %p206
        %p650 = pneg %p230
        %p651 = pneg %p227
        %p652 = pneg %p251
        %p653 = pneg %p248
        %p654 = pneg %p272
        %p655 = pneg %p269
        %p656 = pneg %p293
        %p657 = pneg %p290
        %p658 = pneg %p314
        %p659 = pneg %p311
        %p660 = pneg %p335
        %p661 = pneg %p332
        %p662 = pneg %p356
        %p663 = pneg %p353
        %p664 = pneg %p377
        %p665 = pneg %p374
        %p666 = pneg %p398
        %p667 = pneg %p395
        %p668 = pneg %p426
        %p669 = pneg %p423
        %s670 = sand.u32 %s413, 1
        %s671 = scalar_lea.sflag [#allocation9], %s670
        %s672 = sand.u32 %s413, 1
        %s673 = smul.addr %s672, 16
        %s674 = scalar_lea.vmem [#allocation19], %s673
        %s675 = smul.u32 2, %s48
        %s676 = smul.u32 2, %s48
        %p678 = scmp.eq.s32.totalorder %s48, 0
        // Predicated region
        $region113: #{tpu_custom_call.1} parent=83 // pred_check
          %p679 = pneg %p678
        $region114: #{tpu_custom_call.1} parent=83 // pred_check_branch
          %681 = sbr.rel (%p679) target = $region116
        $region115: #{tpu_custom_call.1} parent=83 // pred_region
          %v682 = vld [vmem:[%s592] sm:$0xf]
          %v683 = vld [vmem:[%s592 + $0x4] sm:$0xf]
          %v684 = vld [vmem:[#allocation13] sm:$0xff]
          %v685 = vld [vmem:[#allocation13 + $0x8] sm:$0xff]
          %v686 = vld [vmem:[#allocation13 + $0x10] sm:$0xff]
          %v687 = vld [vmem:[#allocation13 + $0x18] sm:$0xff]
          %v688 = vld [vmem:[#allocation13 + $0x20] sm:$0xff]
          %v689 = vld [vmem:[#allocation13 + $0x28] sm:$0xff]
          %v690 = vld [vmem:[#allocation13 + $0x30] sm:$0xff]
          %v691 = vld [vmem:[#allocation13 + $0x38] sm:$0xff]
          %v692 = vld [vmem:[#allocation13 + $0x40] sm:$0xff]
          %v693 = vld [vmem:[#allocation13 + $0x48] sm:$0xff]
          %v694 = vld [vmem:[#allocation13 + $0x50] sm:$0xff]
          %v695 = vld [vmem:[#allocation13 + $0x58] sm:$0xff]
          %v696 = vld [vmem:[#allocation13 + $0x60] sm:$0xff]
          %v697 = vld [vmem:[#allocation13 + $0x68] sm:$0xff]
          %v698 = vld [vmem:[#allocation13 + $0x70] sm:$0xff]
          %v699 = vld [vmem:[#allocation13 + $0x78] sm:$0xff]
          %v700 = vld [vmem:[%s6] sm:$0x3]
          %v702 = vlaneseq
          %v703 = vshrl.u32 %v702, 7
          %v704 = vsub.s32 0, %v703
          %v705 = vrot.slane %v700, %v704
          %v706 = vlaneseq
          %v707 = vshrl.u32 %v706, 7
          %v708 = vsub.s32 1, %v707
          %v709 = vrot.slane %v700, %v708
          %v714 = vunpack.c.l.b16 %v682
          %v715 = vunpack.c.l.b16 %v683
          %v716 = vpack.c.b16 %v715, %v714
          %v734 = vunpack.c.l.b16 %v684
          %v735 = vunpack.c.h.b16 %v684
          %v736 = vunpack.c.l.b16 %v685
          %v737 = vunpack.c.h.b16 %v685
          %v738 = vunpack.c.l.b16 %v686
          %v739 = vunpack.c.h.b16 %v686
          %v740 = vunpack.c.l.b16 %v687
          %v741 = vunpack.c.h.b16 %v687
          %v742 = vunpack.c.l.b16 %v688
          %v743 = vunpack.c.h.b16 %v688
          %v744 = vunpack.c.l.b16 %v689
          %v745 = vunpack.c.h.b16 %v689
          %v746 = vunpack.c.l.b16 %v690
          %v747 = vunpack.c.h.b16 %v690
          %v748 = vunpack.c.l.b16 %v691
          %v749 = vunpack.c.h.b16 %v691
          %v750 = vunpack.c.l.b16 %v692
          %v751 = vunpack.c.h.b16 %v692
          %v752 = vunpack.c.l.b16 %v693
          %v753 = vunpack.c.h.b16 %v693
          %v754 = vunpack.c.l.b16 %v694
          %v755 = vunpack.c.h.b16 %v694
          %v756 = vunpack.c.l.b16 %v695
          %v757 = vunpack.c.h.b16 %v695
          %v758 = vunpack.c.l.b16 %v696
          %v759 = vunpack.c.h.b16 %v696
          %v760 = vunpack.c.l.b16 %v697
          %v761 = vunpack.c.h.b16 %v697
          %v762 = vunpack.c.l.b16 %v698
          %v763 = vunpack.c.h.b16 %v698
          %v764 = vunpack.c.l.b16 %v699
          %v765 = vunpack.c.h.b16 %v699
          %v766 = vpack.c.b16 %v736, %v734
          %v767 = vpack.c.b16 %v737, %v735
          %v768 = vpack.c.b16 %v740, %v738
          %v769 = vpack.c.b16 %v741, %v739
          %v770 = vpack.c.b16 %v744, %v742
          %v771 = vpack.c.b16 %v745, %v743
          %v772 = vpack.c.b16 %v748, %v746
          %v773 = vpack.c.b16 %v749, %v747
          %v774 = vpack.c.b16 %v752, %v750
          %v775 = vpack.c.b16 %v753, %v751
          %v776 = vpack.c.b16 %v756, %v754
          %v777 = vpack.c.b16 %v757, %v755
          %v778 = vpack.c.b16 %v760, %v758
          %v779 = vpack.c.b16 %v761, %v759
          %v780 = vpack.c.b16 %v764, %v762
          %v781 = vpack.c.b16 %v765, %v763
          %798 = vmatprep.subr.bf16.mxu0 %v767
          %799 = vmatpush1.bf16.msra.mxu0 %v766
          %800 = vmatprep.subr.bf16.mxu0 %v769
          %801 = vmatpush1.bf16.msra.mxu0 %v768
          %802 = vmatprep.subr.bf16.mxu0 %v771
          %803 = vmatpush1.bf16.msra.mxu0 %v770
          %804 = vmatprep.subr.bf16.mxu0 %v773
          %805 = vmatpush1.bf16.msra.mxu0 %v772
          %806 = vmatprep.subr.bf16.mxu0 %v775
          %807 = vmatpush1.bf16.msra.mxu0 %v774
          %808 = vmatprep.subr.bf16.mxu0 %v777
          %809 = vmatpush1.bf16.msra.mxu0 %v776
          %810 = vmatprep.subr.bf16.mxu0 %v779
          %811 = vmatpush1.bf16.msra.mxu0 %v778
          %812 = vmatprep.subr.bf16.mxu0 %v781
          %813 = vmatpush1.bf16.msra.mxu0 %v780
          %814 = vmatprep.subr.bf16.mxu0 0
          %815 = vmatpush1.bf16.msra.mxu0 0
          %816 = vmatprep.subr.bf16.mxu0 0
          %817 = vmatpush1.bf16.msra.mxu0 0
          %818 = vmatprep.subr.bf16.mxu0 0
          %819 = vmatpush1.bf16.msra.mxu0 0
          %820 = vmatprep.subr.bf16.mxu0 0
          %821 = vmatpush1.bf16.msra.mxu0 0
          %822 = vmatprep.subr.bf16.mxu0 0
          %823 = vmatpush1.bf16.msra.mxu0 0
          %824 = vmatprep.subr.bf16.mxu0 0
          %825 = vmatpush1.bf16.msra.mxu0 0
          %826 = vmatprep.subr.bf16.mxu0 0
          %827 = vmatpush1.bf16.msra.mxu0 0
          %828 = vmatprep.subr.bf16.mxu0 0
          %829 = vmatpush1.bf16.msra.mxu0 0
          %830 = vmatprep.mubr.bf16.mxu0 0
          %831 = vmatmul.mubr.bf16.gmra.mrb[0].mxu0 %v716
          %v832 = vpop.f32.mrb[0].mxu0
          %v833 = vadd.f32 %v705, %v832
          %v834 = vpop.f32.mrb[0].mxu0
          %v835 = vadd.f32 %v709, %v834
          %v836 = vpop.f32.mrb[0].mxu0
          %v837 = vadd.f32 %v705, %v836
          %v838 = vpop.f32.mrb[0].mxu0
          %v839 = vadd.f32 %v709, %v838
          %840 = vdwg.mxu0
          %v841 = vpack.c.bf16 %v837, %v833
          %v842 = vpack.c.bf16 %v839, %v835
          %vm843 = vcmask 261120
          %844 = vst.msk [vmem:[#allocation2] sm:$0xff] %vm843, %v841
          %845 = vst.msk [vmem:[#allocation3] sm:$0xff] %vm843, %v842
          %847 = vrot.lane.b32.xlu0 %v841, 96
          %v848 = vpop.permute.xlu0 %847
          %s850 = scalar_lea.vmem [#allocation2], 8
          %851 = vst.msk [vmem:[%s850] sm:$0xff] %vm843, %v848
          %853 = vrot.lane.b32.xlu0 %v842, 96
          %v854 = vpop.permute.xlu0 %853
          %s856 = scalar_lea.vmem [#allocation3], 8
          %857 = vst.msk [vmem:[%s856] sm:$0xff] %vm843, %v854
          %858 = vrot.lane.b32.xlu0 %v841, 64
          %v859 = vpop.permute.xlu0 %858
          %s861 = scalar_lea.vmem [#allocation2], 16
          %862 = vst.msk [vmem:[%s861] sm:$0xff] %vm843, %v859
          %863 = vrot.lane.b32.xlu0 %v842, 64
          %v864 = vpop.permute.xlu0 %863
          %s866 = scalar_lea.vmem [#allocation3], 16
          %867 = vst.msk [vmem:[%s866] sm:$0xff] %vm843, %v864
          %868 = vrot.lane.b32.xlu0 %v841, 32
          %v869 = vpop.permute.xlu0 %868
          %s871 = scalar_lea.vmem [#allocation2], 24
          %872 = vst.msk [vmem:[%s871] sm:$0xff] %vm843, %v869
          %873 = vrot.lane.b32.xlu0 %v842, 32
          %v874 = vpop.permute.xlu0 %873
          %s876 = scalar_lea.vmem [#allocation3], 24
          %877 = vst.msk [vmem:[%s876] sm:$0xff] %vm843, %v874
        $region116: #{tpu_custom_call.1} parent=83 // pred_fallthru
          _
        %v878 = vld [vmem:[%s601] sm:$0xff]
        %v879 = vld [vmem:[%s601 + $0x8] sm:$0xff]
        %v880 = vpack.c.bf16 %v879, %v878
        %v881 = vld [vmem:[#allocation12] sm:$0xf]
        %v882 = vld [vmem:[#allocation12 + $0x4] sm:$0xf]
        %v883 = vld [vmem:[#allocation12 + $0x8] sm:$0xf]
        %v884 = vld [vmem:[#allocation12 + $0xc] sm:$0xf]
        %v885 = vld [vmem:[#allocation12 + $0x10] sm:$0xf]
        %v886 = vld [vmem:[#allocation12 + $0x14] sm:$0xf]
        %v887 = vld [vmem:[#allocation12 + $0x18] sm:$0xf]
        %v888 = vld [vmem:[#allocation12 + $0x1c] sm:$0xf]
        %v889 = vld [vmem:[#allocation12 + $0x20] sm:$0xf]
        %v890 = vld [vmem:[#allocation12 + $0x24] sm:$0xf]
        %v891 = vld [vmem:[#allocation12 + $0x28] sm:$0xf]
        %v892 = vld [vmem:[#allocation12 + $0x2c] sm:$0xf]
        %v893 = vld [vmem:[#allocation12 + $0x30] sm:$0xf]
        %v894 = vld [vmem:[#allocation12 + $0x34] sm:$0xf]
        %v895 = vld [vmem:[#allocation12 + $0x38] sm:$0xf]
        %v896 = vld [vmem:[#allocation12 + $0x3c] sm:$0xf]
        %v897 = vld [vmem:[%s4] sm:$0x1]
        %v899 = vlaneseq
        %v900 = vshrl.u32 %v899, 7
        %v901 = vsub.s32 0, %v900
        %v902 = vrot.slane %v897, %v901
        %v920 = vunpack.c.l.b16 %v881
        %v921 = vunpack.c.l.b16 %v882
        %v922 = vunpack.c.l.b16 %v883
        %v923 = vunpack.c.l.b16 %v884
        %v924 = vunpack.c.l.b16 %v885
        %v925 = vunpack.c.l.b16 %v886
        %v926 = vunpack.c.l.b16 %v887
        %v927 = vunpack.c.l.b16 %v888
        %v928 = vunpack.c.l.b16 %v889
        %v929 = vunpack.c.l.b16 %v890
        %v930 = vunpack.c.l.b16 %v891
        %v931 = vunpack.c.l.b16 %v892
        %v932 = vunpack.c.l.b16 %v893
        %v933 = vunpack.c.l.b16 %v894
        %v934 = vunpack.c.l.b16 %v895
        %v935 = vunpack.c.l.b16 %v896
        %v936 = vpack.c.b16 %v921, %v920
        %v937 = vpack.c.b16 %v923, %v922
        %v938 = vpack.c.b16 %v925, %v924
        %v939 = vpack.c.b16 %v927, %v926
        %v940 = vpack.c.b16 %v929, %v928
        %v941 = vpack.c.b16 %v931, %v930
        %v942 = vpack.c.b16 %v933, %v932
        %v943 = vpack.c.b16 %v935, %v934
        %952 = vmatprep.subr.bf16.mxu0 0
        %953 = vmatpush1.bf16.msra.mxu0 %v936
        %954 = vmatprep.subr.bf16.mxu0 0
        %955 = vmatpush1.bf16.msra.mxu0 %v937
        %956 = vmatprep.subr.bf16.mxu0 0
        %957 = vmatpush1.bf16.msra.mxu0 %v938
        %958 = vmatprep.subr.bf16.mxu0 0
        %959 = vmatpush1.bf16.msra.mxu0 %v939
        %960 = vmatprep.subr.bf16.mxu0 0
        %961 = vmatpush1.bf16.msra.mxu0 %v940
        %962 = vmatprep.subr.bf16.mxu0 0
        %963 = vmatpush1.bf16.msra.mxu0 %v941
        %964 = vmatprep.subr.bf16.mxu0 0
        %965 = vmatpush1.bf16.msra.mxu0 %v942
        %966 = vmatprep.subr.bf16.mxu0 0
        %967 = vmatpush1.bf16.msra.mxu0 %v943
        %968 = vmatprep.subr.bf16.mxu0 0
        %969 = vmatpush1.bf16.msra.mxu0 0
        %970 = vmatprep.subr.bf16.mxu0 0
        %971 = vmatpush1.bf16.msra.mxu0 0
        %972 = vmatprep.subr.bf16.mxu0 0
        %973 = vmatpush1.bf16.msra.mxu0 0
        %974 = vmatprep.subr.bf16.mxu0 0
        %975 = vmatpush1.bf16.msra.mxu0 0
        %976 = vmatprep.subr.bf16.mxu0 0
        %977 = vmatpush1.bf16.msra.mxu0 0
        %978 = vmatprep.subr.bf16.mxu0 0
        %979 = vmatpush1.bf16.msra.mxu0 0
        %980 = vmatprep.subr.bf16.mxu0 0
        %981 = vmatpush1.bf16.msra.mxu0 0
        %982 = vmatprep.subr.bf16.mxu0 0
        %983 = vmatpush1.bf16.msra.mxu0 0
        %984 = vmatprep.mubr.bf16.mxu0 0
        %985 = vmatmul.mubr.bf16.gmra.mrb[0].mxu0 %v880
        %v986 = vpop.f32.mrb[0].mxu0
        %v987 = vadd.f32 %v902, %v986
        %v988 = vpop.f32.mrb[0].mxu0
        %v989 = vpop.f32.mrb[0].mxu0
        %v990 = vadd.f32 %v902, %v989
        %v991 = vpop.f32.mrb[0].mxu0
        %992 = vdwg.mxu0
        %v993 = vmul.f32 %v987, 0.17677669
        %v994 = vmul.f32 %v990, 0.17677669
        %v995 = vpack.c.bf16 %v994, %v993
        %s996 = sld [smem:[#allocation6 + %s47]]
        %v997 = vlaneseq
        %v998 = vand.u32 %v997, 127
        %v999 = vstv %s996
        %vm1000 = vcmp.lt.s32.totalorder %v998, %v999
        %v1001 = vld [vmem:[#allocation2] sm:$0xff]
        %vm1002 = vcmask 261120
        %v1004 = vsel %vm1002, %v995, 0
        %v1007 = vsel %vm1002, %v1001, 0
        %1009 = vmatprep.subr.bf16.mxu0 0
        %1010 = vmatpush1.bf16.xpose.msra.mxu0 %v1007
        %1011 = vmatprep.subr.bf16.mxu0 0
        %1012 = vmatpush1.bf16.xpose.msra.mxu0 0
        %1013 = vmatprep.subr.bf16.mxu0 0
        %1014 = vmatpush1.bf16.xpose.msra.mxu0 0
        %1015 = vmatprep.subr.bf16.mxu0 0
        %1016 = vmatpush1.bf16.xpose.msra.mxu0 0
        %1017 = vmatprep.subr.bf16.mxu0 0
        %1018 = vmatpush1.bf16.xpose.msra.mxu0 0
        %1019 = vmatprep.subr.bf16.mxu0 0
        %1020 = vmatpush1.bf16.xpose.msra.mxu0 0
        %1021 = vmatprep.subr.bf16.mxu0 0
        %1022 = vmatpush1.bf16.xpose.msra.mxu0 0
        %1023 = vmatprep.subr.bf16.mxu0 0
        %1024 = vmatpush1.bf16.xpose.msra.mxu0 0
        %1025 = vmatprep.subr.bf16.mxu0 0
        %1026 = vmatpush1.bf16.xpose.msra.mxu0 0
        %1027 = vmatprep.subr.bf16.mxu0 0
        %1028 = vmatpush1.bf16.xpose.msra.mxu0 0
        %1029 = vmatprep.subr.bf16.mxu0 0
        %1030 = vmatpush1.bf16.xpose.msra.mxu0 0
        %1031 = vmatprep.subr.bf16.mxu0 0
        %1032 = vmatpush1.bf16.xpose.msra.mxu0 0
        %1033 = vmatprep.subr.bf16.mxu0 0
        %1034 = vmatpush1.bf16.xpose.msra.mxu0 0
        %1035 = vmatprep.subr.bf16.mxu0 0
        %1036 = vmatpush1.bf16.xpose.msra.mxu0 0
        %1037 = vmatprep.subr.bf16.mxu0 0
        %1038 = vmatpush1.bf16.xpose.msra.mxu0 0
        %1039 = vmatprep.subr.bf16.mxu0 0
        %1040 = vmatpush1.bf16.xpose.msra.mxu0 0
        %1041 = vmatprep.mubr.bf16.mxu0 0
        %1042 = vmatmul.mubr.bf16.gmra.mrb[0].mxu0 %v1004
        %v1043 = vpop.f32.mrb[0].mxu0
        %v1044 = vadd.f32 0.0, %v1043
        %v1045 = vpop.f32.mrb[0].mxu0
        %v1046 = vpop.f32.mrb[0].mxu0
        %v1047 = vadd.f32 0.0, %v1046
        %v1048 = vpop.f32.mrb[0].mxu0
        %1049 = vdwg.mxu0
        %v1050 = vsel %vm1000, %v1044, -1e+09
        %v1051 = vsel %vm1000, %v1047, -1e+09
        %vm1052 = vcmask 130048
        %v1053 = vsel %vm1052, %v1050, -inf
        %1054 = vmax.xlane.f32.xlu0 %v1053
        %v1055 = vpop.xlane.xlu0 %1054
        %v1056 = vsel %vm1052, %v1051, -inf
        %1057 = vmax.xlane.f32.xlu0 %v1056
        %v1058 = vpop.xlane.xlu0 %1057
        %v1059 = vsub.f32 %v1050, %v1055
        %v1060 = vsub.f32 %v1051, %v1058
        %v1061 = vmul.f32 %v1059, 1.442695
        %v1062 = vpow.pop %v1061
        %v1063 = vmul.f32 %v1060, 1.442695
        %v1064 = vpow.pop %v1063
        %v1065 = vsel %vm1052, %v1062, 0.0
        %1066 = vadd.xlane.f32.xlu0 %v1065
        %v1067 = vpop.xlane.xlu0 %1066
        %v1068 = vsel %vm1052, %v1064, 0.0
        %1069 = vadd.xlane.f32.xlu0 %v1068
        %v1070 = vpop.xlane.xlu0 %1069
        %v1071 = vrcp.pop %v1067
        %v1072 = vrcp.pop %v1070
        %v1073 = vmul.f32 %v1062, %v1071
        %v1074 = vmul.f32 %v1064, %v1072
        %v1075 = vpack.c.bf16 %v1074, %v1073
        %v1076 = vld [vmem:[#allocation3] sm:$0xff]
        %v1078 = vsel %vm1052, %v1075, 0
        %1080 = vmatprep.subr.bf16.mxu0 0
        %1081 = vmatpush1.bf16.msra.mxu0 %v1076
        %1082 = vmatprep.subr.bf16.mxu0 0
        %1083 = vmatpush1.bf16.msra.mxu0 0
        %1084 = vmatprep.subr.bf16.mxu0 0
        %1085 = vmatpush1.bf16.msra.mxu0 0
        %1086 = vmatprep.subr.bf16.mxu0 0
        %1087 = vmatpush1.bf16.msra.mxu0 0
        %1088 = vmatprep.subr.bf16.mxu0 0
        %1089 = vmatpush1.bf16.msra.mxu0 0
        %1090 = vmatprep.subr.bf16.mxu0 0
        %1091 = vmatpush1.bf16.msra.mxu0 0
        %1092 = vmatprep.subr.bf16.mxu0 0
        %1093 = vmatpush1.bf16.msra.mxu0 0
        %1094 = vmatprep.subr.bf16.mxu0 0
        %1095 = vmatpush1.bf16.msra.mxu0 0
        %1096 = vmatprep.subr.bf16.mxu0 0
        %1097 = vmatpush1.bf16.msra.mxu0 0
        %1098 = vmatprep.subr.bf16.mxu0 0
        %1099 = vmatpush1.bf16.msra.mxu0 0
        %1100 = vmatprep.subr.bf16.mxu0 0
        %1101 = vmatpush1.bf16.msra.mxu0 0
        %1102 = vmatprep.subr.bf16.mxu0 0
        %1103 = vmatpush1.bf16.msra.mxu0 0
        %1104 = vmatprep.subr.bf16.mxu0 0
        %1105 = vmatpush1.bf16.msra.mxu0 0
        %1106 = vmatprep.subr.bf16.mxu0 0
        %1107 = vmatpush1.bf16.msra.mxu0 0
        %1108 = vmatprep.subr.bf16.mxu0 0
        %1109 = vmatpush1.bf16.msra.mxu0 0
        %1110 = vmatprep.subr.bf16.mxu0 0
        %1111 = vmatpush1.bf16.msra.mxu0 0
        %1112 = vmatprep.mubr.bf16.mxu0 0
        %1113 = vmatmul.mubr.bf16.gmra.mrb[0].mxu0 %v1078
        %v1114 = vpop.f32.mrb[0].mxu0
        %v1115 = vadd.f32 0.0, %v1114
        %v1116 = vpop.f32.mrb[0].mxu0
        %v1117 = vpop.f32.mrb[0].mxu0
        %v1118 = vadd.f32 0.0, %v1117
        %v1119 = vpop.f32.mrb[0].mxu0
        %1120 = vdwg.mxu0
        %v1121 = vpack.c.bf16 %v1118, %v1115
        %1122 = vst.msk [vmem:[#allocation4] sm:$0xff] %vm1002, %v1121
        %s1123 = scalar_lea.vmem [#allocation2], 8
        %v1124 = vld [vmem:[%s1123] sm:$0xff]
        %1126 = vrot.lane.b32.xlu0 %v995, 96
        %v1127 = vpop.permute.xlu0 %1126
        %v1129 = vsel %vm1002, %v1127, 0
        %v1132 = vsel %vm1002, %v1124, 0
        %1134 = vmatprep.subr.bf16.mxu0 0
        %1135 = vmatpush1.bf16.xpose.msra.mxu0 %v1132
        %1136 = vmatprep.subr.bf16.mxu0 0
        %1137 = vmatpush1.bf16.xpose.msra.mxu0 0
        %1138 = vmatprep.subr.bf16.mxu0 0
        %1139 = vmatpush1.bf16.xpose.msra.mxu0 0
        %1140 = vmatprep.subr.bf16.mxu0 0
        %1141 = vmatpush1.bf16.xpose.msra.mxu0 0
        %1142 = vmatprep.subr.bf16.mxu0 0
        %1143 = vmatpush1.bf16.xpose.msra.mxu0 0
        %1144 = vmatprep.subr.bf16.mxu0 0
        %1145 = vmatpush1.bf16.xpose.msra.mxu0 0
        %1146 = vmatprep.subr.bf16.mxu0 0
        %1147 = vmatpush1.bf16.xpose.msra.mxu0 0
        %1148 = vmatprep.subr.bf16.mxu0 0
        %1149 = vmatpush1.bf16.xpose.msra.mxu0 0
        %1150 = vmatprep.subr.bf16.mxu0 0
        %1151 = vmatpush1.bf16.xpose.msra.mxu0 0
        %1152 = vmatprep.subr.bf16.mxu0 0
        %1153 = vmatpush1.bf16.xpose.msra.mxu0 0
        %1154 = vmatprep.subr.bf16.mxu0 0
        %1155 = vmatpush1.bf16.xpose.msra.mxu0 0
        %1156 = vmatprep.subr.bf16.mxu0 0
        %1157 = vmatpush1.bf16.xpose.msra.mxu0 0
        %1158 = vmatprep.subr.bf16.mxu0 0
        %1159 = vmatpush1.bf16.xpose.msra.mxu0 0
        %1160 = vmatprep.subr.bf16.mxu0 0
        %1161 = vmatpush1.bf16.xpose.msra.mxu0 0
        %1162 = vmatprep.subr.bf16.mxu0 0
        %1163 = vmatpush1.bf16.xpose.msra.mxu0 0
        %1164 = vmatprep.subr.bf16.mxu0 0
        %1165 = vmatpush1.bf16.xpose.msra.mxu0 0
        %1166 = vmatprep.mubr.bf16.mxu0 0
        %1167 = vmatmul.mubr.bf16.gmra.mrb[0].mxu0 %v1129
        %v1168 = vpop.f32.mrb[0].mxu0
        %v1169 = vadd.f32 0.0, %v1168
        %v1170 = vpop.f32.mrb[0].mxu0
        %v1171 = vpop.f32.mrb[0].mxu0
        %v1172 = vadd.f32 0.0, %v1171
        %v1173 = vpop.f32.mrb[0].mxu0
        %1174 = vdwg.mxu0
        %v1175 = vsel %vm1000, %v1169, -1e+09
        %v1176 = vsel %vm1000, %v1172, -1e+09
        %v1177 = vsel %vm1052, %v1175, -inf
        %1178 = vmax.xlane.f32.xlu0 %v1177
        %v1179 = vpop.xlane.xlu0 %1178
        %v1180 = vsel %vm1052, %v1176, -inf
        %1181 = vmax.xlane.f32.xlu0 %v1180
        %v1182 = vpop.xlane.xlu0 %1181
        %v1183 = vsub.f32 %v1175, %v1179
        %v1184 = vsub.f32 %v1176, %v1182
        %v1185 = vmul.f32 %v1183, 1.442695
        %v1186 = vpow.pop %v1185
        %v1187 = vmul.f32 %v1184, 1.442695
        %v1188 = vpow.pop %v1187
        %v1189 = vsel %vm1052, %v1186, 0.0
        %1190 = vadd.xlane.f32.xlu0 %v1189
        %v1191 = vpop.xlane.xlu0 %1190
        %v1192 = vsel %vm1052, %v1188, 0.0
        %1193 = vadd.xlane.f32.xlu0 %v1192
        %v1194 = vpop.xlane.xlu0 %1193
        %v1195 = vrcp.pop %v1191
        %v1196 = vrcp.pop %v1194
        %v1197 = vmul.f32 %v1186, %v1195
        %v1198 = vmul.f32 %v1188, %v1196
        %v1199 = vpack.c.bf16 %v1198, %v1197
        %s1200 = scalar_lea.vmem [#allocation3], 8
        %v1201 = vld [vmem:[%s1200] sm:$0xff]
        %v1203 = vsel %vm1052, %v1199, 0
        %1205 = vmatprep.subr.bf16.mxu0 0
        %1206 = vmatpush1.bf16.msra.mxu0 %v1201
        %1207 = vmatprep.subr.bf16.mxu0 0
        %1208 = vmatpush1.bf16.msra.mxu0 0
        %1209 = vmatprep.subr.bf16.mxu0 0
        %1210 = vmatpush1.bf16.msra.mxu0 0
        %1211 = vmatprep.subr.bf16.mxu0 0
        %1212 = vmatpush1.bf16.msra.mxu0 0
        %1213 = vmatprep.subr.bf16.mxu0 0
        %1214 = vmatpush1.bf16.msra.mxu0 0
        %1215 = vmatprep.subr.bf16.mxu0 0
        %1216 = vmatpush1.bf16.msra.mxu0 0
        %1217 = vmatprep.subr.bf16.mxu0 0
        %1218 = vmatpush1.bf16.msra.mxu0 0
        %1219 = vmatprep.subr.bf16.mxu0 0
        %1220 = vmatpush1.bf16.msra.mxu0 0
        %1221 = vmatprep.subr.bf16.mxu0 0
        %1222 = vmatpush1.bf16.msra.mxu0 0
        %1223 = vmatprep.subr.bf16.mxu0 0
        %1224 = vmatpush1.bf16.msra.mxu0 0
        %1225 = vmatprep.subr.bf16.mxu0 0
        %1226 = vmatpush1.bf16.msra.mxu0 0
        %1227 = vmatprep.subr.bf16.mxu0 0
        %1228 = vmatpush1.bf16.msra.mxu0 0
        %1229 = vmatprep.subr.bf16.mxu0 0
        %1230 = vmatpush1.bf16.msra.mxu0 0
        %1231 = vmatprep.subr.bf16.mxu0 0
        %1232 = vmatpush1.bf16.msra.mxu0 0
        %1233 = vmatprep.subr.bf16.mxu0 0
        %1234 = vmatpush1.bf16.msra.mxu0 0
        %1235 = vmatprep.subr.bf16.mxu0 0
        %1236 = vmatpush1.bf16.msra.mxu0 0
        %1237 = vmatprep.mubr.bf16.mxu0 0
        %1238 = vmatmul.mubr.bf16.gmra.mrb[0].mxu0 %v1203
        %v1239 = vpop.f32.mrb[0].mxu0
        %v1240 = vadd.f32 0.0, %v1239
        %v1241 = vpop.f32.mrb[0].mxu0
        %v1242 = vpop.f32.mrb[0].mxu0
        %v1243 = vadd.f32 0.0, %v1242
        %v1244 = vpop.f32.mrb[0].mxu0
        %1245 = vdwg.mxu0
        %v1246 = vpack.c.bf16 %v1243, %v1240
        %1248 = vrot.lane.b32.xlu0 %v1246, 32
        %v1249 = vpop.permute.xlu0 %1248
        %vm1251 = vcmask 523520
        %1252 = vst.msk [vmem:[#allocation4] sm:$0xff] %vm1251, %v1249
        %s1253 = scalar_lea.vmem [#allocation2], 16
        %v1254 = vld [vmem:[%s1253] sm:$0xff]
        %1255 = vrot.lane.b32.xlu0 %v995, 64
        %v1256 = vpop.permute.xlu0 %1255
        %v1258 = vsel %vm1002, %v1256, 0
        %v1261 = vsel %vm1002, %v1254, 0
        %1263 = vmatprep.subr.bf16.mxu0 0
        %1264 = vmatpush1.bf16.xpose.msra.mxu0 %v1261
        %1265 = vmatprep.subr.bf16.mxu0 0
        %1266 = vmatpush1.bf16.xpose.msra.mxu0 0
        %1267 = vmatprep.subr.bf16.mxu0 0
        %1268 = vmatpush1.bf16.xpose.msra.mxu0 0
        %1269 = vmatprep.subr.bf16.mxu0 0
        %1270 = vmatpush1.bf16.xpose.msra.mxu0 0
        %1271 = vmatprep.subr.bf16.mxu0 0
        %1272 = vmatpush1.bf16.xpose.msra.mxu0 0
        %1273 = vmatprep.subr.bf16.mxu0 0
        %1274 = vmatpush1.bf16.xpose.msra.mxu0 0
        %1275 = vmatprep.subr.bf16.mxu0 0
        %1276 = vmatpush1.bf16.xpose.msra.mxu0 0
        %1277 = vmatprep.subr.bf16.mxu0 0
        %1278 = vmatpush1.bf16.xpose.msra.mxu0 0
        %1279 = vmatprep.subr.bf16.mxu0 0
        %1280 = vmatpush1.bf16.xpose.msra.mxu0 0
        %1281 = vmatprep.subr.bf16.mxu0 0
        %1282 = vmatpush1.bf16.xpose.msra.mxu0 0
        %1283 = vmatprep.subr.bf16.mxu0 0
        %1284 = vmatpush1.bf16.xpose.msra.mxu0 0
        %1285 = vmatprep.subr.bf16.mxu0 0
        %1286 = vmatpush1.bf16.xpose.msra.mxu0 0
        %1287 = vmatprep.subr.bf16.mxu0 0
        %1288 = vmatpush1.bf16.xpose.msra.mxu0 0
        %1289 = vmatprep.subr.bf16.mxu0 0
        %1290 = vmatpush1.bf16.xpose.msra.mxu0 0
        %1291 = vmatprep.subr.bf16.mxu0 0
        %1292 = vmatpush1.bf16.xpose.msra.mxu0 0
        %1293 = vmatprep.subr.bf16.mxu0 0
        %1294 = vmatpush1.bf16.xpose.msra.mxu0 0
        %1295 = vmatprep.mubr.bf16.mxu0 0
        %1296 = vmatmul.mubr.bf16.gmra.mrb[0].mxu0 %v1258
        %v1297 = vpop.f32.mrb[0].mxu0
        %v1298 = vadd.f32 0.0, %v1297
        %v1299 = vpop.f32.mrb[0].mxu0
        %v1300 = vpop.f32.mrb[0].mxu0
        %v1301 = vadd.f32 0.0, %v1300
        %v1302 = vpop.f32.mrb[0].mxu0
        %1303 = vdwg.mxu0
        %v1304 = vsel %vm1000, %v1298, -1e+09
        %v1305 = vsel %vm1000, %v1301, -1e+09
        %v1306 = vsel %vm1052, %v1304, -inf
        %1307 = vmax.xlane.f32.xlu0 %v1306
        %v1308 = vpop.xlane.xlu0 %1307
        %v1309 = vsel %vm1052, %v1305, -inf
        %1310 = vmax.xlane.f32.xlu0 %v1309
        %v1311 = vpop.xlane.xlu0 %1310
        %v1312 = vsub.f32 %v1304, %v1308
        %v1313 = vsub.f32 %v1305, %v1311
        %v1314 = vmul.f32 %v1312, 1.442695
        %v1315 = vpow.pop %v1314
        %v1316 = vmul.f32 %v1313, 1.442695
        %v1317 = vpow.pop %v1316
        %v1318 = vsel %vm1052, %v1315, 0.0
        %1319 = vadd.xlane.f32.xlu0 %v1318
        %v1320 = vpop.xlane.xlu0 %1319
        %v1321 = vsel %vm1052, %v1317, 0.0
        %1322 = vadd.xlane.f32.xlu0 %v1321
        %v1323 = vpop.xlane.xlu0 %1322
        %v1324 = vrcp.pop %v1320
        %v1325 = vrcp.pop %v1323
        %v1326 = vmul.f32 %v1315, %v1324
        %v1327 = vmul.f32 %v1317, %v1325
        %v1328 = vpack.c.bf16 %v1327, %v1326
        %s1329 = scalar_lea.vmem [#allocation3], 16
        %v1330 = vld [vmem:[%s1329] sm:$0xff]
        %v1332 = vsel %vm1052, %v1328, 0
        %1334 = vmatprep.subr.bf16.mxu0 0
        %1335 = vmatpush1.bf16.msra.mxu0 %v1330
        %1336 = vmatprep.subr.bf16.mxu0 0
        %1337 = vmatpush1.bf16.msra.mxu0 0
        %1338 = vmatprep.subr.bf16.mxu0 0
        %1339 = vmatpush1.bf16.msra.mxu0 0
        %1340 = vmatprep.subr.bf16.mxu0 0
        %1341 = vmatpush1.bf16.msra.mxu0 0
        %1342 = vmatprep.subr.bf16.mxu0 0
        %1343 = vmatpush1.bf16.msra.mxu0 0
        %1344 = vmatprep.subr.bf16.mxu0 0
        %1345 = vmatpush1.bf16.msra.mxu0 0
        %1346 = vmatprep.subr.bf16.mxu0 0
        %1347 = vmatpush1.bf16.msra.mxu0 0
        %1348 = vmatprep.subr.bf16.mxu0 0
        %1349 = vmatpush1.bf16.msra.mxu0 0
        %1350 = vmatprep.subr.bf16.mxu0 0
        %1351 = vmatpush1.bf16.msra.mxu0 0
        %1352 = vmatprep.subr.bf16.mxu0 0
        %1353 = vmatpush1.bf16.msra.mxu0 0
        %1354 = vmatprep.subr.bf16.mxu0 0
        %1355 = vmatpush1.bf16.msra.mxu0 0
        %1356 = vmatprep.subr.bf16.mxu0 0
        %1357 = vmatpush1.bf16.msra.mxu0 0
        %1358 = vmatprep.subr.bf16.mxu0 0
        %1359 = vmatpush1.bf16.msra.mxu0 0
        %1360 = vmatprep.subr.bf16.mxu0 0
        %1361 = vmatpush1.bf16.msra.mxu0 0
        %1362 = vmatprep.subr.bf16.mxu0 0
        %1363 = vmatpush1.bf16.msra.mxu0 0
        %1364 = vmatprep.subr.bf16.mxu0 0
        %1365 = vmatpush1.bf16.msra.mxu0 0
        %1366 = vmatprep.mubr.bf16.mxu0 0
        %1367 = vmatmul.mubr.bf16.gmra.mrb[0].mxu0 %v1332
        %v1368 = vpop.f32.mrb[0].mxu0
        %v1369 = vadd.f32 0.0, %v1368
        %v1370 = vpop.f32.mrb[0].mxu0
        %v1371 = vpop.f32.mrb[0].mxu0
        %v1372 = vadd.f32 0.0, %v1371
        %v1373 = vpop.f32.mrb[0].mxu0
        %1374 = vdwg.mxu0
        %v1375 = vpack.c.bf16 %v1372, %v1369
        %1377 = vrot.lane.b32.xlu0 %v1375, 64
        %v1378 = vpop.permute.xlu0 %1377
        %vm1380 = vcmask 785920
        %1381 = vst.msk [vmem:[#allocation4] sm:$0xff] %vm1380, %v1378
        %s1382 = scalar_lea.vmem [#allocation2], 24
        %v1383 = vld [vmem:[%s1382] sm:$0xff]
        %1384 = vrot.lane.b32.xlu0 %v995, 32
        %v1385 = vpop.permute.xlu0 %1384
        %v1387 = vsel %vm1002, %v1385, 0
        %v1390 = vsel %vm1002, %v1383, 0
        %1392 = vmatprep.subr.bf16.mxu0 0
        %1393 = vmatpush1.bf16.xpose.msra.mxu0 %v1390
        %1394 = vmatprep.subr.bf16.mxu0 0
        %1395 = vmatpush1.bf16.xpose.msra.mxu0 0
        %1396 = vmatprep.subr.bf16.mxu0 0
        %1397 = vmatpush1.bf16.xpose.msra.mxu0 0
        %1398 = vmatprep.subr.bf16.mxu0 0
        %1399 = vmatpush1.bf16.xpose.msra.mxu0 0
        %1400 = vmatprep.subr.bf16.mxu0 0
        %1401 = vmatpush1.bf16.xpose.msra.mxu0 0
        %1402 = vmatprep.subr.bf16.mxu0 0
        %1403 = vmatpush1.bf16.xpose.msra.mxu0 0
        %1404 = vmatprep.subr.bf16.mxu0 0
        %1405 = vmatpush1.bf16.xpose.msra.mxu0 0
        %1406 = vmatprep.subr.bf16.mxu0 0
        %1407 = vmatpush1.bf16.xpose.msra.mxu0 0
        %1408 = vmatprep.subr.bf16.mxu0 0
        %1409 = vmatpush1.bf16.xpose.msra.mxu0 0
        %1410 = vmatprep.subr.bf16.mxu0 0
        %1411 = vmatpush1.bf16.xpose.msra.mxu0 0
        %1412 = vmatprep.subr.bf16.mxu0 0
        %1413 = vmatpush1.bf16.xpose.msra.mxu0 0
        %1414 = vmatprep.subr.bf16.mxu0 0
        %1415 = vmatpush1.bf16.xpose.msra.mxu0 0
        %1416 = vmatprep.subr.bf16.mxu0 0
        %1417 = vmatpush1.bf16.xpose.msra.mxu0 0
        %1418 = vmatprep.subr.bf16.mxu0 0
        %1419 = vmatpush1.bf16.xpose.msra.mxu0 0
        %1420 = vmatprep.subr.bf16.mxu0 0
        %1421 = vmatpush1.bf16.xpose.msra.mxu0 0
        %1422 = vmatprep.subr.bf16.mxu0 0
        %1423 = vmatpush1.bf16.xpose.msra.mxu0 0
        %1424 = vmatprep.mubr.bf16.mxu0 0
        %1425 = vmatmul.mubr.bf16.gmra.mrb[0].mxu0 %v1387
        %v1426 = vpop.f32.mrb[0].mxu0
        %v1427 = vadd.f32 0.0, %v1426
        %v1428 = vpop.f32.mrb[0].mxu0
        %v1429 = vpop.f32.mrb[0].mxu0
        %v1430 = vadd.f32 0.0, %v1429
        %v1431 = vpop.f32.mrb[0].mxu0
        %1432 = vdwg.mxu0
        %v1433 = vsel %vm1000, %v1427, -1e+09
        %v1434 = vsel %vm1000, %v1430, -1e+09
        %v1435 = vsel %vm1052, %v1433, -inf
        %1436 = vmax.xlane.f32.xlu0 %v1435
        %v1437 = vpop.xlane.xlu0 %1436
        %v1438 = vsel %vm1052, %v1434, -inf
        %1439 = vmax.xlane.f32.xlu0 %v1438
        %v1440 = vpop.xlane.xlu0 %1439
        %v1441 = vsub.f32 %v1433, %v1437
        %v1442 = vsub.f32 %v1434, %v1440
        %v1443 = vmul.f32 %v1441, 1.442695
        %v1444 = vpow.pop %v1443
        %v1445 = vmul.f32 %v1442, 1.442695
        %v1446 = vpow.pop %v1445
        %v1447 = vsel %vm1052, %v1444, 0.0
        %1448 = vadd.xlane.f32.xlu0 %v1447
        %v1449 = vpop.xlane.xlu0 %1448
        %v1450 = vsel %vm1052, %v1446, 0.0
        %1451 = vadd.xlane.f32.xlu0 %v1450
        %v1452 = vpop.xlane.xlu0 %1451
        %v1453 = vrcp.pop %v1449
        %v1454 = vrcp.pop %v1452
        %v1455 = vmul.f32 %v1444, %v1453
        %v1456 = vmul.f32 %v1446, %v1454
        %v1457 = vpack.c.bf16 %v1456, %v1455
        %s1458 = scalar_lea.vmem [#allocation3], 24
        %v1459 = vld [vmem:[%s1458] sm:$0xff]
        %v1461 = vsel %vm1052, %v1457, 0
        %1463 = vmatprep.subr.bf16.mxu0 0
        %1464 = vmatpush1.bf16.msra.mxu0 %v1459
        %1465 = vmatprep.subr.bf16.mxu0 0
        %1466 = vmatpush1.bf16.msra.mxu0 0
        %1467 = vmatprep.subr.bf16.mxu0 0
        %1468 = vmatpush1.bf16.msra.mxu0 0
        %1469 = vmatprep.subr.bf16.mxu0 0
        %1470 = vmatpush1.bf16.msra.mxu0 0
        %1471 = vmatprep.subr.bf16.mxu0 0
        %1472 = vmatpush1.bf16.msra.mxu0 0
        %1473 = vmatprep.subr.bf16.mxu0 0
        %1474 = vmatpush1.bf16.msra.mxu0 0
        %1475 = vmatprep.subr.bf16.mxu0 0
        %1476 = vmatpush1.bf16.msra.mxu0 0
        %1477 = vmatprep.subr.bf16.mxu0 0
        %1478 = vmatpush1.bf16.msra.mxu0 0
        %1479 = vmatprep.subr.bf16.mxu0 0
        %1480 = vmatpush1.bf16.msra.mxu0 0
        %1481 = vmatprep.subr.bf16.mxu0 0
        %1482 = vmatpush1.bf16.msra.mxu0 0
        %1483 = vmatprep.subr.bf16.mxu0 0
        %1484 = vmatpush1.bf16.msra.mxu0 0
        %1485 = vmatprep.subr.bf16.mxu0 0
        %1486 = vmatpush1.bf16.msra.mxu0 0
        %1487 = vmatprep.subr.bf16.mxu0 0
        %1488 = vmatpush1.bf16.msra.mxu0 0
        %1489 = vmatprep.subr.bf16.mxu0 0
        %1490 = vmatpush1.bf16.msra.mxu0 0
        %1491 = vmatprep.subr.bf16.mxu0 0
        %1492 = vmatpush1.bf16.msra.mxu0 0
        %1493 = vmatprep.subr.bf16.mxu0 0
        %1494 = vmatpush1.bf16.msra.mxu0 0
        %1495 = vmatprep.mubr.bf16.mxu0 0
        %1496 = vmatmul.mubr.bf16.gmra.mrb[0].mxu0 %v1461
        %v1497 = vpop.f32.mrb[0].mxu0
        %v1498 = vadd.f32 0.0, %v1497
        %v1499 = vpop.f32.mrb[0].mxu0
        %v1500 = vpop.f32.mrb[0].mxu0
        %v1501 = vadd.f32 0.0, %v1500
        %v1502 = vpop.f32.mrb[0].mxu0
        %1503 = vdwg.mxu0
        %v1504 = vpack.c.bf16 %v1501, %v1498
        %1506 = vrot.lane.b32.xlu0 %v1504, 96
        %v1507 = vpop.permute.xlu0 %1506
        %vm1509 = vcmask 1048320
        %1510 = vst.msk [vmem:[#allocation4] sm:$0xff] %vm1509, %v1507
        %v1511 = vld [vmem:[#allocation4] sm:$0xff]
        %v1512 = vld [vmem:[#allocation15] sm:$0xf]
        %v1513 = vld [vmem:[#allocation15 + $0x4] sm:$0xf]
        %v1514 = vld [vmem:[#allocation15 + $0x8] sm:$0xf]
        %v1515 = vld [vmem:[#allocation15 + $0xc] sm:$0xf]
        %v1516 = vld [vmem:[#allocation15 + $0x10] sm:$0xf]
        %v1517 = vld [vmem:[#allocation15 + $0x14] sm:$0xf]
        %v1518 = vld [vmem:[#allocation15 + $0x18] sm:$0xf]
        %v1519 = vld [vmem:[#allocation15 + $0x1c] sm:$0xf]
        %v1520 = vld [vmem:[#allocation15 + $0x20] sm:$0xf]
        %v1521 = vld [vmem:[#allocation15 + $0x24] sm:$0xf]
        %v1522 = vld [vmem:[#allocation15 + $0x28] sm:$0xf]
        %v1523 = vld [vmem:[#allocation15 + $0x2c] sm:$0xf]
        %v1524 = vld [vmem:[#allocation15 + $0x30] sm:$0xf]
        %v1525 = vld [vmem:[#allocation15 + $0x34] sm:$0xf]
        %v1526 = vld [vmem:[#allocation15 + $0x38] sm:$0xf]
        %v1527 = vld [vmem:[#allocation15 + $0x3c] sm:$0xf]
        %v1528 = vld [vmem:[%s8] sm:$0x1]
        %v1530 = vlaneseq
        %v1531 = vshrl.u32 %v1530, 7
        %v1532 = vsub.s32 0, %v1531
        %v1533 = vrot.slane %v1528, %v1532
        %v1551 = vunpack.c.l.b16 %v1512
        %v1552 = vunpack.c.l.b16 %v1513
        %v1553 = vunpack.c.l.b16 %v1514
        %v1554 = vunpack.c.l.b16 %v1515
        %v1555 = vunpack.c.l.b16 %v1516
        %v1556 = vunpack.c.l.b16 %v1517
        %v1557 = vunpack.c.l.b16 %v1518
        %v1558 = vunpack.c.l.b16 %v1519
        %v1559 = vunpack.c.l.b16 %v1520
        %v1560 = vunpack.c.l.b16 %v1521
        %v1561 = vunpack.c.l.b16 %v1522
        %v1562 = vunpack.c.l.b16 %v1523
        %v1563 = vunpack.c.l.b16 %v1524
        %v1564 = vunpack.c.l.b16 %v1525
        %v1565 = vunpack.c.l.b16 %v1526
        %v1566 = vunpack.c.l.b16 %v1527
        %v1567 = vpack.c.b16 %v1552, %v1551
        %v1568 = vpack.c.b16 %v1554, %v1553
        %v1569 = vpack.c.b16 %v1556, %v1555
        %v1570 = vpack.c.b16 %v1558, %v1557
        %v1571 = vpack.c.b16 %v1560, %v1559
        %v1572 = vpack.c.b16 %v1562, %v1561
        %v1573 = vpack.c.b16 %v1564, %v1563
        %v1574 = vpack.c.b16 %v1566, %v1565
        %1583 = vmatprep.subr.bf16.mxu0 0
        %1584 = vmatpush1.bf16.msra.mxu0 %v1567
        %1585 = vmatprep.subr.bf16.mxu0 0
        %1586 = vmatpush1.bf16.msra.mxu0 %v1568
        %1587 = vmatprep.subr.bf16.mxu0 0
        %1588 = vmatpush1.bf16.msra.mxu0 %v1569
        %1589 = vmatprep.subr.bf16.mxu0 0
        %1590 = vmatpush1.bf16.msra.mxu0 %v1570
        %1591 = vmatprep.subr.bf16.mxu0 0
        %1592 = vmatpush1.bf16.msra.mxu0 %v1571
        %1593 = vmatprep.subr.bf16.mxu0 0
        %1594 = vmatpush1.bf16.msra.mxu0 %v1572
        %1595 = vmatprep.subr.bf16.mxu0 0
        %1596 = vmatpush1.bf16.msra.mxu0 %v1573
        %1597 = vmatprep.subr.bf16.mxu0 0
        %1598 = vmatpush1.bf16.msra.mxu0 %v1574
        %1599 = vmatprep.subr.bf16.mxu0 0
        %1600 = vmatpush1.bf16.msra.mxu0 0
        %1601 = vmatprep.subr.bf16.mxu0 0
        %1602 = vmatpush1.bf16.msra.mxu0 0
        %1603 = vmatprep.subr.bf16.mxu0 0
        %1604 = vmatpush1.bf16.msra.mxu0 0
        %1605 = vmatprep.subr.bf16.mxu0 0
        %1606 = vmatpush1.bf16.msra.mxu0 0
        %1607 = vmatprep.subr.bf16.mxu0 0
        %1608 = vmatpush1.bf16.msra.mxu0 0
        %1609 = vmatprep.subr.bf16.mxu0 0
        %1610 = vmatpush1.bf16.msra.mxu0 0
        %1611 = vmatprep.subr.bf16.mxu0 0
        %1612 = vmatpush1.bf16.msra.mxu0 0
        %1613 = vmatprep.subr.bf16.mxu0 0
        %1614 = vmatpush1.bf16.msra.mxu0 0
        %1615 = vmatprep.mubr.bf16.mxu0 0
        %1616 = vmatmul.mubr.bf16.gmra.mrb[0].mxu0 %v1511
        %v1617 = vpop.f32.mrb[0].mxu0
        %v1618 = vadd.f32 %v1533, %v1617
        %v1619 = vpop.f32.mrb[0].mxu0
        %v1620 = vpop.f32.mrb[0].mxu0
        %v1621 = vadd.f32 %v1533, %v1620
        %v1622 = vpop.f32.mrb[0].mxu0
        %1623 = vdwg.mxu0
        %v1624 = vadd.f32 %v1618, %v878
        %v1625 = vadd.f32 %v1621, %v879
        %v1626 = vld [vmem:[%s9] sm:$0x1]
        %v1627 = vld [vmem:[%s10] sm:$0x1]
        %1628 = vadd.xlane.f32.xlu0 %v1624
        %v1629 = vpop.xlane.xlu0 %1628
        %1630 = vadd.xlane.f32.xlu0 %v1625
        %v1631 = vpop.xlane.xlu0 %1630
        %v1632 = vrcp.pop 128.0
        %v1633 = vmul.f32 %v1629, %v1632
        %v1634 = vmul.f32 %v1631, %v1632
        %v1635 = vsub.f32 %v1624, %v1633
        %v1636 = vsub.f32 %v1625, %v1634
        %v1637 = vmul.f32 %v1635, %v1635
        %v1638 = vmul.f32 %v1636, %v1636
        %1639 = vadd.xlane.f32.xlu0 %v1637
        %v1640 = vpop.xlane.xlu0 %1639
        %1641 = vadd.xlane.f32.xlu0 %v1638
        %v1642 = vpop.xlane.xlu0 %1641
        %v1643 = vmul.f32 %v1640, %v1632
        %v1644 = vmul.f32 %v1642, %v1632
        %v1645 = vadd.f32 %v1643, 1e-05
        %v1646 = vadd.f32 %v1644, 1e-05
        %v1647 = vrsqrt.pop %v1645
        %v1648 = vrsqrt.pop %v1646
        %v1649 = vmul.f32 %v1635, %v1647
        %v1650 = vmul.f32 %v1636, %v1648
        %v1652 = vlaneseq
        %v1653 = vshrl.u32 %v1652, 7
        %v1654 = vsub.s32 0, %v1653
        %v1655 = vrot.slane %v1626, %v1654
        %v1657 = vmul.f32 %v1649, %v1655
        %v1658 = vmul.f32 %v1650, %v1655
        %v1660 = vlaneseq
        %v1661 = vshrl.u32 %v1660, 7
        %v1662 = vsub.s32 0, %v1661
        %v1663 = vrot.slane %v1627, %v1662
        %v1665 = vadd.f32 %v1657, %v1663
        %v1666 = vadd.f32 %v1658, %v1663
        %v1667 = vpack.c.bf16 %v1666, %v1665
        %v1668 = vld [vmem:[#allocation16] sm:$0xff]
        %v1669 = vld [vmem:[#allocation16 + $0x8] sm:$0xff]
        %v1670 = vld [vmem:[#allocation16 + $0x10] sm:$0xff]
        %v1671 = vld [vmem:[#allocation16 + $0x18] sm:$0xff]
        %v1672 = vld [vmem:[#allocation16 + $0x20] sm:$0xff]
        %v1673 = vld [vmem:[#allocation16 + $0x28] sm:$0xff]
        %v1674 = vld [vmem:[#allocation16 + $0x30] sm:$0xff]
        %v1675 = vld [vmem:[#allocation16 + $0x38] sm:$0xff]
        %v1676 = vld [vmem:[#allocation16 + $0x40] sm:$0xff]
        %v1677 = vld [vmem:[#allocation16 + $0x48] sm:$0xff]
        %v1678 = vld [vmem:[#allocation16 + $0x50] sm:$0xff]
        %v1679 = vld [vmem:[#allocation16 + $0x58] sm:$0xff]
        %v1680 = vld [vmem:[#allocation16 + $0x60] sm:$0xff]
        %v1681 = vld [vmem:[#allocation16 + $0x68] sm:$0xff]
        %v1682 = vld [vmem:[#allocation16 + $0x70] sm:$0xff]
        %v1683 = vld [vmem:[#allocation16 + $0x78] sm:$0xff]
        %v1684 = vld [vmem:[%s12] sm:$0x3]
        %v1686 = vlaneseq
        %v1687 = vshrl.u32 %v1686, 7
        %v1688 = vsub.s32 0, %v1687
        %v1689 = vrot.slane %v1684, %v1688
        %v1690 = vlaneseq
        %v1691 = vshrl.u32 %v1690, 7
        %v1692 = vsub.s32 1, %v1691
        %v1693 = vrot.slane %v1684, %v1692
        %v1712 = vunpack.c.l.b16 %v1668
        %v1713 = vunpack.c.h.b16 %v1668
        %v1714 = vunpack.c.l.b16 %v1669
        %v1715 = vunpack.c.h.b16 %v1669
        %v1716 = vunpack.c.l.b16 %v1670
        %v1717 = vunpack.c.h.b16 %v1670
        %v1718 = vunpack.c.l.b16 %v1671
        %v1719 = vunpack.c.h.b16 %v1671
        %v1720 = vunpack.c.l.b16 %v1672
        %v1721 = vunpack.c.h.b16 %v1672
        %v1722 = vunpack.c.l.b16 %v1673
        %v1723 = vunpack.c.h.b16 %v1673
        %v1724 = vunpack.c.l.b16 %v1674
        %v1725 = vunpack.c.h.b16 %v1674
        %v1726 = vunpack.c.l.b16 %v1675
        %v1727 = vunpack.c.h.b16 %v1675
        %v1728 = vunpack.c.l.b16 %v1676
        %v1729 = vunpack.c.h.b16 %v1676
        %v1730 = vunpack.c.l.b16 %v1677
        %v1731 = vunpack.c.h.b16 %v1677
        %v1732 = vunpack.c.l.b16 %v1678
        %v1733 = vunpack.c.h.b16 %v1678
        %v1734 = vunpack.c.l.b16 %v1679
        %v1735 = vunpack.c.h.b16 %v1679
        %v1736 = vunpack.c.l.b16 %v1680
        %v1737 = vunpack.c.h.b16 %v1680
        %v1738 = vunpack.c.l.b16 %v1681
        %v1739 = vunpack.c.h.b16 %v1681
        %v1740 = vunpack.c.l.b16 %v1682
        %v1741 = vunpack.c.h.b16 %v1682
        %v1742 = vunpack.c.l.b16 %v1683
        %v1743 = vunpack.c.h.b16 %v1683
        %v1744 = vpack.c.b16 %v1714, %v1712
        %v1745 = vpack.c.b16 %v1715, %v1713
        %v1746 = vpack.c.b16 %v1718, %v1716
        %v1747 = vpack.c.b16 %v1719, %v1717
        %v1748 = vpack.c.b16 %v1722, %v1720
        %v1749 = vpack.c.b16 %v1723, %v1721
        %v1750 = vpack.c.b16 %v1726, %v1724
        %v1751 = vpack.c.b16 %v1727, %v1725
        %v1752 = vpack.c.b16 %v1730, %v1728
        %v1753 = vpack.c.b16 %v1731, %v1729
        %v1754 = vpack.c.b16 %v1734, %v1732
        %v1755 = vpack.c.b16 %v1735, %v1733
        %v1756 = vpack.c.b16 %v1738, %v1736
        %v1757 = vpack.c.b16 %v1739, %v1737
        %v1758 = vpack.c.b16 %v1742, %v1740
        %v1759 = vpack.c.b16 %v1743, %v1741
        %1776 = vmatprep.subr.bf16.mxu0 %v1745
        %1777 = vmatpush1.bf16.msra.mxu0 %v1744
        %1778 = vmatprep.subr.bf16.mxu0 %v1747
        %1779 = vmatpush1.bf16.msra.mxu0 %v1746
        %1780 = vmatprep.subr.bf16.mxu0 %v1749
        %1781 = vmatpush1.bf16.msra.mxu0 %v1748
        %1782 = vmatprep.subr.bf16.mxu0 %v1751
        %1783 = vmatpush1.bf16.msra.mxu0 %v1750
        %1784 = vmatprep.subr.bf16.mxu0 %v1753
        %1785 = vmatpush1.bf16.msra.mxu0 %v1752
        %1786 = vmatprep.subr.bf16.mxu0 %v1755
        %1787 = vmatpush1.bf16.msra.mxu0 %v1754
        %1788 = vmatprep.subr.bf16.mxu0 %v1757
        %1789 = vmatpush1.bf16.msra.mxu0 %v1756
        %1790 = vmatprep.subr.bf16.mxu0 %v1759
        %1791 = vmatpush1.bf16.msra.mxu0 %v1758
        %1792 = vmatprep.subr.bf16.mxu0 0
        %1793 = vmatpush1.bf16.msra.mxu0 0
        %1794 = vmatprep.subr.bf16.mxu0 0
        %1795 = vmatpush1.bf16.msra.mxu0 0
        %1796 = vmatprep.subr.bf16.mxu0 0
        %1797 = vmatpush1.bf16.msra.mxu0 0
        %1798 = vmatprep.subr.bf16.mxu0 0
        %1799 = vmatpush1.bf16.msra.mxu0 0
        %1800 = vmatprep.subr.bf16.mxu0 0
        %1801 = vmatpush1.bf16.msra.mxu0 0
        %1802 = vmatprep.subr.bf16.mxu0 0
        %1803 = vmatpush1.bf16.msra.mxu0 0
        %1804 = vmatprep.subr.bf16.mxu0 0
        %1805 = vmatpush1.bf16.msra.mxu0 0
        %1806 = vmatprep.subr.bf16.mxu0 0
        %1807 = vmatpush1.bf16.msra.mxu0 0
        %1808 = vmatprep.mubr.bf16.mxu0 0
        %1809 = vmatmul.mubr.bf16.gmra.mrb[0].mxu0 %v1667
        %v1810 = vpop.f32.mrb[0].mxu0
        %v1811 = vadd.f32 %v1689, %v1810
        %v1812 = vpop.f32.mrb[0].mxu0
        %v1813 = vadd.f32 %v1693, %v1812
        %v1814 = vpop.f32.mrb[0].mxu0
        %v1815 = vadd.f32 %v1689, %v1814
        %v1816 = vpop.f32.mrb[0].mxu0
        %v1817 = vadd.f32 %v1693, %v1816
        %1818 = vdwg.mxu0
        %v1819 = vmax.f32 %v1811, 0.0
        %v1820 = vmax.f32 %v1813, 0.0
        %v1821 = vmax.f32 %v1815, 0.0
        %v1822 = vmax.f32 %v1817, 0.0
        %v1823 = vpack.c.bf16 %v1821, %v1819
        %v1824 = vpack.c.bf16 %v1822, %v1820
        %v1825 = vld [vmem:[#allocation18] sm:$0xf]
        %v1826 = vld [vmem:[#allocation18 + $0x4] sm:$0xf]
        %v1827 = vld [vmem:[#allocation18 + $0x8] sm:$0xf]
        %v1828 = vld [vmem:[#allocation18 + $0xc] sm:$0xf]
        %v1829 = vld [vmem:[#allocation18 + $0x10] sm:$0xf]
        %v1830 = vld [vmem:[#allocation18 + $0x14] sm:$0xf]
        %v1831 = vld [vmem:[#allocation18 + $0x18] sm:$0xf]
        %v1832 = vld [vmem:[#allocation18 + $0x1c] sm:$0xf]
        %v1833 = vld [vmem:[#allocation18 + $0x20] sm:$0xf]
        %v1834 = vld [vmem:[#allocation18 + $0x24] sm:$0xf]
        %v1835 = vld [vmem:[#allocation18 + $0x28] sm:$0xf]
        %v1836 = vld [vmem:[#allocation18 + $0x2c] sm:$0xf]
        %v1837 = vld [vmem:[#allocation18 + $0x30] sm:$0xf]
        %v1838 = vld [vmem:[#allocation18 + $0x34] sm:$0xf]
        %v1839 = vld [vmem:[#allocation18 + $0x38] sm:$0xf]
        %v1840 = vld [vmem:[#allocation18 + $0x3c] sm:$0xf]
        %v1841 = vld [vmem:[#allocation18 + $0x40] sm:$0xf]
        %v1842 = vld [vmem:[#allocation18 + $0x44] sm:$0xf]
        %v1843 = vld [vmem:[#allocation18 + $0x48] sm:$0xf]
        %v1844 = vld [vmem:[#allocation18 + $0x4c] sm:$0xf]
        %v1845 = vld [vmem:[#allocation18 + $0x50] sm:$0xf]
        %v1846 = vld [vmem:[#allocation18 + $0x54] sm:$0xf]
        %v1847 = vld [vmem:[#allocation18 + $0x58] sm:$0xf]
        %v1848 = vld [vmem:[#allocation18 + $0x5c] sm:$0xf]
        %v1849 = vld [vmem:[#allocation18 + $0x60] sm:$0xf]
        %v1850 = vld [vmem:[#allocation18 + $0x64] sm:$0xf]
        %v1851 = vld [vmem:[#allocation18 + $0x68] sm:$0xf]
        %v1852 = vld [vmem:[#allocation18 + $0x6c] sm:$0xf]
        %v1853 = vld [vmem:[#allocation18 + $0x70] sm:$0xf]
        %v1854 = vld [vmem:[#allocation18 + $0x74] sm:$0xf]
        %v1855 = vld [vmem:[#allocation18 + $0x78] sm:$0xf]
        %v1856 = vld [vmem:[#allocation18 + $0x7c] sm:$0xf]
        %v1857 = vld [vmem:[%s14] sm:$0x1]
        %v1859 = vlaneseq
        %v1860 = vshrl.u32 %v1859, 7
        %v1861 = vsub.s32 0, %v1860
        %v1862 = vrot.slane %v1857, %v1861
        %v1896 = vunpack.c.l.b16 %v1825
        %v1897 = vunpack.c.l.b16 %v1826
        %v1898 = vunpack.c.l.b16 %v1827
        %v1899 = vunpack.c.l.b16 %v1828
        %v1900 = vunpack.c.l.b16 %v1829
        %v1901 = vunpack.c.l.b16 %v1830
        %v1902 = vunpack.c.l.b16 %v1831
        %v1903 = vunpack.c.l.b16 %v1832
        %v1904 = vunpack.c.l.b16 %v1833
        %v1905 = vunpack.c.l.b16 %v1834
        %v1906 = vunpack.c.l.b16 %v1835
        %v1907 = vunpack.c.l.b16 %v1836
        %v1908 = vunpack.c.l.b16 %v1837
        %v1909 = vunpack.c.l.b16 %v1838
        %v1910 = vunpack.c.l.b16 %v1839
        %v1911 = vunpack.c.l.b16 %v1840
        %v1912 = vunpack.c.l.b16 %v1841
        %v1913 = vunpack.c.l.b16 %v1842
        %v1914 = vunpack.c.l.b16 %v1843
        %v1915 = vunpack.c.l.b16 %v1844
        %v1916 = vunpack.c.l.b16 %v1845
        %v1917 = vunpack.c.l.b16 %v1846
        %v1918 = vunpack.c.l.b16 %v1847
        %v1919 = vunpack.c.l.b16 %v1848
        %v1920 = vunpack.c.l.b16 %v1849
        %v1921 = vunpack.c.l.b16 %v1850
        %v1922 = vunpack.c.l.b16 %v1851
        %v1923 = vunpack.c.l.b16 %v1852
        %v1924 = vunpack.c.l.b16 %v1853
        %v1925 = vunpack.c.l.b16 %v1854
        %v1926 = vunpack.c.l.b16 %v1855
        %v1927 = vunpack.c.l.b16 %v1856
        %v1928 = vpack.c.b16 %v1897, %v1896
        %v1929 = vpack.c.b16 %v1899, %v1898
        %v1930 = vpack.c.b16 %v1901, %v1900
        %v1931 = vpack.c.b16 %v1903, %v1902
        %v1932 = vpack.c.b16 %v1905, %v1904
        %v1933 = vpack.c.b16 %v1907, %v1906
        %v1934 = vpack.c.b16 %v1909, %v1908
        %v1935 = vpack.c.b16 %v1911, %v1910
        %v1936 = vpack.c.b16 %v1913, %v1912
        %v1937 = vpack.c.b16 %v1915, %v1914
        %v1938 = vpack.c.b16 %v1917, %v1916
        %v1939 = vpack.c.b16 %v1919, %v1918
        %v1940 = vpack.c.b16 %v1921, %v1920
        %v1941 = vpack.c.b16 %v1923, %v1922
        %v1942 = vpack.c.b16 %v1925, %v1924
        %v1943 = vpack.c.b16 %v1927, %v1926
        %1960 = vmatprep.subr.bf16.mxu0 0
        %1961 = vmatpush1.bf16.msra.mxu0 %v1928
        %1962 = vmatprep.subr.bf16.mxu0 0
        %1963 = vmatpush1.bf16.msra.mxu0 %v1929
        %1964 = vmatprep.subr.bf16.mxu0 0
        %1965 = vmatpush1.bf16.msra.mxu0 %v1930
        %1966 = vmatprep.subr.bf16.mxu0 0
        %1967 = vmatpush1.bf16.msra.mxu0 %v1931
        %1968 = vmatprep.subr.bf16.mxu0 0
        %1969 = vmatpush1.bf16.msra.mxu0 %v1932
        %1970 = vmatprep.subr.bf16.mxu0 0
        %1971 = vmatpush1.bf16.msra.mxu0 %v1933
        %1972 = vmatprep.subr.bf16.mxu0 0
        %1973 = vmatpush1.bf16.msra.mxu0 %v1934
        %1974 = vmatprep.subr.bf16.mxu0 0
        %1975 = vmatpush1.bf16.msra.mxu0 %v1935
        %1976 = vmatprep.subr.bf16.mxu0 0
        %1977 = vmatpush1.bf16.msra.mxu0 %v1936
        %1978 = vmatprep.subr.bf16.mxu0 0
        %1979 = vmatpush1.bf16.msra.mxu0 %v1937
        %1980 = vmatprep.subr.bf16.mxu0 0
        %1981 = vmatpush1.bf16.msra.mxu0 %v1938
        %1982 = vmatprep.subr.bf16.mxu0 0
        %1983 = vmatpush1.bf16.msra.mxu0 %v1939
        %1984 = vmatprep.subr.bf16.mxu0 0
        %1985 = vmatpush1.bf16.msra.mxu0 %v1940
        %1986 = vmatprep.subr.bf16.mxu0 0
        %1987 = vmatpush1.bf16.msra.mxu0 %v1941
        %1988 = vmatprep.subr.bf16.mxu0 0
        %1989 = vmatpush1.bf16.msra.mxu0 %v1942
        %1990 = vmatprep.subr.bf16.mxu0 0
        %1991 = vmatpush1.bf16.msra.mxu0 %v1943
        %1992 = vmatprep.mubr.bf16.mxu0 %v1824
        %1993 = vmatmul.mubr.bf16.gmra.mrb[0].mxu0 %v1823
        %v1994 = vpop.f32.mrb[0].mxu0
        %v1995 = vadd.f32 %v1862, %v1994
        %v1996 = vpop.f32.mrb[0].mxu0
        %v1997 = vpop.f32.mrb[0].mxu0
        %v1998 = vadd.f32 %v1862, %v1997
        %v1999 = vpop.f32.mrb[0].mxu0
        %2000 = vdwg.mxu0
        %v2001 = vadd.f32 %v1995, %v1665
        %v2002 = vadd.f32 %v1998, %v1666
        %v2003 = vld [vmem:[%s15] sm:$0x1]
        %v2004 = vld [vmem:[%s16] sm:$0x1]
        %2005 = vadd.xlane.f32.xlu0 %v2001
        %v2006 = vpop.xlane.xlu0 %2005
        %2007 = vadd.xlane.f32.xlu0 %v2002
        %v2008 = vpop.xlane.xlu0 %2007
        %v2009 = vmul.f32 %v2006, %v1632
        %v2010 = vmul.f32 %v2008, %v1632
        %v2011 = vsub.f32 %v2001, %v2009
        %v2012 = vsub.f32 %v2002, %v2010
        %v2013 = vmul.f32 %v2011, %v2011
        %v2014 = vmul.f32 %v2012, %v2012
        %2015 = vadd.xlane.f32.xlu0 %v2013
        %v2016 = vpop.xlane.xlu0 %2015
        %2017 = vadd.xlane.f32.xlu0 %v2014
        %v2018 = vpop.xlane.xlu0 %2017
        %v2019 = vmul.f32 %v2016, %v1632
        %v2020 = vmul.f32 %v2018, %v1632
        %v2021 = vadd.f32 %v2019, 1e-05
        %v2022 = vadd.f32 %v2020, 1e-05
        %v2023 = vrsqrt.pop %v2021
        %v2024 = vrsqrt.pop %v2022
        %v2025 = vmul.f32 %v2011, %v2023
        %v2026 = vmul.f32 %v2012, %v2024
        %v2028 = vlaneseq
        %v2029 = vshrl.u32 %v2028, 7
        %v2030 = vsub.s32 0, %v2029
        %v2031 = vrot.slane %v2003, %v2030
        %v2033 = vmul.f32 %v2025, %v2031
        %v2034 = vmul.f32 %v2026, %v2031
        %v2036 = vlaneseq
        %v2037 = vshrl.u32 %v2036, 7
        %v2038 = vsub.s32 0, %v2037
        %v2039 = vrot.slane %v2004, %v2038
        %v2041 = vadd.f32 %v2033, %v2039
        %v2042 = vadd.f32 %v2034, %v2039
        %2043 = vst [vmem:[%s674] sm:$0xff] %v2041
        %2044 = vst [vmem:[%s674 + $0x8] sm:$0xff] %v2042
        %s2045 = sand.u32 %s413, 1
        %s2046 = scalar_lea.sflag [#allocation9], %s2045
        %s2047 = sand.u32 %s413, 1
        %s2048 = smul.addr %s2047, 16
        %s2049 = scalar_lea.vmem [#allocation19], %s2048
        // Predicated region
        $region117: #{tpu_custom_call.1} parent=83 // pred_check
          %p2050 = pneg %p423
        $region118: #{tpu_custom_call.1} parent=83 // pred_check_branch
          %2052 = sbr.rel (%p2050) target = $region120
        $region119: #{tpu_custom_call.1} parent=83 // pred_region
          %s2053 = smul.u32 2, %s48
          %s2055 = ssub.s32 256, 256
          %2056 = vsyncadd %s2046, %s2055
          %s2057 = smul.addr %s47, 2
          %s2058 = sadd.s32 %s2053, %s2057
          %s2059 = smul.addr %s2058, 128
          %s2060 = scalar_lea.hbm %s17, %s2059
          %s2061 = sshll.u32 %s2049, 4
          %s2062 = int_to_ptr.vmem [resolvable:$true] %s2061
          %2067 = dma.vmem_to_hbm [thread:$0]  %s2062, 256, %s2060, %s2046, 128, 128, 8
        $region120: #{tpu_custom_call.1} parent=83 // pred_fallthru
          _
      $region84: #{tpu_custom_call.1} parent=5 // pred_fallthru
        _
      %p2068 = scmp.le.s32.totalorder 2, %s38
      // Predicated region
      $region121: #{tpu_custom_call.1} parent=5 // pred_check
        %p2069 = pneg %p2068
      $region122: #{tpu_custom_call.1} parent=5 // pred_check_branch
        %2071 = sbr.rel (%p2069) target = $region124
      $region123: #{tpu_custom_call.1} parent=5 // pred_region
        %s2072 = ssub.s32 %s38, 2
        // Predicated region
        $region125: #{tpu_custom_call.1} parent=123 // pred_check
          %p2073 = pneg %p429
        $region126: #{tpu_custom_call.1} parent=123 // pred_check_branch
          %2075 = sbr.rel (%p2073) target = $region128
        $region127: #{tpu_custom_call.1} parent=123 // pred_region
          %s2076 = sand.u32 %s414, 1
          %s2077 = scalar_lea.sflag [#allocation9], %s2076
          %s2078 = sand.u32 %s414, 1
          %s2079 = smul.addr %s2078, 16
          %s2080 = scalar_lea.vmem [#allocation19], %s2079
          %2081 = dma.done %s2077, 256
        $region128: #{tpu_custom_call.1} parent=123 // pred_fallthru
          _
      $region124: #{tpu_custom_call.1} parent=5 // pred_fallthru
        _
    $region6: #{tpu_custom_call.1} parent=1 // loop_footer
      %s42 = sadd.s32 1, %s38
    $region7: #{tpu_custom_call.1} parent=1 // loop_footer_branch
      %37 = sbr.rel target = $region3
    $region8: #{tpu_custom_call.1} parent=1 // loop_exit
      _
    %2082 = vsyncpa [#allocation8], 1
    %s2083 = scalar_lea.sflag [#allocation8], 1
    %2084 = vsyncpa %s2083, 1
    %2085 = vsyncpa [#allocation11], 1
    %s2086 = scalar_lea.sflag [#allocation11], 1
    %2087 = vsyncpa %s2086, 1
    %2088 = vsyncpa [#allocation14], 1
    %2089 = vsyncpa [#allocation17], 1
    %2090 = vsyncpa [#allocation9], 1
    %s2091 = scalar_lea.sflag [#allocation9], 1
    %2092 = vsyncpa %s2091, 1

</llo_original>
